<compile_context>
chip_gen: v5e
topology: v5e:2x2
jax: 0.10.0
libtpu: 0.0.40
codegen_flags: <defaults>
</compile_context>

<pallas_src>
import jax
import jax.numpy as jnp
from jax.experimental import pallas as pl
from jax.experimental.pallas import tpu as pltpu

LEAKY_SLOPE = 0.25
BN_EPS = 1e-5

# padded (MXU-tile aligned) feature widths  (ROSMAP dims: 200, 200, 100, 100)
PD1 = 256   # dim1 = 200 -> 256
PD2 = 256   # dim2 = 200 -> 256
PD3 = 128   # dim3 = 100 -> 128
PD4 = 128   # dim4 = 100 -> 128
PH = 128    # out-head hidden 100 -> 128
PO = 128    # n_classes (2) -> 128 lane-dense output


def _round_up(x, m):
    return (x + m - 1) // m * m


def _leaky(x):
    return jnp.where(x >= 0, x, LEAKY_SLOPE * x)


# ------------------------------- fused kernel -------------------------------

def fused_kernel(x1_ref, x2_ref, x3_ref,
                 w1_ref, b1_ref, w2_ref, b2_ref,
                 wsrc_ref, bsrc_ref, ws_ref, bs_ref,
                 wo1_ref, bo1_ref, wo2_ref, bo2_ref,
                 o_ref):
    def mm(a, w):
        # bf16 x bf16 -> f32 accumulate on the MXU
        return jnp.dot(a.astype(jnp.bfloat16), w,
                       preferred_element_type=jnp.float32)

    xs = (x1_ref[...], x2_ref[...], x3_ref[...])

    # first blocks: Linear -> LeakyReLU -> (BN1 folded) Linear -> LeakyReLU
    b_list = []
    for m in range(3):
        a = _leaky(mm(xs[m], w1_ref[m]) + b1_ref[m])            # (TB, PD1)
        b_list.append(_leaky(mm(a, w2_ref[m]) + b2_ref[m]))     # (TB, PD2)

    # all 9 (cross-)connection Linears as 3 dense per-source matmuls
    # (BN2 of the source modality folded in). Column block j of c_list[k] is
    # the connection from source modality k to target modality j.
    c_list = [mm(b_list[k], wsrc_ref[k]) + bsrc_ref[k]          # (TB, 3*PD3)
              for k in range(3)]

    # second blocks: rebuild crossed_j (source order 0,1,2) from lane-aligned
    # slices, then LeakyReLU -> (BN over dim3*3 folded) Linear -> LeakyReLU.
    outs = []
    for j in range(3):
        crossed_j = jnp.concatenate(
            [c_list[k][:, j * PD3:(j + 1) * PD3] for k in range(3)], axis=1)
        outs.append(_leaky(mm(_leaky(crossed_j), ws_ref[j]) + bs_ref[j]))

    combined = jnp.concatenate(outs, axis=1)                    # (TB, 3*PD4)

    # output head: (trailing BN of second blocks folded) Linear -> LeakyReLU
    # -> (head BN folded) Linear
    h = _leaky(mm(combined, wo1_ref[...]) + bo1_ref[...])       # (TB, PH)
    o_ref[...] = mm(h, wo2_ref[...]) + bo2_ref[...]             # (TB, PO)


def crossmodal_forward(kp, x1, x2, x3, n_classes, pin):
    B = x1.shape[0]
    # pad batch to the bf16 sublane tile (16); tile at most 128 rows per step
    b_pad = _round_up(max(B, 16), 16)
    tile_b = min(128, b_pad)
    b_pad = _round_up(b_pad, tile_b)
    grid = (b_pad // tile_b,)

    def pad_x(x):
        xb = jnp.zeros((b_pad, pin), jnp.float32)
        return xb.at[:B, :x.shape[1]].set(x)

    x1p, x2p, x3p = pad_x(x1), pad_x(x2), pad_x(x3)

    def xspec():
        return pl.BlockSpec((tile_b, pin), lambda i: (i, 0))

    def wspec(arr):
        nd = arr.ndim
        return pl.BlockSpec(arr.shape, lambda i, _nd=nd: (0,) * _nd)

    weights = (kp["w1"], kp["b1"], kp["w2"], kp["b2"],
               kp["wsrc"], kp["bsrc"], kp["ws"], kp["bs"],
               kp["wo1"], kp["bo1"], kp["wo2"], kp["bo2"])

    out = pl.pallas_call(
        fused_kernel,
        out_shape=jax.ShapeDtypeStruct((b_pad, PO), jnp.float32),
        grid=grid,
        in_specs=[xspec(), xspec(), xspec()] + [wspec(w) for w in weights],
        out_specs=pl.BlockSpec((tile_b, PO), lambda i: (i, 0)),
        compiler_params=pltpu.CompilerParams(
            dimension_semantics=("parallel",),
            vmem_limit_bytes=16 * 1024 * 1024),
    )(x1p, x2p, x3p, *weights)
    return out[:B, :n_classes]


# --------------------------- raw (PyTorch-like) params ----------------------

def _linear_params(key, fan_in, fan_out):
    kw, kb = jax.random.split(key)
    bound = 1.0 / (fan_in ** 0.5)
    w = jax.random.uniform(kw, (fan_in, fan_out), jnp.float32, -bound, bound)
    b = jax.random.uniform(kb, (1, fan_out), jnp.float32, -bound, bound)
    return w, b


def _bn_scale_shift(key, dim):
    # eval-mode BatchNorm1d folded to per-feature scale s and shift t
    kg, kb, km, kv = jax.random.split(key, 4)
    gamma = jax.random.uniform(kg, (1, dim), jnp.float32, 0.5, 1.5)
    beta = jax.random.uniform(kb, (1, dim), jnp.float32, -0.1, 0.1)
    mean = jax.random.uniform(km, (1, dim), jnp.float32, -0.1, 0.1)
    var = jax.random.uniform(kv, (1, dim), jnp.float32, 0.5, 1.5)
    s = gamma / jnp.sqrt(var + BN_EPS)
    t = beta - mean * s
    return s, t


def init_raw_params(key, input_sizes, dims, n_classes):
    dim1, dim2, dim3, dim4 = dims
    keys = iter(jax.random.split(key, 64))
    params = {"first": [], "conn": {}, "second": [], "out": None}

    for in_size in input_sizes:
        w1, b1 = _linear_params(next(keys), in_size, dim1)
        s1, t1 = _bn_scale_shift(next(keys), dim1)
        w2, b2 = _linear_params(next(keys), dim1, dim2)
        s2, t2 = _bn_scale_shift(next(keys), dim2)
        params["first"].append(dict(w1=w1, b1=b1, s1=s1, t1=t1,
                                    w2=w2, b2=b2, s2=s2, t2=t2))

    # connection1..3 and the six cross connections, all (dim2 -> dim3)
    for name in ["c1", "c2", "c3", "x12", "x32", "x21", "x23", "x13", "x31"]:
        w, b = _linear_params(next(keys), dim2, dim3)
        params["conn"][name] = dict(w=w, b=b)

    for _ in range(3):
        s0, t0 = _bn_scale_shift(next(keys), dim3 * 3)
        w, b = _linear_params(next(keys), dim3 * 3, dim4)
        s1, t1 = _bn_scale_shift(next(keys), dim4)
        params["second"].append(dict(s0=s0, t0=t0, w=w, b=b, s1=s1, t1=t1))

    w1, b1 = _linear_params(next(keys), dim4 * 3, 100)
    s, t = _bn_scale_shift(next(keys), 100)
    w2, b2 = _linear_params(next(keys), 100, n_classes)
    params["out"] = dict(w1=w1, b1=b1, s=s, t=t, w2=w2, b2=b2)
    return params


# ---------------------- pack + fold into kernel params (glue) ---------------

def pack_params(raw, dims, input_sizes):
    dim1, dim2, dim3, dim4 = dims
    pin = _round_up(max(input_sizes), 128)

    def zpad(a, shape):
        out = jnp.zeros(shape, jnp.float32)
        return out.at[:a.shape[0], :a.shape[1]].set(a)

    # first Linear of each modality + (BN1-folded) second Linear, dense blocks
    w1_blocks, b1_blocks, w2_blocks, b2_blocks = [], [], [], []
    for p in raw["first"]:
        w1_blocks.append(zpad(p["w1"], (pin, PD1)))
        b1_blocks.append(zpad(p["b1"], (1, PD1)))
        w2f = p["s1"].T * p["w2"]                # (dim1, dim2)
        b2f = p["t1"] @ p["w2"] + p["b2"]        # (1, dim2)
        w2_blocks.append(zpad(w2f, (PD1, PD2)))
        b2_blocks.append(zpad(b2f, (1, PD2)))

    # nine (cross-)connection Linears packed per SOURCE modality (dense),
    # columns ordered by target modality; BN2 of the source folded in.
    cross_map = [["c1", "x21", "x31"],           # target 0 <- sources 0,1,2
                 ["x12", "c2", "x32"],           # target 1
                 ["x13", "x23", "c3"]]           # target 2
    wsrc_blocks, bsrc_blocks = [], []
    for k in range(3):
        s2, t2 = raw["first"][k]["s2"], raw["first"][k]["t2"]
        wk = jnp.zeros((PD2, 3 * PD3), jnp.float32)
        bk = jnp.zeros((1, 3 * PD3), jnp.float32)
        for j in range(3):
            cw = raw["conn"][cross_map[j][k]]
            wf = s2.T * cw["w"]                  # (dim2, dim3)
            bf = t2 @ cw["w"] + cw["b"]          # (1, dim3)
            wk = wk.at[:dim2, j * PD3:j * PD3 + dim3].set(wf)
            bk = bk.at[:, j * PD3:j * PD3 + dim3].set(bf)
        wsrc_blocks.append(wk)
        bsrc_blocks.append(bk)

    # second blocks: BN over dim3*3 folded; dense per-target slabs whose row
    # blocks match the crossed_j layout [src0(PD3) | src1(PD3) | src2(PD3)].
    ws_blocks, bs_blocks = [], []
    for j in range(3):
        p = raw["second"][j]
        wf = p["s0"].T * p["w"]                  # (3*dim3, dim4)
        bf = p["t0"] @ p["w"] + p["b"]           # (1, dim4)
        wj = jnp.zeros((3 * PD3, PD4), jnp.float32)
        for k in range(3):
            wj = wj.at[k * PD3:k * PD3 + dim3, :dim4].set(
                wf[k * dim3:(k + 1) * dim3, :])
        ws_blocks.append(wj)
        bs_blocks.append(zpad(bf, (1, PD4)))

    # out head Linear1: trailing BN (s1,t1) of the three second blocks folded
    s1cat = jnp.concatenate([raw["second"][j]["s1"] for j in range(3)], axis=1)
    t1cat = jnp.concatenate([raw["second"][j]["t1"] for j in range(3)], axis=1)
    po = raw["out"]
    wo1f = s1cat.T * po["w1"]                    # (3*dim4, 100)
    bo1f = t1cat @ po["w1"] + po["b1"]           # (1, 100)
    hdim = po["w1"].shape[1]
    wo1p = jnp.zeros((3 * PD4, PH), jnp.float32)
    for j in range(3):
        wo1p = wo1p.at[j * PD4:j * PD4 + dim4, :hdim].set(
            wo1f[j * dim4:(j + 1) * dim4, :])

    # out head Linear2: head BN (s,t) folded; lane-dense 128-wide output
    wo2f = po["s"].T * po["w2"]                  # (100, n_classes)
    bo2f = po["t"] @ po["w2"] + po["b2"]         # (1, n_classes)

    kp = {
        "w1": jnp.stack(w1_blocks).astype(jnp.bfloat16),     # (3, pin, PD1)
        "b1": jnp.stack(b1_blocks),                          # (3, 1, PD1) f32
        "w2": jnp.stack(w2_blocks).astype(jnp.bfloat16),     # (3, PD1, PD2)
        "b2": jnp.stack(b2_blocks),
        "wsrc": jnp.stack(wsrc_blocks).astype(jnp.bfloat16), # (3, PD2, 3*PD3)
        "bsrc": jnp.stack(bsrc_blocks),
        "ws": jnp.stack(ws_blocks).astype(jnp.bfloat16),     # (3, 3*PD3, PD4)
        "bs": jnp.stack(bs_blocks),
        "wo1": wo1p.astype(jnp.bfloat16),                    # (3*PD4, PH)
        "bo1": zpad(bo1f, (1, PH)),
        "wo2": zpad(wo2f, (PH, PO)).astype(jnp.bfloat16),    # (PH, PO)
        "bo2": zpad(bo2f, (1, PO)),
    }
    return kp, pin


# ------------------------------ pure-JAX reference --------------------------

def reference_forward(params, x1, x2, x3):
    def fb(x, p):
        h = _leaky(x @ p["w1"] + p["b1"]) * p["s1"] + p["t1"]
        return _leaky(h @ p["w2"] + p["b2"]) * p["s2"] + p["t2"]

    def lin(x, p):
        return x @ p["w"] + p["b"]

    def sb(x, p):
        h = _leaky(x) * p["s0"] + p["t0"]
        return _leaky(h @ p["w"] + p["b"]) * p["s1"] + p["t1"]

    out1 = fb(x1, params["first"][0])
    out2 = fb(x2, params["first"][1])
    out3 = fb(x3, params["first"][2])
    c = params["conn"]
    crossed1 = jnp.concatenate([lin(out1, c["c1"]), lin(out2, c["x21"]),
                                lin(out3, c["x31"])], axis=1)
    crossed2 = jnp.concatenate([lin(out1, c["x12"]), lin(out2, c["c2"]),
                                lin(out3, c["x32"])], axis=1)
    crossed3 = jnp.concatenate([lin(out1, c["x13"]), lin(out2, c["x23"]),
                                lin(out3, c["c3"])], axis=1)
    out11 = sb(crossed1, params["second"][0])
    out22 = sb(crossed2, params["second"][1])
    out33 = sb(crossed3, params["second"][2])
    combined = jnp.concatenate([out11, out22, out33], axis=1)
    p = params["out"]
    h = _leaky(combined @ p["w1"] + p["b1"]) * p["s"] + p["t"]
    return h @ p["w2"] + p["b2"]


# ------------------------------ main ----------------------------------------

if __name__ == "__main__":
    # ROSMAP branch: dim1,dim2,dim3,dim4 = 200,200,100,100 ; 2 output classes
    dims = (200, 200, 100, 100)
    n_classes = 2
    input_sizes = (64, 48, 80)   # input_size_1/2/3 (small synthetic)
    batch = 8

    root = jax.random.PRNGKey(0)
    k_params, k1, k2, k3 = jax.random.split(root, 4)
    raw = init_raw_params(k_params, input_sizes, dims, n_classes)
    kernel_params, pin = pack_params(raw, dims, input_sizes)

    x1 = jax.random.normal(k1, (batch, input_sizes[0]), jnp.float32)
    x2 = jax.random.normal(k2, (batch, input_sizes[1]), jnp.float32)
    x3 = jax.random.normal(k3, (batch, input_sizes[2]), jnp.float32)

    fwd = jax.jit(lambda kp, a, b, c: crossmodal_forward(kp, a, b, c,
                                                         n_classes, pin))
    out = jax.block_until_ready(fwd(kernel_params, x1, x2, x3))

    ref = jax.block_until_ready(reference_forward(raw, x1, x2, x3))
    assert out.shape == (batch, n_classes), out.shape
    max_err = float(jnp.max(jnp.abs(out - ref)))
    # bf16 weights/activation casts vs f32 reference: modest tolerance
    assert jnp.allclose(out, ref, atol=5e-2, rtol=5e-2), max_err

    print("KERNEL_OK")
</pallas_src>

<mosaic_0001>
module attributes {stable_mosaic.version = 11 : i64} {
  func.func @fused_kernel(%arg0: i32, %arg1: memref<16x128xf32, #tpu.memory_space<vmem>>, %arg2: memref<16x128xf32, #tpu.memory_space<vmem>>, %arg3: memref<16x128xf32, #tpu.memory_space<vmem>>, %arg4: memref<3x128x256xbf16, #tpu.memory_space<vmem>>, %arg5: memref<3x1x256xf32, #tpu.memory_space<vmem>>, %arg6: memref<3x256x256xbf16, #tpu.memory_space<vmem>>, %arg7: memref<3x1x256xf32, #tpu.memory_space<vmem>>, %arg8: memref<3x256x384xbf16, #tpu.memory_space<vmem>>, %arg9: memref<3x1x384xf32, #tpu.memory_space<vmem>>, %arg10: memref<3x384x128xbf16, #tpu.memory_space<vmem>>, %arg11: memref<3x1x128xf32, #tpu.memory_space<vmem>>, %arg12: memref<384x128xbf16, #tpu.memory_space<vmem>>, %arg13: memref<1x128xf32, #tpu.memory_space<vmem>>, %arg14: memref<128x128xbf16, #tpu.memory_space<vmem>>, %arg15: memref<1x128xf32, #tpu.memory_space<vmem>>, %arg16: memref<16x128xf32, #tpu.memory_space<vmem>>) attributes {dimension_semantics = [#tpu.dimension_semantics<parallel>], iteration_bounds = array<i64: 1>, scalar_prefetch = 0 : i64, scratch_operands = 0 : i64, tpu.core_type = #tpu.core_type<tc>, window_params = [{transform_indices = @transform_0, window_bounds = array<i64: 16, 128>}, {transform_indices = @transform_1, window_bounds = array<i64: 16, 128>}, {transform_indices = @transform_2, window_bounds = array<i64: 16, 128>}, {pipeline_mode = #tpu.pipeline_mode<synchronous>, transform_indices = @transform_3, window_bounds = array<i64: 3, 128, 256>}, {pipeline_mode = #tpu.pipeline_mode<synchronous>, transform_indices = @transform_4, window_bounds = array<i64: 3, 1, 256>}, {pipeline_mode = #tpu.pipeline_mode<synchronous>, transform_indices = @transform_5, window_bounds = array<i64: 3, 256, 256>}, {pipeline_mode = #tpu.pipeline_mode<synchronous>, transform_indices = @transform_6, window_bounds = array<i64: 3, 1, 256>}, {pipeline_mode = #tpu.pipeline_mode<synchronous>, transform_indices = @transform_7, window_bounds = array<i64: 3, 256, 384>}, {pipeline_mode = #tpu.pipeline_mode<synchronous>, transform_indices = @transform_8, window_bounds = array<i64: 3, 1, 384>}, {pipeline_mode = #tpu.pipeline_mode<synchronous>, transform_indices = @transform_9, window_bounds = array<i64: 3, 384, 128>}, {pipeline_mode = #tpu.pipeline_mode<synchronous>, transform_indices = @transform_10, window_bounds = array<i64: 3, 1, 128>}, {pipeline_mode = #tpu.pipeline_mode<synchronous>, transform_indices = @transform_11, window_bounds = array<i64: 384, 128>}, {pipeline_mode = #tpu.pipeline_mode<synchronous>, transform_indices = @transform_12, window_bounds = array<i64: 1, 128>}, {pipeline_mode = #tpu.pipeline_mode<synchronous>, transform_indices = @transform_13, window_bounds = array<i64: 128, 128>}, {pipeline_mode = #tpu.pipeline_mode<synchronous>, transform_indices = @transform_14, window_bounds = array<i64: 1, 128>}, {transform_indices = @transform_15, window_bounds = array<i64: 16, 128>}]} {
    %c0 = arith.constant 0 : index
    %c0_0 = arith.constant 0 : index
    %0 = vector.load %arg1[%c0, %c0_0] : memref<16x128xf32, #tpu.memory_space<vmem>>, vector<16x128xf32>
    %c0_1 = arith.constant 0 : index
    %c0_2 = arith.constant 0 : index
    %1 = vector.load %arg2[%c0_1, %c0_2] : memref<16x128xf32, #tpu.memory_space<vmem>>, vector<16x128xf32>
    %c0_3 = arith.constant 0 : index
    %c0_4 = arith.constant 0 : index
    %2 = vector.load %arg3[%c0_3, %c0_4] : memref<16x128xf32, #tpu.memory_space<vmem>>, vector<16x128xf32>
    %c0_5 = arith.constant 0 : index
    %c0_6 = arith.constant 0 : index
    %c0_7 = arith.constant 0 : index
    %3 = vector.load %arg4[%c0_5, %c0_6, %c0_7] : memref<3x128x256xbf16, #tpu.memory_space<vmem>>, vector<1x128x256xbf16>
    %4 = vector.shape_cast %3 : vector<1x128x256xbf16> to vector<128x256xbf16>
    %5 = arith.truncf %0 : vector<16x128xf32> to vector<16x128xbf16>
    %cst = arith.constant dense<0.000000e+00> : vector<16x256xf32>
    %6 = tpu.matmul %5, %4, %cst {dimension_numbers = #tpu.dot_dimension_numbers<[1], [0], [0], [1], [0, 0, 1, 1], [], []>} : vector<16x128xbf16>, vector<128x256xbf16>, vector<16x256xf32> -> vector<16x256xf32>
    %c0_8 = arith.constant 0 : index
    %c0_9 = arith.constant 0 : index
    %c0_10 = arith.constant 0 : index
    %7 = vector.load %arg5[%c0_8, %c0_9, %c0_10] : memref<3x1x256xf32, #tpu.memory_space<vmem>>, vector<1x1x256xf32>
    %8 = vector.shape_cast %7 : vector<1x1x256xf32> to vector<1x256xf32>
    %9 = vector.broadcast %8 : vector<1x256xf32> to vector<16x256xf32>
    %10 = arith.addf %6, %9 : vector<16x256xf32>
    %cst_11 = arith.constant 0.000000e+00 : f32
    %11 = vector.broadcast %cst_11 : f32 to vector<16x256xf32>
    %12 = arith.cmpf oge, %10, %11 : vector<16x256xf32>
    %cst_12 = arith.constant 2.500000e-01 : f32
    %13 = vector.broadcast %cst_12 : f32 to vector<16x256xf32>
    %14 = arith.mulf %13, %10 : vector<16x256xf32>
    %15 = arith.select %12, %10, %14 : vector<16x256xi1>, vector<16x256xf32>
    %c0_13 = arith.constant 0 : index
    %c0_14 = arith.constant 0 : index
    %c0_15 = arith.constant 0 : index
    %16 = vector.load %arg6[%c0_13, %c0_14, %c0_15] : memref<3x256x256xbf16, #tpu.memory_space<vmem>>, vector<1x256x256xbf16>
    %17 = vector.shape_cast %16 : vector<1x256x256xbf16> to vector<256x256xbf16>
    %18 = arith.truncf %15 : vector<16x256xf32> to vector<16x256xbf16>
    %cst_16 = arith.constant dense<0.000000e+00> : vector<16x256xf32>
    %19 = tpu.matmul %18, %17, %cst_16 {dimension_numbers = #tpu.dot_dimension_numbers<[1], [0], [0], [1], [0, 0, 1, 1], [], []>} : vector<16x256xbf16>, vector<256x256xbf16>, vector<16x256xf32> -> vector<16x256xf32>
    %c0_17 = arith.constant 0 : index
    %c0_18 = arith.constant 0 : index
    %c0_19 = arith.constant 0 : index
    %20 = vector.load %arg7[%c0_17, %c0_18, %c0_19] : memref<3x1x256xf32, #tpu.memory_space<vmem>>, vector<1x1x256xf32>
    %21 = vector.shape_cast %20 : vector<1x1x256xf32> to vector<1x256xf32>
    %22 = vector.broadcast %21 : vector<1x256xf32> to vector<16x256xf32>
    %23 = arith.addf %19, %22 : vector<16x256xf32>
    %cst_20 = arith.constant 0.000000e+00 : f32
    %24 = vector.broadcast %cst_20 : f32 to vector<16x256xf32>
    %25 = arith.cmpf oge, %23, %24 : vector<16x256xf32>
    %cst_21 = arith.constant 2.500000e-01 : f32
    %26 = vector.broadcast %cst_21 : f32 to vector<16x256xf32>
    %27 = arith.mulf %26, %23 : vector<16x256xf32>
    %28 = arith.select %25, %23, %27 : vector<16x256xi1>, vector<16x256xf32>
    %c1 = arith.constant 1 : index
    %c0_22 = arith.constant 0 : index
    %c0_23 = arith.constant 0 : index
    %29 = vector.load %arg4[%c1, %c0_22, %c0_23] : memref<3x128x256xbf16, #tpu.memory_space<vmem>>, vector<1x128x256xbf16>
    %30 = vector.shape_cast %29 : vector<1x128x256xbf16> to vector<128x256xbf16>
    %31 = arith.truncf %1 : vector<16x128xf32> to vector<16x128xbf16>
    %cst_24 = arith.constant dense<0.000000e+00> : vector<16x256xf32>
    %32 = tpu.matmul %31, %30, %cst_24 {dimension_numbers = #tpu.dot_dimension_numbers<[1], [0], [0], [1], [0, 0, 1, 1], [], []>} : vector<16x128xbf16>, vector<128x256xbf16>, vector<16x256xf32> -> vector<16x256xf32>
    %c1_25 = arith.constant 1 : index
    %c0_26 = arith.constant 0 : index
    %c0_27 = arith.constant 0 : index
    %33 = vector.load %arg5[%c1_25, %c0_26, %c0_27] : memref<3x1x256xf32, #tpu.memory_space<vmem>>, vector<1x1x256xf32>
    %34 = vector.shape_cast %33 : vector<1x1x256xf32> to vector<1x256xf32>
    %35 = vector.broadcast %34 : vector<1x256xf32> to vector<16x256xf32>
    %36 = arith.addf %32, %35 : vector<16x256xf32>
    %cst_28 = arith.constant 0.000000e+00 : f32
    %37 = vector.broadcast %cst_28 : f32 to vector<16x256xf32>
    %38 = arith.cmpf oge, %36, %37 : vector<16x256xf32>
    %cst_29 = arith.constant 2.500000e-01 : f32
    %39 = vector.broadcast %cst_29 : f32 to vector<16x256xf32>
    %40 = arith.mulf %39, %36 : vector<16x256xf32>
    %41 = arith.select %38, %36, %40 : vector<16x256xi1>, vector<16x256xf32>
    %c1_30 = arith.constant 1 : index
    %c0_31 = arith.constant 0 : index
    %c0_32 = arith.constant 0 : index
    %42 = vector.load %arg6[%c1_30, %c0_31, %c0_32] : memref<3x256x256xbf16, #tpu.memory_space<vmem>>, vector<1x256x256xbf16>
    %43 = vector.shape_cast %42 : vector<1x256x256xbf16> to vector<256x256xbf16>
    %44 = arith.truncf %41 : vector<16x256xf32> to vector<16x256xbf16>
    %cst_33 = arith.constant dense<0.000000e+00> : vector<16x256xf32>
    %45 = tpu.matmul %44, %43, %cst_33 {dimension_numbers = #tpu.dot_dimension_numbers<[1], [0], [0], [1], [0, 0, 1, 1], [], []>} : vector<16x256xbf16>, vector<256x256xbf16>, vector<16x256xf32> -> vector<16x256xf32>
    %c1_34 = arith.constant 1 : index
    %c0_35 = arith.constant 0 : index
    %c0_36 = arith.constant 0 : index
    %46 = vector.load %arg7[%c1_34, %c0_35, %c0_36] : memref<3x1x256xf32, #tpu.memory_space<vmem>>, vector<1x1x256xf32>
    %47 = vector.shape_cast %46 : vector<1x1x256xf32> to vector<1x256xf32>
    %48 = vector.broadcast %47 : vector<1x256xf32> to vector<16x256xf32>
    %49 = arith.addf %45, %48 : vector<16x256xf32>
    %cst_37 = arith.constant 0.000000e+00 : f32
    %50 = vector.broadcast %cst_37 : f32 to vector<16x256xf32>
    %51 = arith.cmpf oge, %49, %50 : vector<16x256xf32>
    %cst_38 = arith.constant 2.500000e-01 : f32
    %52 = vector.broadcast %cst_38 : f32 to vector<16x256xf32>
    %53 = arith.mulf %52, %49 : vector<16x256xf32>
    %54 = arith.select %51, %49, %53 : vector<16x256xi1>, vector<16x256xf32>
    %c2 = arith.constant 2 : index
    %c0_39 = arith.constant 0 : index
    %c0_40 = arith.constant 0 : index
    %55 = vector.load %arg4[%c2, %c0_39, %c0_40] : memref<3x128x256xbf16, #tpu.memory_space<vmem>>, vector<1x128x256xbf16>
    %56 = vector.shape_cast %55 : vector<1x128x256xbf16> to vector<128x256xbf16>
    %57 = arith.truncf %2 : vector<16x128xf32> to vector<16x128xbf16>
    %cst_41 = arith.constant dense<0.000000e+00> : vector<16x256xf32>
    %58 = tpu.matmul %57, %56, %cst_41 {dimension_numbers = #tpu.dot_dimension_numbers<[1], [0], [0], [1], [0, 0, 1, 1], [], []>} : vector<16x128xbf16>, vector<128x256xbf16>, vector<16x256xf32> -> vector<16x256xf32>
    %c2_42 = arith.constant 2 : index
    %c0_43 = arith.constant 0 : index
    %c0_44 = arith.constant 0 : index
    %59 = vector.load %arg5[%c2_42, %c0_43, %c0_44] : memref<3x1x256xf32, #tpu.memory_space<vmem>>, vector<1x1x256xf32>
    %60 = vector.shape_cast %59 : vector<1x1x256xf32> to vector<1x256xf32>
    %61 = vector.broadcast %60 : vector<1x256xf32> to vector<16x256xf32>
    %62 = arith.addf %58, %61 : vector<16x256xf32>
    %cst_45 = arith.constant 0.000000e+00 : f32
    %63 = vector.broadcast %cst_45 : f32 to vector<16x256xf32>
    %64 = arith.cmpf oge, %62, %63 : vector<16x256xf32>
    %cst_46 = arith.constant 2.500000e-01 : f32
    %65 = vector.broadcast %cst_46 : f32 to vector<16x256xf32>
    %66 = arith.mulf %65, %62 : vector<16x256xf32>
    %67 = arith.select %64, %62, %66 : vector<16x256xi1>, vector<16x256xf32>
    %c2_47 = arith.constant 2 : index
    %c0_48 = arith.constant 0 : index
    %c0_49 = arith.constant 0 : index
    %68 = vector.load %arg6[%c2_47, %c0_48, %c0_49] : memref<3x256x256xbf16, #tpu.memory_space<vmem>>, vector<1x256x256xbf16>
    %69 = vector.shape_cast %68 : vector<1x256x256xbf16> to vector<256x256xbf16>
    %70 = arith.truncf %67 : vector<16x256xf32> to vector<16x256xbf16>
    %cst_50 = arith.constant dense<0.000000e+00> : vector<16x256xf32>
    %71 = tpu.matmul %70, %69, %cst_50 {dimension_numbers = #tpu.dot_dimension_numbers<[1], [0], [0], [1], [0, 0, 1, 1], [], []>} : vector<16x256xbf16>, vector<256x256xbf16>, vector<16x256xf32> -> vector<16x256xf32>
    %c2_51 = arith.constant 2 : index
    %c0_52 = arith.constant 0 : index
    %c0_53 = arith.constant 0 : index
    %72 = vector.load %arg7[%c2_51, %c0_52, %c0_53] : memref<3x1x256xf32, #tpu.memory_space<vmem>>, vector<1x1x256xf32>
    %73 = vector.shape_cast %72 : vector<1x1x256xf32> to vector<1x256xf32>
    %74 = vector.broadcast %73 : vector<1x256xf32> to vector<16x256xf32>
    %75 = arith.addf %71, %74 : vector<16x256xf32>
    %cst_54 = arith.constant 0.000000e+00 : f32
    %76 = vector.broadcast %cst_54 : f32 to vector<16x256xf32>
    %77 = arith.cmpf oge, %75, %76 : vector<16x256xf32>
    %cst_55 = arith.constant 2.500000e-01 : f32
    %78 = vector.broadcast %cst_55 : f32 to vector<16x256xf32>
    %79 = arith.mulf %78, %75 : vector<16x256xf32>
    %80 = arith.select %77, %75, %79 : vector<16x256xi1>, vector<16x256xf32>
    %c0_56 = arith.constant 0 : index
    %c0_57 = arith.constant 0 : index
    %c0_58 = arith.constant 0 : index
    %81 = vector.load %arg8[%c0_56, %c0_57, %c0_58] : memref<3x256x384xbf16, #tpu.memory_space<vmem>>, vector<1x256x384xbf16>
    %82 = vector.shape_cast %81 : vector<1x256x384xbf16> to vector<256x384xbf16>
    %83 = arith.truncf %28 : vector<16x256xf32> to vector<16x256xbf16>
    %cst_59 = arith.constant dense<0.000000e+00> : vector<16x384xf32>
    %84 = tpu.matmul %83, %82, %cst_59 {dimension_numbers = #tpu.dot_dimension_numbers<[1], [0], [0], [1], [0, 0, 1, 1], [], []>} : vector<16x256xbf16>, vector<256x384xbf16>, vector<16x384xf32> -> vector<16x384xf32>
    %c0_60 = arith.constant 0 : index
    %c0_61 = arith.constant 0 : index
    %c0_62 = arith.constant 0 : index
    %85 = vector.load %arg9[%c0_60, %c0_61, %c0_62] : memref<3x1x384xf32, #tpu.memory_space<vmem>>, vector<1x1x384xf32>
    %86 = vector.shape_cast %85 : vector<1x1x384xf32> to vector<1x384xf32>
    %87 = vector.broadcast %86 : vector<1x384xf32> to vector<16x384xf32>
    %88 = arith.addf %84, %87 : vector<16x384xf32>
    %c1_63 = arith.constant 1 : index
    %c0_64 = arith.constant 0 : index
    %c0_65 = arith.constant 0 : index
    %89 = vector.load %arg8[%c1_63, %c0_64, %c0_65] : memref<3x256x384xbf16, #tpu.memory_space<vmem>>, vector<1x256x384xbf16>
    %90 = vector.shape_cast %89 : vector<1x256x384xbf16> to vector<256x384xbf16>
    %91 = arith.truncf %54 : vector<16x256xf32> to vector<16x256xbf16>
    %cst_66 = arith.constant dense<0.000000e+00> : vector<16x384xf32>
    %92 = tpu.matmul %91, %90, %cst_66 {dimension_numbers = #tpu.dot_dimension_numbers<[1], [0], [0], [1], [0, 0, 1, 1], [], []>} : vector<16x256xbf16>, vector<256x384xbf16>, vector<16x384xf32> -> vector<16x384xf32>
    %c1_67 = arith.constant 1 : index
    %c0_68 = arith.constant 0 : index
    %c0_69 = arith.constant 0 : index
    %93 = vector.load %arg9[%c1_67, %c0_68, %c0_69] : memref<3x1x384xf32, #tpu.memory_space<vmem>>, vector<1x1x384xf32>
    %94 = vector.shape_cast %93 : vector<1x1x384xf32> to vector<1x384xf32>
    %95 = vector.broadcast %94 : vector<1x384xf32> to vector<16x384xf32>
    %96 = arith.addf %92, %95 : vector<16x384xf32>
    %c2_70 = arith.constant 2 : index
    %c0_71 = arith.constant 0 : index
    %c0_72 = arith.constant 0 : index
    %97 = vector.load %arg8[%c2_70, %c0_71, %c0_72] : memref<3x256x384xbf16, #tpu.memory_space<vmem>>, vector<1x256x384xbf16>
    %98 = vector.shape_cast %97 : vector<1x256x384xbf16> to vector<256x384xbf16>
    %99 = arith.truncf %80 : vector<16x256xf32> to vector<16x256xbf16>
    %cst_73 = arith.constant dense<0.000000e+00> : vector<16x384xf32>
    %100 = tpu.matmul %99, %98, %cst_73 {dimension_numbers = #tpu.dot_dimension_numbers<[1], [0], [0], [1], [0, 0, 1, 1], [], []>} : vector<16x256xbf16>, vector<256x384xbf16>, vector<16x384xf32> -> vector<16x384xf32>
    %c2_74 = arith.constant 2 : index
    %c0_75 = arith.constant 0 : index
    %c0_76 = arith.constant 0 : index
    %101 = vector.load %arg9[%c2_74, %c0_75, %c0_76] : memref<3x1x384xf32, #tpu.memory_space<vmem>>, vector<1x1x384xf32>
    %102 = vector.shape_cast %101 : vector<1x1x384xf32> to vector<1x384xf32>
    %103 = vector.broadcast %102 : vector<1x384xf32> to vector<16x384xf32>
    %104 = arith.addf %100, %103 : vector<16x384xf32>
    %105 = vector.extract_strided_slice %88 {offsets = [0, 0], sizes = [16, 128], strides = [1, 1]} : vector<16x384xf32> to vector<16x128xf32>
    %106 = vector.extract_strided_slice %96 {offsets = [0, 0], sizes = [16, 128], strides = [1, 1]} : vector<16x384xf32> to vector<16x128xf32>
    %107 = vector.extract_strided_slice %104 {offsets = [0, 0], sizes = [16, 128], strides = [1, 1]} : vector<16x384xf32> to vector<16x128xf32>
    %108 = tpu.concatenate %105, %106, %107 in 1 : vector<16x128xf32>, vector<16x128xf32>, vector<16x128xf32> -> vector<16x384xf32>
    %cst_77 = arith.constant 0.000000e+00 : f32
    %109 = vector.broadcast %cst_77 : f32 to vector<16x384xf32>
    %110 = arith.cmpf oge, %108, %109 : vector<16x384xf32>
    %cst_78 = arith.constant 2.500000e-01 : f32
    %111 = vector.broadcast %cst_78 : f32 to vector<16x384xf32>
    %112 = arith.mulf %111, %108 : vector<16x384xf32>
    %113 = arith.select %110, %108, %112 : vector<16x384xi1>, vector<16x384xf32>
    %c0_79 = arith.constant 0 : index
    %c0_80 = arith.constant 0 : index
    %c0_81 = arith.constant 0 : index
    %114 = vector.load %arg10[%c0_79, %c0_80, %c0_81] : memref<3x384x128xbf16, #tpu.memory_space<vmem>>, vector<1x384x128xbf16>
    %115 = vector.shape_cast %114 : vector<1x384x128xbf16> to vector<384x128xbf16>
    %116 = arith.truncf %113 : vector<16x384xf32> to vector<16x384xbf16>
    %cst_82 = arith.constant dense<0.000000e+00> : vector<16x128xf32>
    %117 = tpu.matmul %116, %115, %cst_82 {dimension_numbers = #tpu.dot_dimension_numbers<[1], [0], [0], [1], [0, 0, 1, 1], [], []>} : vector<16x384xbf16>, vector<384x128xbf16>, vector<16x128xf32> -> vector<16x128xf32>
    %c0_83 = arith.constant 0 : index
    %c0_84 = arith.constant 0 : index
    %c0_85 = arith.constant 0 : index
    %118 = vector.load %arg11[%c0_83, %c0_84, %c0_85] : memref<3x1x128xf32, #tpu.memory_space<vmem>>, vector<1x1x128xf32>
    %119 = vector.shape_cast %118 : vector<1x1x128xf32> to vector<1x128xf32>
    %120 = vector.broadcast %119 : vector<1x128xf32> to vector<16x128xf32>
    %121 = arith.addf %117, %120 : vector<16x128xf32>
    %cst_86 = arith.constant 0.000000e+00 : f32
    %122 = vector.broadcast %cst_86 : f32 to vector<16x128xf32>
    %123 = arith.cmpf oge, %121, %122 : vector<16x128xf32>
    %cst_87 = arith.constant 2.500000e-01 : f32
    %124 = vector.broadcast %cst_87 : f32 to vector<16x128xf32>
    %125 = arith.mulf %124, %121 : vector<16x128xf32>
    %126 = arith.select %123, %121, %125 : vector<16x128xi1>, vector<16x128xf32>
    %127 = vector.extract_strided_slice %88 {offsets = [0, 128], sizes = [16, 128], strides = [1, 1]} : vector<16x384xf32> to vector<16x128xf32>
    %128 = vector.extract_strided_slice %96 {offsets = [0, 128], sizes = [16, 128], strides = [1, 1]} : vector<16x384xf32> to vector<16x128xf32>
    %129 = vector.extract_strided_slice %104 {offsets = [0, 128], sizes = [16, 128], strides = [1, 1]} : vector<16x384xf32> to vector<16x128xf32>
    %130 = tpu.concatenate %127, %128, %129 in 1 : vector<16x128xf32>, vector<16x128xf32>, vector<16x128xf32> -> vector<16x384xf32>
    %cst_88 = arith.constant 0.000000e+00 : f32
    %131 = vector.broadcast %cst_88 : f32 to vector<16x384xf32>
    %132 = arith.cmpf oge, %130, %131 : vector<16x384xf32>
    %cst_89 = arith.constant 2.500000e-01 : f32
    %133 = vector.broadcast %cst_89 : f32 to vector<16x384xf32>
    %134 = arith.mulf %133, %130 : vector<16x384xf32>
    %135 = arith.select %132, %130, %134 : vector<16x384xi1>, vector<16x384xf32>
    %c1_90 = arith.constant 1 : index
    %c0_91 = arith.constant 0 : index
    %c0_92 = arith.constant 0 : index
    %136 = vector.load %arg10[%c1_90, %c0_91, %c0_92] : memref<3x384x128xbf16, #tpu.memory_space<vmem>>, vector<1x384x128xbf16>
    %137 = vector.shape_cast %136 : vector<1x384x128xbf16> to vector<384x128xbf16>
    %138 = arith.truncf %135 : vector<16x384xf32> to vector<16x384xbf16>
    %cst_93 = arith.constant dense<0.000000e+00> : vector<16x128xf32>
    %139 = tpu.matmul %138, %137, %cst_93 {dimension_numbers = #tpu.dot_dimension_numbers<[1], [0], [0], [1], [0, 0, 1, 1], [], []>} : vector<16x384xbf16>, vector<384x128xbf16>, vector<16x128xf32> -> vector<16x128xf32>
    %c1_94 = arith.constant 1 : index
    %c0_95 = arith.constant 0 : index
    %c0_96 = arith.constant 0 : index
    %140 = vector.load %arg11[%c1_94, %c0_95, %c0_96] : memref<3x1x128xf32, #tpu.memory_space<vmem>>, vector<1x1x128xf32>
    %141 = vector.shape_cast %140 : vector<1x1x128xf32> to vector<1x128xf32>
    %142 = vector.broadcast %141 : vector<1x128xf32> to vector<16x128xf32>
    %143 = arith.addf %139, %142 : vector<16x128xf32>
    %cst_97 = arith.constant 0.000000e+00 : f32
    %144 = vector.broadcast %cst_97 : f32 to vector<16x128xf32>
    %145 = arith.cmpf oge, %143, %144 : vector<16x128xf32>
    %cst_98 = arith.constant 2.500000e-01 : f32
    %146 = vector.broadcast %cst_98 : f32 to vector<16x128xf32>
    %147 = arith.mulf %146, %143 : vector<16x128xf32>
    %148 = arith.select %145, %143, %147 : vector<16x128xi1>, vector<16x128xf32>
    %149 = vector.extract_strided_slice %88 {offsets = [0, 256], sizes = [16, 128], strides = [1, 1]} : vector<16x384xf32> to vector<16x128xf32>
    %150 = vector.extract_strided_slice %96 {offsets = [0, 256], sizes = [16, 128], strides = [1, 1]} : vector<16x384xf32> to vector<16x128xf32>
    %151 = vector.extract_strided_slice %104 {offsets = [0, 256], sizes = [16, 128], strides = [1, 1]} : vector<16x384xf32> to vector<16x128xf32>
    %152 = tpu.concatenate %149, %150, %151 in 1 : vector<16x128xf32>, vector<16x128xf32>, vector<16x128xf32> -> vector<16x384xf32>
    %cst_99 = arith.constant 0.000000e+00 : f32
    %153 = vector.broadcast %cst_99 : f32 to vector<16x384xf32>
    %154 = arith.cmpf oge, %152, %153 : vector<16x384xf32>
    %cst_100 = arith.constant 2.500000e-01 : f32
    %155 = vector.broadcast %cst_100 : f32 to vector<16x384xf32>
    %156 = arith.mulf %155, %152 : vector<16x384xf32>
    %157 = arith.select %154, %152, %156 : vector<16x384xi1>, vector<16x384xf32>
    %c2_101 = arith.constant 2 : index
    %c0_102 = arith.constant 0 : index
    %c0_103 = arith.constant 0 : index
    %158 = vector.load %arg10[%c2_101, %c0_102, %c0_103] : memref<3x384x128xbf16, #tpu.memory_space<vmem>>, vector<1x384x128xbf16>
    %159 = vector.shape_cast %158 : vector<1x384x128xbf16> to vector<384x128xbf16>
    %160 = arith.truncf %157 : vector<16x384xf32> to vector<16x384xbf16>
    %cst_104 = arith.constant dense<0.000000e+00> : vector<16x128xf32>
    %161 = tpu.matmul %160, %159, %cst_104 {dimension_numbers = #tpu.dot_dimension_numbers<[1], [0], [0], [1], [0, 0, 1, 1], [], []>} : vector<16x384xbf16>, vector<384x128xbf16>, vector<16x128xf32> -> vector<16x128xf32>
    %c2_105 = arith.constant 2 : index
    %c0_106 = arith.constant 0 : index
    %c0_107 = arith.constant 0 : index
    %162 = vector.load %arg11[%c2_105, %c0_106, %c0_107] : memref<3x1x128xf32, #tpu.memory_space<vmem>>, vector<1x1x128xf32>
    %163 = vector.shape_cast %162 : vector<1x1x128xf32> to vector<1x128xf32>
    %164 = vector.broadcast %163 : vector<1x128xf32> to vector<16x128xf32>
    %165 = arith.addf %161, %164 : vector<16x128xf32>
    %cst_108 = arith.constant 0.000000e+00 : f32
    %166 = vector.broadcast %cst_108 : f32 to vector<16x128xf32>
    %167 = arith.cmpf oge, %165, %166 : vector<16x128xf32>
    %cst_109 = arith.constant 2.500000e-01 : f32
    %168 = vector.broadcast %cst_109 : f32 to vector<16x128xf32>
    %169 = arith.mulf %168, %165 : vector<16x128xf32>
    %170 = arith.select %167, %165, %169 : vector<16x128xi1>, vector<16x128xf32>
    %171 = tpu.concatenate %126, %148, %170 in 1 : vector<16x128xf32>, vector<16x128xf32>, vector<16x128xf32> -> vector<16x384xf32>
    %c0_110 = arith.constant 0 : index
    %c0_111 = arith.constant 0 : index
    %172 = vector.load %arg12[%c0_110, %c0_111] : memref<384x128xbf16, #tpu.memory_space<vmem>>, vector<384x128xbf16>
    %173 = arith.truncf %171 : vector<16x384xf32> to vector<16x384xbf16>
    %cst_112 = arith.constant dense<0.000000e+00> : vector<16x128xf32>
    %174 = tpu.matmul %173, %172, %cst_112 {dimension_numbers = #tpu.dot_dimension_numbers<[1], [0], [0], [1], [0, 0, 1, 1], [], []>} : vector<16x384xbf16>, vector<384x128xbf16>, vector<16x128xf32> -> vector<16x128xf32>
    %c0_113 = arith.constant 0 : index
    %c0_114 = arith.constant 0 : index
    %175 = vector.load %arg13[%c0_113, %c0_114] : memref<1x128xf32, #tpu.memory_space<vmem>>, vector<1x128xf32>
    %176 = vector.broadcast %175 : vector<1x128xf32> to vector<16x128xf32>
    %177 = arith.addf %174, %176 : vector<16x128xf32>
    %cst_115 = arith.constant 0.000000e+00 : f32
    %178 = vector.broadcast %cst_115 : f32 to vector<16x128xf32>
    %179 = arith.cmpf oge, %177, %178 : vector<16x128xf32>
    %cst_116 = arith.constant 2.500000e-01 : f32
    %180 = vector.broadcast %cst_116 : f32 to vector<16x128xf32>
    %181 = arith.mulf %180, %177 : vector<16x128xf32>
    %182 = arith.select %179, %177, %181 : vector<16x128xi1>, vector<16x128xf32>
    %c0_117 = arith.constant 0 : index
    %c0_118 = arith.constant 0 : index
    %183 = vector.load %arg14[%c0_117, %c0_118] : memref<128x128xbf16, #tpu.memory_space<vmem>>, vector<128x128xbf16>
    %184 = arith.truncf %182 : vector<16x128xf32> to vector<16x128xbf16>
    %cst_119 = arith.constant dense<0.000000e+00> : vector<16x128xf32>
    %185 = tpu.matmul %184, %183, %cst_119 {dimension_numbers = #tpu.dot_dimension_numbers<[1], [0], [0], [1], [0, 0, 1, 1], [], []>} : vector<16x128xbf16>, vector<128x128xbf16>, vector<16x128xf32> -> vector<16x128xf32>
    %c0_120 = arith.constant 0 : index
    %c0_121 = arith.constant 0 : index
    %186 = vector.load %arg15[%c0_120, %c0_121] : memref<1x128xf32, #tpu.memory_space<vmem>>, vector<1x128xf32>
    %187 = vector.broadcast %186 : vector<1x128xf32> to vector<16x128xf32>
    %188 = arith.addf %185, %187 : vector<16x128xf32>
    %c0_122 = arith.constant 0 : index
    %c0_123 = arith.constant 0 : index
    %189 = vector.load %arg16[%c0_122, %c0_123] : memref<16x128xf32, #tpu.memory_space<vmem>>, vector<16x128xf32>
    tpu.vector_store %arg16[%c0_122, %c0_123], %188 {strides = array<i32>} : memref<16x128xf32, #tpu.memory_space<vmem>>, vector<16x128xf32>,
    return
  }
  func.func @transform_0(%arg0: i32) -> (i32, i32) {
    %c0_i32 = arith.constant 0 : i32
    %c0_i32_0 = arith.constant 0 : i32
    return %arg0, %c0_i32 : i32, i32
  }
  func.func @transform_1(%arg0: i32) -> (i32, i32) {
    %c0_i32 = arith.constant 0 : i32
    %c0_i32_0 = arith.constant 0 : i32
    return %arg0, %c0_i32 : i32, i32
  }
  func.func @transform_2(%arg0: i32) -> (i32, i32) {
    %c0_i32 = arith.constant 0 : i32
    %c0_i32_0 = arith.constant 0 : i32
    return %arg0, %c0_i32 : i32, i32
  }
  func.func @transform_3(%arg0: i32) -> (i32, i32, i32) {
    %c0_i32 = arith.constant 0 : i32
    %c0_i32_0 = arith.constant 0 : i32
    %c0_i32_1 = arith.constant 0 : i32
    %c0_i32_2 = arith.constant 0 : i32
    return %c0_i32, %c0_i32_0, %c0_i32_1 : i32, i32, i32
  }
  func.func @transform_4(%arg0: i32) -> (i32, i32, i32) {
    %c0_i32 = arith.constant 0 : i32
    %c0_i32_0 = arith.constant 0 : i32
    %c0_i32_1 = arith.constant 0 : i32
    %c0_i32_2 = arith.constant 0 : i32
    return %c0_i32, %c0_i32_0, %c0_i32_1 : i32, i32, i32
  }
  func.func @transform_5(%arg0: i32) -> (i32, i32, i32) {
    %c0_i32 = arith.constant 0 : i32
    %c0_i32_0 = arith.constant 0 : i32
    %c0_i32_1 = arith.constant 0 : i32
    %c0_i32_2 = arith.constant 0 : i32
    return %c0_i32, %c0_i32_0, %c0_i32_1 : i32, i32, i32
  }
  func.func @transform_6(%arg0: i32) -> (i32, i32, i32) {
    %c0_i32 = arith.constant 0 : i32
    %c0_i32_0 = arith.constant 0 : i32
    %c0_i32_1 = arith.constant 0 : i32
    %c0_i32_2 = arith.constant 0 : i32
    return %c0_i32, %c0_i32_0, %c0_i32_1 : i32, i32, i32
  }
  func.func @transform_7(%arg0: i32) -> (i32, i32, i32) {
    %c0_i32 = arith.constant 0 : i32
    %c0_i32_0 = arith.constant 0 : i32
    %c0_i32_1 = arith.constant 0 : i32
    %c0_i32_2 = arith.constant 0 : i32
    return %c0_i32, %c0_i32_0, %c0_i32_1 : i32, i32, i32
  }
  func.func @transform_8(%arg0: i32) -> (i32, i32, i32) {
    %c0_i32 = arith.constant 0 : i32
    %c0_i32_0 = arith.constant 0 : i32
    %c0_i32_1 = arith.constant 0 : i32
    %c0_i32_2 = arith.constant 0 : i32
    return %c0_i32, %c0_i32_0, %c0_i32_1 : i32, i32, i32
  }
  func.func @transform_9(%arg0: i32) -> (i32, i32, i32) {
    %c0_i32 = arith.constant 0 : i32
    %c0_i32_0 = arith.constant 0 : i32
    %c0_i32_1 = arith.constant 0 : i32
    %c0_i32_2 = arith.constant 0 : i32
    return %c0_i32, %c0_i32_0, %c0_i32_1 : i32, i32, i32
  }
  func.func @transform_10(%arg0: i32) -> (i32, i32, i32) {
    %c0_i32 = arith.constant 0 : i32
    %c0_i32_0 = arith.constant 0 : i32
    %c0_i32_1 = arith.constant 0 : i32
    %c0_i32_2 = arith.constant 0 : i32
    return %c0_i32, %c0_i32_0, %c0_i32_1 : i32, i32, i32
  }
  func.func @transform_11(%arg0: i32) -> (i32, i32) {
    %c0_i32 = arith.constant 0 : i32
    %c0_i32_0 = arith.constant 0 : i32
    %c0_i32_1 = arith.constant 0 : i32
    return %c0_i32, %c0_i32_0 : i32, i32
  }
  func.func @transform_12(%arg0: i32) -> (i32, i32) {
    %c0_i32 = arith.constant 0 : i32
    %c0_i32_0 = arith.constant 0 : i32
    %c0_i32_1 = arith.constant 0 : i32
    return %c0_i32, %c0_i32_0 : i32, i32
  }
  func.func @transform_13(%arg0: i32) -> (i32, i32) {
    %c0_i32 = arith.constant 0 : i32
    %c0_i32_0 = arith.constant 0 : i32
    %c0_i32_1 = arith.constant 0 : i32
    return %c0_i32, %c0_i32_0 : i32, i32
  }
  func.func @transform_14(%arg0: i32) -> (i32, i32) {
    %c0_i32 = arith.constant 0 : i32
    %c0_i32_0 = arith.constant 0 : i32
    %c0_i32_1 = arith.constant 0 : i32
    return %c0_i32, %c0_i32_0 : i32, i32
  }
  func.func @transform_15(%arg0: i32) -> (i32, i32) {
    %c0_i32 = arith.constant 0 : i32
    %c0_i32_0 = arith.constant 0 : i32
    return %arg0, %c0_i32 : i32, i32
  }
}

</mosaic_0001>

<llo_original>
// kernel: _lambda_.1
$region0: #{_lambda_.1}
  #allocation0 [shape = 'u32[]', space=smem, size = 0x4, offset = 0x4, fixed_abs, tag = 'smem constant byte address 0x4 - core index']
  #allocation1 [shape = 'u32[72,128]{1,0:T(1,128)}', space=vmem, size = 0x9000, scoped, tag = 'internal scratch']
  %s0 = inlined_call_operand.vmem [shape: f32[16,128], index: 0, kind: input, shape index: {}]
  %s1 = inlined_call_operand.vmem [shape: f32[16,128], index: 1, kind: input, shape index: {}]
  %s2 = inlined_call_operand.vmem [shape: f32[16,128], index: 2, kind: input, shape index: {}]
  %s3 = inlined_call_operand.hbm [shape: bf16[3,128,256], index: 3, kind: input, shape index: {}]
  %s4 = inlined_call_operand.vmem [shape: f32[3,1,256], index: 4, kind: input, shape index: {}]
  %s5 = inlined_call_operand.hbm [shape: bf16[3,256,256], index: 5, kind: input, shape index: {}]
  %s6 = inlined_call_operand.vmem [shape: f32[3,1,256], index: 6, kind: input, shape index: {}]
  %s7 = inlined_call_operand.hbm [shape: bf16[3,256,384], index: 7, kind: input, shape index: {}]
  %s8 = inlined_call_operand.vmem [shape: f32[3,1,384], index: 8, kind: input, shape index: {}]
  %s9 = inlined_call_operand.hbm [shape: bf16[3,384,128], index: 9, kind: input, shape index: {}]
  %s10 = inlined_call_operand.vmem [shape: f32[3,1,128], index: 10, kind: input, shape index: {}]
  %s11 = inlined_call_operand.hbm [shape: bf16[384,128], index: 11, kind: input, shape index: {}]
  %s12 = inlined_call_operand.vmem [shape: f32[1,128], index: 12, kind: input, shape index: {}]
  %s13 = inlined_call_operand.hbm [shape: bf16[128,128], index: 13, kind: input, shape index: {}]
  %s14 = inlined_call_operand.vmem [shape: f32[1,128], index: 14, kind: input, shape index: {}]
  %s15 = inlined_call_operand.vmem [shape: f32[16,128], index: 15, kind: output, shape index: {}]
  %s16 = sld [smem:[#allocation0]]
  $region94: #{_lambda_.1} parent=0
    _
  %s18 = ssub.s32 1, %s16
  %s19 = scalar_select 0, %s18, %s16
  $region1: #{_lambda_.1} parent=0
    #allocation2 [shape = 'u8[196608]{0}', space=vmem, size = 0x30000, scoped, tag = 'input window, operand 3, single buffered']
    #allocation3 [shape = 's32[1]{0}', space=sflag, size = 0x4, scoped, tag = 'scoped memory for _lambda_.1']
    #allocation4 [shape = 'u8[393216]{0}', space=vmem, size = 0x60000, scoped, tag = 'input window, operand 5, single buffered']
    #allocation5 [shape = 's32[1]{0}', space=sflag, size = 0x4, scoped, tag = 'scoped memory for _lambda_.1']
    #allocation6 [shape = 'u8[589824]{0}', space=vmem, size = 0x90000, scoped, tag = 'input window, operand 7, single buffered']
    #allocation7 [shape = 'u8[294912]{0}', space=vmem, size = 0x48000, scoped, tag = 'input window, operand 9, single buffered']
    #allocation8 [shape = 's32[1]{0}', space=sflag, size = 0x4, scoped, tag = 'scoped memory for _lambda_.1']
    #allocation9 [shape = 'u8[98304]{0}', space=vmem, size = 0x18000, scoped, tag = 'input window, operand 11, single buffered']
    #allocation10 [shape = 'u8[32768]{0}', space=vmem, size = 0x8000, scoped, tag = 'input window, operand 13, single buffered']
    #allocation11 [shape = 's32[1]{0}', space=sflag, size = 0x4, scoped, tag = 'scoped memory for _lambda_.1']
    %20 = vsyncpa [#allocation3], 0
    %21 = vsyncpa [#allocation5], 0
    %22 = vsyncpa [#allocation8], 0
    %23 = vsyncpa [#allocation11], 0
    // Predicated region
    $region2: #{_lambda_.1} parent=1 // pred_check
      _
    $region3: #{_lambda_.1} parent=1 // pred_check_branch
      %25 = sbr.rel (0) target = $region5
    $region4: #{_lambda_.1} parent=1 // pred_region
      _
    $region5: #{_lambda_.1} parent=1 // pred_fallthru
      _
    // Predicated region
    $region6: #{_lambda_.1} parent=1 // pred_check
      _
    $region7: #{_lambda_.1} parent=1 // pred_check_branch
      %27 = sbr.rel (0) target = $region9
    $region8: #{_lambda_.1} parent=1 // pred_region
      _
    $region9: #{_lambda_.1} parent=1 // pred_fallthru
      _
    // Predicated region
    $region10: #{_lambda_.1} parent=1 // pred_check
      _
    $region11: #{_lambda_.1} parent=1 // pred_check_branch
      %29 = sbr.rel (0) target = $region13
    $region12: #{_lambda_.1} parent=1 // pred_region
      _
    $region13: #{_lambda_.1} parent=1 // pred_fallthru
      _
    // Predicated region
    $region14: #{_lambda_.1} parent=1 // pred_check
      _
    $region15: #{_lambda_.1} parent=1 // pred_check_branch
      %31 = sbr.rel (0) target = $region17
    $region16: #{_lambda_.1} parent=1 // pred_region
      %33 = vsyncadd [#allocation3], 0
      %s34 = sshll.u32 %s3, 4
      %s35 = int_to_ptr.hbm [resolvable:$true] %s34
      %s36 = sshll.u32 [#allocation2], 4
      %s37 = int_to_ptr.vmem [resolvable:$true] %s36
      %42 = dma.hbm_to_vmem [thread:$0]  %s35, 6144, %s37, [#allocation3], 128, 128, 8
    $region17: #{_lambda_.1} parent=1 // pred_fallthru
      _
    // Predicated region
    $region18: #{_lambda_.1} parent=1 // pred_check
      _
    $region19: #{_lambda_.1} parent=1 // pred_check_branch
      %44 = sbr.rel (0) target = $region21
    $region20: #{_lambda_.1} parent=1 // pred_region
      _
    $region21: #{_lambda_.1} parent=1 // pred_fallthru
      _
    // Predicated region
    $region22: #{_lambda_.1} parent=1 // pred_check
      _
    $region23: #{_lambda_.1} parent=1 // pred_check_branch
      %46 = sbr.rel (0) target = $region25
    $region24: #{_lambda_.1} parent=1 // pred_region
      %48 = vsyncadd [#allocation5], 0
      %s49 = sshll.u32 %s5, 4
      %s50 = int_to_ptr.hbm [resolvable:$true] %s49
      %s51 = sshll.u32 [#allocation4], 4
      %s52 = int_to_ptr.vmem [resolvable:$true] %s51
      %57 = dma.hbm_to_vmem [thread:$0]  %s50, 12288, %s52, [#allocation5], 128, 128, 8
    $region25: #{_lambda_.1} parent=1 // pred_fallthru
      _
    // Predicated region
    $region26: #{_lambda_.1} parent=1 // pred_check
      _
    $region27: #{_lambda_.1} parent=1 // pred_check_branch
      %59 = sbr.rel (0) target = $region29
    $region28: #{_lambda_.1} parent=1 // pred_region
      _
    $region29: #{_lambda_.1} parent=1 // pred_fallthru
      _
    // Predicated region
    $region30: #{_lambda_.1} parent=1 // pred_check
      _
    $region31: #{_lambda_.1} parent=1 // pred_check_branch
      %61 = sbr.rel (0) target = $region33
    $region32: #{_lambda_.1} parent=1 // pred_region
      %63 = vsyncadd [#allocation5], 0
      %s64 = sshll.u32 %s7, 4
      %s65 = int_to_ptr.hbm [resolvable:$true] %s64
      %s66 = sshll.u32 [#allocation6], 4
      %s67 = int_to_ptr.vmem [resolvable:$true] %s66
      %72 = dma.hbm_to_vmem [thread:$0]  %s65, 18432, %s67, [#allocation5], 192, 192, 12
    $region33: #{_lambda_.1} parent=1 // pred_fallthru
      _
    // Predicated region
    $region34: #{_lambda_.1} parent=1 // pred_check
      _
    $region35: #{_lambda_.1} parent=1 // pred_check_branch
      %74 = sbr.rel (0) target = $region37
    $region36: #{_lambda_.1} parent=1 // pred_region
      _
    $region37: #{_lambda_.1} parent=1 // pred_fallthru
      _
    // Predicated region
    $region38: #{_lambda_.1} parent=1 // pred_check
      _
    $region39: #{_lambda_.1} parent=1 // pred_check_branch
      %76 = sbr.rel (0) target = $region41
    $region40: #{_lambda_.1} parent=1 // pred_region
      %78 = vsyncadd [#allocation8], 0
      %s79 = sshll.u32 %s9, 4
      %s80 = int_to_ptr.hbm [resolvable:$true] %s79
      %s81 = sshll.u32 [#allocation7], 4
      %s82 = int_to_ptr.vmem [resolvable:$true] %s81
      %87 = dma.hbm_to_vmem [thread:$0]  %s80, 9216, %s82, [#allocation8], 64, 64, 4
    $region41: #{_lambda_.1} parent=1 // pred_fallthru
      _
    // Predicated region
    $region42: #{_lambda_.1} parent=1 // pred_check
      _
    $region43: #{_lambda_.1} parent=1 // pred_check_branch
      %89 = sbr.rel (0) target = $region45
    $region44: #{_lambda_.1} parent=1 // pred_region
      _
    $region45: #{_lambda_.1} parent=1 // pred_fallthru
      _
    // Predicated region
    $region46: #{_lambda_.1} parent=1 // pred_check
      _
    $region47: #{_lambda_.1} parent=1 // pred_check_branch
      %91 = sbr.rel (0) target = $region49
    $region48: #{_lambda_.1} parent=1 // pred_region
      %93 = vsyncadd [#allocation8], 0
      %s94 = sshll.u32 %s11, 4
      %s95 = int_to_ptr.hbm [resolvable:$true] %s94
      %s96 = sshll.u32 [#allocation9], 4
      %s97 = int_to_ptr.vmem [resolvable:$true] %s96
      %102 = dma.hbm_to_vmem [thread:$0]  %s95, 3072, %s97, [#allocation8], 64, 64, 4
    $region49: #{_lambda_.1} parent=1 // pred_fallthru
      _
    // Predicated region
    $region50: #{_lambda_.1} parent=1 // pred_check
      _
    $region51: #{_lambda_.1} parent=1 // pred_check_branch
      %104 = sbr.rel (0) target = $region53
    $region52: #{_lambda_.1} parent=1 // pred_region
      _
    $region53: #{_lambda_.1} parent=1 // pred_fallthru
      _
    // Predicated region
    $region54: #{_lambda_.1} parent=1 // pred_check
      _
    $region55: #{_lambda_.1} parent=1 // pred_check_branch
      %106 = sbr.rel (0) target = $region57
    $region56: #{_lambda_.1} parent=1 // pred_region
      %108 = vsyncadd [#allocation11], 0
      %s109 = sshll.u32 %s13, 4
      %s110 = int_to_ptr.hbm [resolvable:$true] %s109
      %s111 = sshll.u32 [#allocation10], 4
      %s112 = int_to_ptr.vmem [resolvable:$true] %s111
      %117 = dma.hbm_to_vmem [thread:$0]  %s110, 1024, %s112, [#allocation11], 64, 64, 4
    $region57: #{_lambda_.1} parent=1 // pred_fallthru
      _
    // Predicated region
    $region58: #{_lambda_.1} parent=1 // pred_check
      _
    $region59: #{_lambda_.1} parent=1 // pred_check_branch
      %119 = sbr.rel (0) target = $region61
    $region60: #{_lambda_.1} parent=1 // pred_region
      _
    $region61: #{_lambda_.1} parent=1 // pred_fallthru
      _
    // Predicated region
    $region62: #{_lambda_.1} parent=1 // pred_check
      _
    $region63: #{_lambda_.1} parent=1 // pred_check_branch
      %121 = sbr.rel (0) target = $region65
    $region64: #{_lambda_.1} parent=1 // pred_region
      %123 = dma.done [#allocation3], 6144
    $region65: #{_lambda_.1} parent=1 // pred_fallthru
      _
    // Predicated region
    $region66: #{_lambda_.1} parent=1 // pred_check
      _
    $region67: #{_lambda_.1} parent=1 // pred_check_branch
      %125 = sbr.rel (0) target = $region69
    $region68: #{_lambda_.1} parent=1 // pred_region
      %127 = dma.done [#allocation5], 12288
    $region69: #{_lambda_.1} parent=1 // pred_fallthru
      _
    // Predicated region
    $region70: #{_lambda_.1} parent=1 // pred_check
      _
    $region71: #{_lambda_.1} parent=1 // pred_check_branch
      %129 = sbr.rel (0) target = $region73
    $region72: #{_lambda_.1} parent=1 // pred_region
      %131 = dma.done [#allocation5], 18432
    $region73: #{_lambda_.1} parent=1 // pred_fallthru
      _
    // Predicated region
    $region74: #{_lambda_.1} parent=1 // pred_check
      _
    $region75: #{_lambda_.1} parent=1 // pred_check_branch
      %133 = sbr.rel (0) target = $region77
    $region76: #{_lambda_.1} parent=1 // pred_region
      %135 = dma.done [#allocation8], 9216
    $region77: #{_lambda_.1} parent=1 // pred_fallthru
      _
    // Predicated region
    $region78: #{_lambda_.1} parent=1 // pred_check
      _
    $region79: #{_lambda_.1} parent=1 // pred_check_branch
      %137 = sbr.rel (0) target = $region81
    $region80: #{_lambda_.1} parent=1 // pred_region
      %139 = dma.done [#allocation8], 3072
    $region81: #{_lambda_.1} parent=1 // pred_fallthru
      _
    // Predicated region
    $region82: #{_lambda_.1} parent=1 // pred_check
      _
    $region83: #{_lambda_.1} parent=1 // pred_check_branch
      %141 = sbr.rel (0) target = $region85
    $region84: #{_lambda_.1} parent=1 // pred_region
      %143 = dma.done [#allocation11], 1024
    $region85: #{_lambda_.1} parent=1 // pred_fallthru
      _
    %v144 = vld [vmem:[%s0] sm:$0xff]
    %v145 = vld [vmem:[%s0 + $0x8] sm:$0xff]
    %v146 = vld [vmem:[%s1] sm:$0xff]
    %v147 = vld [vmem:[%s1 + $0x8] sm:$0xff]
    %v148 = vld [vmem:[%s2] sm:$0xff]
    %v149 = vld [vmem:[%s2 + $0x8] sm:$0xff]
    %v150 = vld [vmem:[#allocation2] sm:$0xff]
    %v151 = vld [vmem:[#allocation2 + $0x8] sm:$0xff]
    %v152 = vld [vmem:[#allocation2 + $0x10] sm:$0xff]
    %v153 = vld [vmem:[#allocation2 + $0x18] sm:$0xff]
    %v154 = vld [vmem:[#allocation2 + $0x20] sm:$0xff]
    %v155 = vld [vmem:[#allocation2 + $0x28] sm:$0xff]
    %v156 = vld [vmem:[#allocation2 + $0x30] sm:$0xff]
    %v157 = vld [vmem:[#allocation2 + $0x38] sm:$0xff]
    %v158 = vld [vmem:[#allocation2 + $0x40] sm:$0xff]
    %v159 = vld [vmem:[#allocation2 + $0x48] sm:$0xff]
    %v160 = vld [vmem:[#allocation2 + $0x50] sm:$0xff]
    %v161 = vld [vmem:[#allocation2 + $0x58] sm:$0xff]
    %v162 = vld [vmem:[#allocation2 + $0x60] sm:$0xff]
    %v163 = vld [vmem:[#allocation2 + $0x68] sm:$0xff]
    %v164 = vld [vmem:[#allocation2 + $0x70] sm:$0xff]
    %v165 = vld [vmem:[#allocation2 + $0x78] sm:$0xff]
    %v166 = vpack.c.bf16 %v145, %v144
    %v167 = vld [vmem:[%s4] sm:$0x3]
    %v169 = vperm.slane %v167, 0
    %v170 = vperm.slane %v167, 1
    %v189 = vunpack.c.l.b16 %v150
    %v190 = vunpack.c.h.b16 %v150
    %v191 = vunpack.c.l.b16 %v151
    %v192 = vunpack.c.h.b16 %v151
    %v193 = vunpack.c.l.b16 %v152
    %v194 = vunpack.c.h.b16 %v152
    %v195 = vunpack.c.l.b16 %v153
    %v196 = vunpack.c.h.b16 %v153
    %v197 = vunpack.c.l.b16 %v154
    %v198 = vunpack.c.h.b16 %v154
    %v199 = vunpack.c.l.b16 %v155
    %v200 = vunpack.c.h.b16 %v155
    %v201 = vunpack.c.l.b16 %v156
    %v202 = vunpack.c.h.b16 %v156
    %v203 = vunpack.c.l.b16 %v157
    %v204 = vunpack.c.h.b16 %v157
    %v205 = vunpack.c.l.b16 %v158
    %v206 = vunpack.c.h.b16 %v158
    %v207 = vunpack.c.l.b16 %v159
    %v208 = vunpack.c.h.b16 %v159
    %v209 = vunpack.c.l.b16 %v160
    %v210 = vunpack.c.h.b16 %v160
    %v211 = vunpack.c.l.b16 %v161
    %v212 = vunpack.c.h.b16 %v161
    %v213 = vunpack.c.l.b16 %v162
    %v214 = vunpack.c.h.b16 %v162
    %v215 = vunpack.c.l.b16 %v163
    %v216 = vunpack.c.h.b16 %v163
    %v217 = vunpack.c.l.b16 %v164
    %v218 = vunpack.c.h.b16 %v164
    %v219 = vunpack.c.l.b16 %v165
    %v220 = vunpack.c.h.b16 %v165
    %v221 = vpack.c.b16 %v191, %v189
    %v222 = vpack.c.b16 %v192, %v190
    %v223 = vpack.c.b16 %v195, %v193
    %v224 = vpack.c.b16 %v196, %v194
    %v225 = vpack.c.b16 %v199, %v197
    %v226 = vpack.c.b16 %v200, %v198
    %v227 = vpack.c.b16 %v203, %v201
    %v228 = vpack.c.b16 %v204, %v202
    %v229 = vpack.c.b16 %v207, %v205
    %v230 = vpack.c.b16 %v208, %v206
    %v231 = vpack.c.b16 %v211, %v209
    %v232 = vpack.c.b16 %v212, %v210
    %v233 = vpack.c.b16 %v215, %v213
    %v234 = vpack.c.b16 %v216, %v214
    %v235 = vpack.c.b16 %v219, %v217
    %v236 = vpack.c.b16 %v220, %v218
    %253 = vmatpush.bf16.msra.mxu0 %v235
    %254 = vmatpush.bf16.msra.mxu0 %v233
    %255 = vmatpush.bf16.msra.mxu0 %v231
    %256 = vmatpush.bf16.msra.mxu0 %v229
    %257 = vmatpush.bf16.msra.mxu0 %v227
    %258 = vmatpush.bf16.msra.mxu0 %v225
    %259 = vmatpush.bf16.msra.mxu0 %v223
    %260 = vmatpush.bf16.msra.mxu0 %v221
    %261 = vmatmul.bf16.gmra.mxu0 %v166
    %v262 = vpop.f32.mrf.mxu0
    %v263 = vadd.f32 %v169, %v262
    %v264 = vpop.f32.mrf.mxu0
    %v265 = vadd.f32 %v169, %v264
    %266 = vdwg.mxu0
    %267 = vmatpush.bf16.msra.mxu0 %v236
    %268 = vmatpush.bf16.msra.mxu0 %v234
    %269 = vmatpush.bf16.msra.mxu0 %v232
    %270 = vmatpush.bf16.msra.mxu0 %v230
    %271 = vmatpush.bf16.msra.mxu0 %v228
    %272 = vmatpush.bf16.msra.mxu0 %v226
    %273 = vmatpush.bf16.msra.mxu0 %v224
    %274 = vmatpush.bf16.msra.mxu0 %v222
    %275 = vmatmul.bf16.gmra.mxu0 %v166
    %v276 = vpop.f32.mrf.mxu0
    %v277 = vadd.f32 %v170, %v276
    %v278 = vpop.f32.mrf.mxu0
    %v279 = vadd.f32 %v170, %v278
    %280 = vdwg.mxu0
    %vm281 = vcmp.ge.f32.partialorder %v263, 0.0
    %vm282 = vcmp.ge.f32.partialorder %v277, 0.0
    %vm283 = vcmp.ge.f32.partialorder %v265, 0.0
    %vm284 = vcmp.ge.f32.partialorder %v279, 0.0
    %v285 = vmul.f32 %v263, 0.25
    %v286 = vmul.f32 %v277, 0.25
    %v287 = vmul.f32 %v265, 0.25
    %v288 = vmul.f32 %v279, 0.25
    %v289 = vsel %vm281, %v263, %v285
    %v290 = vsel %vm282, %v277, %v286
    %v291 = vsel %vm283, %v265, %v287
    %v292 = vsel %vm284, %v279, %v288
    %v293 = vld [vmem:[#allocation4] sm:$0xff]
    %v294 = vld [vmem:[#allocation4 + $0x8] sm:$0xff]
    %v295 = vld [vmem:[#allocation4 + $0x10] sm:$0xff]
    %v296 = vld [vmem:[#allocation4 + $0x18] sm:$0xff]
    %v297 = vld [vmem:[#allocation4 + $0x20] sm:$0xff]
    %v298 = vld [vmem:[#allocation4 + $0x28] sm:$0xff]
    %v299 = vld [vmem:[#allocation4 + $0x30] sm:$0xff]
    %v300 = vld [vmem:[#allocation4 + $0x38] sm:$0xff]
    %v301 = vld [vmem:[#allocation4 + $0x40] sm:$0xff]
    %v302 = vld [vmem:[#allocation4 + $0x48] sm:$0xff]
    %v303 = vld [vmem:[#allocation4 + $0x50] sm:$0xff]
    %v304 = vld [vmem:[#allocation4 + $0x58] sm:$0xff]
    %v305 = vld [vmem:[#allocation4 + $0x60] sm:$0xff]
    %v306 = vld [vmem:[#allocation4 + $0x68] sm:$0xff]
    %v307 = vld [vmem:[#allocation4 + $0x70] sm:$0xff]
    %v308 = vld [vmem:[#allocation4 + $0x78] sm:$0xff]
    %v309 = vld [vmem:[#allocation4 + $0x80] sm:$0xff]
    %v310 = vld [vmem:[#allocation4 + $0x88] sm:$0xff]
    %v311 = vld [vmem:[#allocation4 + $0x90] sm:$0xff]
    %v312 = vld [vmem:[#allocation4 + $0x98] sm:$0xff]
    %v313 = vld [vmem:[#allocation4 + $0xa0] sm:$0xff]
    %v314 = vld [vmem:[#allocation4 + $0xa8] sm:$0xff]
    %v315 = vld [vmem:[#allocation4 + $0xb0] sm:$0xff]
    %v316 = vld [vmem:[#allocation4 + $0xb8] sm:$0xff]
    %v317 = vld [vmem:[#allocation4 + $0xc0] sm:$0xff]
    %v318 = vld [vmem:[#allocation4 + $0xc8] sm:$0xff]
    %v319 = vld [vmem:[#allocation4 + $0xd0] sm:$0xff]
    %v320 = vld [vmem:[#allocation4 + $0xd8] sm:$0xff]
    %v321 = vld [vmem:[#allocation4 + $0xe0] sm:$0xff]
    %v322 = vld [vmem:[#allocation4 + $0xe8] sm:$0xff]
    %v323 = vld [vmem:[#allocation4 + $0xf0] sm:$0xff]
    %v324 = vld [vmem:[#allocation4 + $0xf8] sm:$0xff]
    %v325 = vpack.c.bf16 %v291, %v289
    %v326 = vpack.c.bf16 %v292, %v290
    %v327 = vld [vmem:[%s6] sm:$0x3]
    %v329 = vperm.slane %v327, 0
    %v330 = vperm.slane %v327, 1
    %v365 = vunpack.c.l.b16 %v293
    %v366 = vunpack.c.h.b16 %v293
    %v367 = vunpack.c.l.b16 %v294
    %v368 = vunpack.c.h.b16 %v294
    %v369 = vunpack.c.l.b16 %v295
    %v370 = vunpack.c.h.b16 %v295
    %v371 = vunpack.c.l.b16 %v296
    %v372 = vunpack.c.h.b16 %v296
    %v373 = vunpack.c.l.b16 %v297
    %v374 = vunpack.c.h.b16 %v297
    %v375 = vunpack.c.l.b16 %v298
    %v376 = vunpack.c.h.b16 %v298
    %v377 = vunpack.c.l.b16 %v299
    %v378 = vunpack.c.h.b16 %v299
    %v379 = vunpack.c.l.b16 %v300
    %v380 = vunpack.c.h.b16 %v300
    %v381 = vunpack.c.l.b16 %v301
    %v382 = vunpack.c.h.b16 %v301
    %v383 = vunpack.c.l.b16 %v302
    %v384 = vunpack.c.h.b16 %v302
    %v385 = vunpack.c.l.b16 %v303
    %v386 = vunpack.c.h.b16 %v303
    %v387 = vunpack.c.l.b16 %v304
    %v388 = vunpack.c.h.b16 %v304
    %v389 = vunpack.c.l.b16 %v305
    %v390 = vunpack.c.h.b16 %v305
    %v391 = vunpack.c.l.b16 %v306
    %v392 = vunpack.c.h.b16 %v306
    %v393 = vunpack.c.l.b16 %v307
    %v394 = vunpack.c.h.b16 %v307
    %v395 = vunpack.c.l.b16 %v308
    %v396 = vunpack.c.h.b16 %v308
    %v397 = vunpack.c.l.b16 %v309
    %v398 = vunpack.c.h.b16 %v309
    %v399 = vunpack.c.l.b16 %v310
    %v400 = vunpack.c.h.b16 %v310
    %v401 = vunpack.c.l.b16 %v311
    %v402 = vunpack.c.h.b16 %v311
    %v403 = vunpack.c.l.b16 %v312
    %v404 = vunpack.c.h.b16 %v312
    %v405 = vunpack.c.l.b16 %v313
    %v406 = vunpack.c.h.b16 %v313
    %v407 = vunpack.c.l.b16 %v314
    %v408 = vunpack.c.h.b16 %v314
    %v409 = vunpack.c.l.b16 %v315
    %v410 = vunpack.c.h.b16 %v315
    %v411 = vunpack.c.l.b16 %v316
    %v412 = vunpack.c.h.b16 %v316
    %v413 = vunpack.c.l.b16 %v317
    %v414 = vunpack.c.h.b16 %v317
    %v415 = vunpack.c.l.b16 %v318
    %v416 = vunpack.c.h.b16 %v318
    %v417 = vunpack.c.l.b16 %v319
    %v418 = vunpack.c.h.b16 %v319
    %v419 = vunpack.c.l.b16 %v320
    %v420 = vunpack.c.h.b16 %v320
    %v421 = vunpack.c.l.b16 %v321
    %v422 = vunpack.c.h.b16 %v321
    %v423 = vunpack.c.l.b16 %v322
    %v424 = vunpack.c.h.b16 %v322
    %v425 = vunpack.c.l.b16 %v323
    %v426 = vunpack.c.h.b16 %v323
    %v427 = vunpack.c.l.b16 %v324
    %v428 = vunpack.c.h.b16 %v324
    %v429 = vpack.c.b16 %v367, %v365
    %v430 = vpack.c.b16 %v368, %v366
    %v431 = vpack.c.b16 %v371, %v369
    %v432 = vpack.c.b16 %v372, %v370
    %v433 = vpack.c.b16 %v375, %v373
    %v434 = vpack.c.b16 %v376, %v374
    %v435 = vpack.c.b16 %v379, %v377
    %v436 = vpack.c.b16 %v380, %v378
    %v437 = vpack.c.b16 %v383, %v381
    %v438 = vpack.c.b16 %v384, %v382
    %v439 = vpack.c.b16 %v387, %v385
    %v440 = vpack.c.b16 %v388, %v386
    %v441 = vpack.c.b16 %v391, %v389
    %v442 = vpack.c.b16 %v392, %v390
    %v443 = vpack.c.b16 %v395, %v393
    %v444 = vpack.c.b16 %v396, %v394
    %v445 = vpack.c.b16 %v399, %v397
    %v446 = vpack.c.b16 %v400, %v398
    %v447 = vpack.c.b16 %v403, %v401
    %v448 = vpack.c.b16 %v404, %v402
    %v449 = vpack.c.b16 %v407, %v405
    %v450 = vpack.c.b16 %v408, %v406
    %v451 = vpack.c.b16 %v411, %v409
    %v452 = vpack.c.b16 %v412, %v410
    %v453 = vpack.c.b16 %v415, %v413
    %v454 = vpack.c.b16 %v416, %v414
    %v455 = vpack.c.b16 %v419, %v417
    %v456 = vpack.c.b16 %v420, %v418
    %v457 = vpack.c.b16 %v423, %v421
    %v458 = vpack.c.b16 %v424, %v422
    %v459 = vpack.c.b16 %v427, %v425
    %v460 = vpack.c.b16 %v428, %v426
    %493 = vmatpush.bf16.msra.mxu0 %v443
    %494 = vmatpush.bf16.msra.mxu0 %v441
    %495 = vmatpush.bf16.msra.mxu0 %v439
    %496 = vmatpush.bf16.msra.mxu0 %v437
    %497 = vmatpush.bf16.msra.mxu0 %v435
    %498 = vmatpush.bf16.msra.mxu0 %v433
    %499 = vmatpush.bf16.msra.mxu0 %v431
    %500 = vmatpush.bf16.msra.mxu0 %v429
    %501 = vmatmul.bf16.gmra.mxu0 %v325
    %v502 = vpop.f32.mrf.mxu0
    %v503 = vadd.f32 %v329, %v502
    %v504 = vpop.f32.mrf.mxu0
    %v505 = vadd.f32 %v329, %v504
    %506 = vdwg.mxu0
    %507 = vmatpush.bf16.msra.mxu0 %v459
    %508 = vmatpush.bf16.msra.mxu0 %v457
    %509 = vmatpush.bf16.msra.mxu0 %v455
    %510 = vmatpush.bf16.msra.mxu0 %v453
    %511 = vmatpush.bf16.msra.mxu0 %v451
    %512 = vmatpush.bf16.msra.mxu0 %v449
    %513 = vmatpush.bf16.msra.mxu0 %v447
    %514 = vmatpush.bf16.msra.mxu0 %v445
    %515 = vmatmul.bf16.gmra.mxu0 %v326
    %v516 = vpop.f32.mrf.mxu0
    %v517 = vadd.f32 %v503, %v516
    %v518 = vpop.f32.mrf.mxu0
    %v519 = vadd.f32 %v505, %v518
    %520 = vdwg.mxu0
    %521 = vmatpush.bf16.msra.mxu0 %v444
    %522 = vmatpush.bf16.msra.mxu0 %v442
    %523 = vmatpush.bf16.msra.mxu0 %v440
    %524 = vmatpush.bf16.msra.mxu0 %v438
    %525 = vmatpush.bf16.msra.mxu0 %v436
    %526 = vmatpush.bf16.msra.mxu0 %v434
    %527 = vmatpush.bf16.msra.mxu0 %v432
    %528 = vmatpush.bf16.msra.mxu0 %v430
    %529 = vmatmul.bf16.gmra.mxu0 %v325
    %v530 = vpop.f32.mrf.mxu0
    %v531 = vadd.f32 %v330, %v530
    %v532 = vpop.f32.mrf.mxu0
    %v533 = vadd.f32 %v330, %v532
    %534 = vdwg.mxu0
    %535 = vmatpush.bf16.msra.mxu0 %v460
    %536 = vmatpush.bf16.msra.mxu0 %v458
    %537 = vmatpush.bf16.msra.mxu0 %v456
    %538 = vmatpush.bf16.msra.mxu0 %v454
    %539 = vmatpush.bf16.msra.mxu0 %v452
    %540 = vmatpush.bf16.msra.mxu0 %v450
    %541 = vmatpush.bf16.msra.mxu0 %v448
    %542 = vmatpush.bf16.msra.mxu0 %v446
    %543 = vmatmul.bf16.gmra.mxu0 %v326
    %v544 = vpop.f32.mrf.mxu0
    %v545 = vadd.f32 %v531, %v544
    %v546 = vpop.f32.mrf.mxu0
    %v547 = vadd.f32 %v533, %v546
    %548 = vdwg.mxu0
    %vm549 = vcmp.ge.f32.partialorder %v517, 0.0
    %vm550 = vcmp.ge.f32.partialorder %v545, 0.0
    %vm551 = vcmp.ge.f32.partialorder %v519, 0.0
    %vm552 = vcmp.ge.f32.partialorder %v547, 0.0
    %v553 = vmul.f32 %v517, 0.25
    %v554 = vmul.f32 %v545, 0.25
    %v555 = vmul.f32 %v519, 0.25
    %v556 = vmul.f32 %v547, 0.25
    %v557 = vsel %vm549, %v517, %v553
    %v558 = vsel %vm550, %v545, %v554
    %v559 = vsel %vm551, %v519, %v555
    %v560 = vsel %vm552, %v547, %v556
    %s561 = scalar_lea.vmem [#allocation2], 128
    %v562 = vld [vmem:[%s561] sm:$0xff]
    %v563 = vld [vmem:[%s561 + $0x8] sm:$0xff]
    %v564 = vld [vmem:[%s561 + $0x10] sm:$0xff]
    %v565 = vld [vmem:[%s561 + $0x18] sm:$0xff]
    %v566 = vld [vmem:[%s561 + $0x20] sm:$0xff]
    %v567 = vld [vmem:[%s561 + $0x28] sm:$0xff]
    %v568 = vld [vmem:[%s561 + $0x30] sm:$0xff]
    %v569 = vld [vmem:[%s561 + $0x38] sm:$0xff]
    %v570 = vld [vmem:[%s561 + $0x40] sm:$0xff]
    %v571 = vld [vmem:[%s561 + $0x48] sm:$0xff]
    %v572 = vld [vmem:[%s561 + $0x50] sm:$0xff]
    %v573 = vld [vmem:[%s561 + $0x58] sm:$0xff]
    %v574 = vld [vmem:[%s561 + $0x60] sm:$0xff]
    %v575 = vld [vmem:[%s561 + $0x68] sm:$0xff]
    %v576 = vld [vmem:[%s561 + $0x70] sm:$0xff]
    %v577 = vld [vmem:[%s561 + $0x78] sm:$0xff]
    %v578 = vpack.c.bf16 %v147, %v146
    %s579 = scalar_lea.vmem %s4, 2
    %v580 = vld [vmem:[%s579] sm:$0x3]
    %v582 = vperm.slane %v580, 0
    %v583 = vperm.slane %v580, 1
    %v602 = vunpack.c.l.b16 %v562
    %v603 = vunpack.c.h.b16 %v562
    %v604 = vunpack.c.l.b16 %v563
    %v605 = vunpack.c.h.b16 %v563
    %v606 = vunpack.c.l.b16 %v564
    %v607 = vunpack.c.h.b16 %v564
    %v608 = vunpack.c.l.b16 %v565
    %v609 = vunpack.c.h.b16 %v565
    %v610 = vunpack.c.l.b16 %v566
    %v611 = vunpack.c.h.b16 %v566
    %v612 = vunpack.c.l.b16 %v567
    %v613 = vunpack.c.h.b16 %v567
    %v614 = vunpack.c.l.b16 %v568
    %v615 = vunpack.c.h.b16 %v568
    %v616 = vunpack.c.l.b16 %v569
    %v617 = vunpack.c.h.b16 %v569
    %v618 = vunpack.c.l.b16 %v570
    %v619 = vunpack.c.h.b16 %v570
    %v620 = vunpack.c.l.b16 %v571
    %v621 = vunpack.c.h.b16 %v571
    %v622 = vunpack.c.l.b16 %v572
    %v623 = vunpack.c.h.b16 %v572
    %v624 = vunpack.c.l.b16 %v573
    %v625 = vunpack.c.h.b16 %v573
    %v626 = vunpack.c.l.b16 %v574
    %v627 = vunpack.c.h.b16 %v574
    %v628 = vunpack.c.l.b16 %v575
    %v629 = vunpack.c.h.b16 %v575
    %v630 = vunpack.c.l.b16 %v576
    %v631 = vunpack.c.h.b16 %v576
    %v632 = vunpack.c.l.b16 %v577
    %v633 = vunpack.c.h.b16 %v577
    %v634 = vpack.c.b16 %v604, %v602
    %v635 = vpack.c.b16 %v605, %v603
    %v636 = vpack.c.b16 %v608, %v606
    %v637 = vpack.c.b16 %v609, %v607
    %v638 = vpack.c.b16 %v612, %v610
    %v639 = vpack.c.b16 %v613, %v611
    %v640 = vpack.c.b16 %v616, %v614
    %v641 = vpack.c.b16 %v617, %v615
    %v642 = vpack.c.b16 %v620, %v618
    %v643 = vpack.c.b16 %v621, %v619
    %v644 = vpack.c.b16 %v624, %v622
    %v645 = vpack.c.b16 %v625, %v623
    %v646 = vpack.c.b16 %v628, %v626
    %v647 = vpack.c.b16 %v629, %v627
    %v648 = vpack.c.b16 %v632, %v630
    %v649 = vpack.c.b16 %v633, %v631
    %666 = vmatpush.bf16.msra.mxu0 %v648
    %667 = vmatpush.bf16.msra.mxu0 %v646
    %668 = vmatpush.bf16.msra.mxu0 %v644
    %669 = vmatpush.bf16.msra.mxu0 %v642
    %670 = vmatpush.bf16.msra.mxu0 %v640
    %671 = vmatpush.bf16.msra.mxu0 %v638
    %672 = vmatpush.bf16.msra.mxu0 %v636
    %673 = vmatpush.bf16.msra.mxu0 %v634
    %674 = vmatmul.bf16.gmra.mxu0 %v578
    %v675 = vpop.f32.mrf.mxu0
    %v676 = vadd.f32 %v582, %v675
    %v677 = vpop.f32.mrf.mxu0
    %v678 = vadd.f32 %v582, %v677
    %679 = vdwg.mxu0
    %680 = vmatpush.bf16.msra.mxu0 %v649
    %681 = vmatpush.bf16.msra.mxu0 %v647
    %682 = vmatpush.bf16.msra.mxu0 %v645
    %683 = vmatpush.bf16.msra.mxu0 %v643
    %684 = vmatpush.bf16.msra.mxu0 %v641
    %685 = vmatpush.bf16.msra.mxu0 %v639
    %686 = vmatpush.bf16.msra.mxu0 %v637
    %687 = vmatpush.bf16.msra.mxu0 %v635
    %688 = vmatmul.bf16.gmra.mxu0 %v578
    %v689 = vpop.f32.mrf.mxu0
    %v690 = vadd.f32 %v583, %v689
    %v691 = vpop.f32.mrf.mxu0
    %v692 = vadd.f32 %v583, %v691
    %693 = vdwg.mxu0
    %vm694 = vcmp.ge.f32.partialorder %v676, 0.0
    %vm695 = vcmp.ge.f32.partialorder %v690, 0.0
    %vm696 = vcmp.ge.f32.partialorder %v678, 0.0
    %vm697 = vcmp.ge.f32.partialorder %v692, 0.0
    %v698 = vmul.f32 %v676, 0.25
    %v699 = vmul.f32 %v690, 0.25
    %v700 = vmul.f32 %v678, 0.25
    %v701 = vmul.f32 %v692, 0.25
    %v702 = vsel %vm694, %v676, %v698
    %v703 = vsel %vm695, %v690, %v699
    %v704 = vsel %vm696, %v678, %v700
    %v705 = vsel %vm697, %v692, %v701
    %s706 = scalar_lea.vmem [#allocation4], 256
    %v707 = vld [vmem:[%s706] sm:$0xff]
    %v708 = vld [vmem:[%s706 + $0x8] sm:$0xff]
    %v709 = vld [vmem:[%s706 + $0x10] sm:$0xff]
    %v710 = vld [vmem:[%s706 + $0x18] sm:$0xff]
    %v711 = vld [vmem:[%s706 + $0x20] sm:$0xff]
    %v712 = vld [vmem:[%s706 + $0x28] sm:$0xff]
    %v713 = vld [vmem:[%s706 + $0x30] sm:$0xff]
    %v714 = vld [vmem:[%s706 + $0x38] sm:$0xff]
    %v715 = vld [vmem:[%s706 + $0x40] sm:$0xff]
    %v716 = vld [vmem:[%s706 + $0x48] sm:$0xff]
    %v717 = vld [vmem:[%s706 + $0x50] sm:$0xff]
    %v718 = vld [vmem:[%s706 + $0x58] sm:$0xff]
    %v719 = vld [vmem:[%s706 + $0x60] sm:$0xff]
    %v720 = vld [vmem:[%s706 + $0x68] sm:$0xff]
    %v721 = vld [vmem:[%s706 + $0x70] sm:$0xff]
    %v722 = vld [vmem:[%s706 + $0x78] sm:$0xff]
    %v723 = vld [vmem:[%s706 + $0x80] sm:$0xff]
    %v724 = vld [vmem:[%s706 + $0x88] sm:$0xff]
    %v725 = vld [vmem:[%s706 + $0x90] sm:$0xff]
    %v726 = vld [vmem:[%s706 + $0x98] sm:$0xff]
    %v727 = vld [vmem:[%s706 + $0xa0] sm:$0xff]
    %v728 = vld [vmem:[%s706 + $0xa8] sm:$0xff]
    %v729 = vld [vmem:[%s706 + $0xb0] sm:$0xff]
    %v730 = vld [vmem:[%s706 + $0xb8] sm:$0xff]
    %v731 = vld [vmem:[%s706 + $0xc0] sm:$0xff]
    %v732 = vld [vmem:[%s706 + $0xc8] sm:$0xff]
    %v733 = vld [vmem:[%s706 + $0xd0] sm:$0xff]
    %v734 = vld [vmem:[%s706 + $0xd8] sm:$0xff]
    %v735 = vld [vmem:[%s706 + $0xe0] sm:$0xff]
    %v736 = vld [vmem:[%s706 + $0xe8] sm:$0xff]
    %v737 = vld [vmem:[%s706 + $0xf0] sm:$0xff]
    %v738 = vld [vmem:[%s706 + $0xf8] sm:$0xff]
    %v739 = vpack.c.bf16 %v704, %v702
    %v740 = vpack.c.bf16 %v705, %v703
    %s741 = scalar_lea.vmem %s6, 2
    %v742 = vld [vmem:[%s741] sm:$0x3]
    %v744 = vperm.slane %v742, 0
    %v745 = vperm.slane %v742, 1
    %v780 = vunpack.c.l.b16 %v707
    %v781 = vunpack.c.h.b16 %v707
    %v782 = vunpack.c.l.b16 %v708
    %v783 = vunpack.c.h.b16 %v708
    %v784 = vunpack.c.l.b16 %v709
    %v785 = vunpack.c.h.b16 %v709
    %v786 = vunpack.c.l.b16 %v710
    %v787 = vunpack.c.h.b16 %v710
    %v788 = vunpack.c.l.b16 %v711
    %v789 = vunpack.c.h.b16 %v711
    %v790 = vunpack.c.l.b16 %v712
    %v791 = vunpack.c.h.b16 %v712
    %v792 = vunpack.c.l.b16 %v713
    %v793 = vunpack.c.h.b16 %v713
    %v794 = vunpack.c.l.b16 %v714
    %v795 = vunpack.c.h.b16 %v714
    %v796 = vunpack.c.l.b16 %v715
    %v797 = vunpack.c.h.b16 %v715
    %v798 = vunpack.c.l.b16 %v716
    %v799 = vunpack.c.h.b16 %v716
    %v800 = vunpack.c.l.b16 %v717
    %v801 = vunpack.c.h.b16 %v717
    %v802 = vunpack.c.l.b16 %v718
    %v803 = vunpack.c.h.b16 %v718
    %v804 = vunpack.c.l.b16 %v719
    %v805 = vunpack.c.h.b16 %v719
    %v806 = vunpack.c.l.b16 %v720
    %v807 = vunpack.c.h.b16 %v720
    %v808 = vunpack.c.l.b16 %v721
    %v809 = vunpack.c.h.b16 %v721
    %v810 = vunpack.c.l.b16 %v722
    %v811 = vunpack.c.h.b16 %v722
    %v812 = vunpack.c.l.b16 %v723
    %v813 = vunpack.c.h.b16 %v723
    %v814 = vunpack.c.l.b16 %v724
    %v815 = vunpack.c.h.b16 %v724
    %v816 = vunpack.c.l.b16 %v725
    %v817 = vunpack.c.h.b16 %v725
    %v818 = vunpack.c.l.b16 %v726
    %v819 = vunpack.c.h.b16 %v726
    %v820 = vunpack.c.l.b16 %v727
    %v821 = vunpack.c.h.b16 %v727
    %v822 = vunpack.c.l.b16 %v728
    %v823 = vunpack.c.h.b16 %v728
    %v824 = vunpack.c.l.b16 %v729
    %v825 = vunpack.c.h.b16 %v729
    %v826 = vunpack.c.l.b16 %v730
    %v827 = vunpack.c.h.b16 %v730
    %v828 = vunpack.c.l.b16 %v731
    %v829 = vunpack.c.h.b16 %v731
    %v830 = vunpack.c.l.b16 %v732
    %v831 = vunpack.c.h.b16 %v732
    %v832 = vunpack.c.l.b16 %v733
    %v833 = vunpack.c.h.b16 %v733
    %v834 = vunpack.c.l.b16 %v734
    %v835 = vunpack.c.h.b16 %v734
    %v836 = vunpack.c.l.b16 %v735
    %v837 = vunpack.c.h.b16 %v735
    %v838 = vunpack.c.l.b16 %v736
    %v839 = vunpack.c.h.b16 %v736
    %v840 = vunpack.c.l.b16 %v737
    %v841 = vunpack.c.h.b16 %v737
    %v842 = vunpack.c.l.b16 %v738
    %v843 = vunpack.c.h.b16 %v738
    %v844 = vpack.c.b16 %v782, %v780
    %v845 = vpack.c.b16 %v783, %v781
    %v846 = vpack.c.b16 %v786, %v784
    %v847 = vpack.c.b16 %v787, %v785
    %v848 = vpack.c.b16 %v790, %v788
    %v849 = vpack.c.b16 %v791, %v789
    %v850 = vpack.c.b16 %v794, %v792
    %v851 = vpack.c.b16 %v795, %v793
    %v852 = vpack.c.b16 %v798, %v796
    %v853 = vpack.c.b16 %v799, %v797
    %v854 = vpack.c.b16 %v802, %v800
    %v855 = vpack.c.b16 %v803, %v801
    %v856 = vpack.c.b16 %v806, %v804
    %v857 = vpack.c.b16 %v807, %v805
    %v858 = vpack.c.b16 %v810, %v808
    %v859 = vpack.c.b16 %v811, %v809
    %v860 = vpack.c.b16 %v814, %v812
    %v861 = vpack.c.b16 %v815, %v813
    %v862 = vpack.c.b16 %v818, %v816
    %v863 = vpack.c.b16 %v819, %v817
    %v864 = vpack.c.b16 %v822, %v820
    %v865 = vpack.c.b16 %v823, %v821
    %v866 = vpack.c.b16 %v826, %v824
    %v867 = vpack.c.b16 %v827, %v825
    %v868 = vpack.c.b16 %v830, %v828
    %v869 = vpack.c.b16 %v831, %v829
    %v870 = vpack.c.b16 %v834, %v832
    %v871 = vpack.c.b16 %v835, %v833
    %v872 = vpack.c.b16 %v838, %v836
    %v873 = vpack.c.b16 %v839, %v837
    %v874 = vpack.c.b16 %v842, %v840
    %v875 = vpack.c.b16 %v843, %v841
    %908 = vmatpush.bf16.msra.mxu0 %v858
    %909 = vmatpush.bf16.msra.mxu0 %v856
    %910 = vmatpush.bf16.msra.mxu0 %v854
    %911 = vmatpush.bf16.msra.mxu0 %v852
    %912 = vmatpush.bf16.msra.mxu0 %v850
    %913 = vmatpush.bf16.msra.mxu0 %v848
    %914 = vmatpush.bf16.msra.mxu0 %v846
    %915 = vmatpush.bf16.msra.mxu0 %v844
    %916 = vmatmul.bf16.gmra.mxu0 %v739
    %v917 = vpop.f32.mrf.mxu0
    %v918 = vadd.f32 %v744, %v917
    %v919 = vpop.f32.mrf.mxu0
    %v920 = vadd.f32 %v744, %v919
    %921 = vdwg.mxu0
    %922 = vmatpush.bf16.msra.mxu0 %v874
    %923 = vmatpush.bf16.msra.mxu0 %v872
    %924 = vmatpush.bf16.msra.mxu0 %v870
    %925 = vmatpush.bf16.msra.mxu0 %v868
    %926 = vmatpush.bf16.msra.mxu0 %v866
    %927 = vmatpush.bf16.msra.mxu0 %v864
    %928 = vmatpush.bf16.msra.mxu0 %v862
    %929 = vmatpush.bf16.msra.mxu0 %v860
    %930 = vmatmul.bf16.gmra.mxu0 %v740
    %v931 = vpop.f32.mrf.mxu0
    %v932 = vadd.f32 %v918, %v931
    %v933 = vpop.f32.mrf.mxu0
    %v934 = vadd.f32 %v920, %v933
    %935 = vdwg.mxu0
    %936 = vmatpush.bf16.msra.mxu0 %v859
    %937 = vmatpush.bf16.msra.mxu0 %v857
    %938 = vmatpush.bf16.msra.mxu0 %v855
    %939 = vmatpush.bf16.msra.mxu0 %v853
    %940 = vmatpush.bf16.msra.mxu0 %v851
    %941 = vmatpush.bf16.msra.mxu0 %v849
    %942 = vmatpush.bf16.msra.mxu0 %v847
    %943 = vmatpush.bf16.msra.mxu0 %v845
    %944 = vmatmul.bf16.gmra.mxu0 %v739
    %v945 = vpop.f32.mrf.mxu0
    %v946 = vadd.f32 %v745, %v945
    %v947 = vpop.f32.mrf.mxu0
    %v948 = vadd.f32 %v745, %v947
    %949 = vdwg.mxu0
    %950 = vmatpush.bf16.msra.mxu0 %v875
    %951 = vmatpush.bf16.msra.mxu0 %v873
    %952 = vmatpush.bf16.msra.mxu0 %v871
    %953 = vmatpush.bf16.msra.mxu0 %v869
    %954 = vmatpush.bf16.msra.mxu0 %v867
    %955 = vmatpush.bf16.msra.mxu0 %v865
    %956 = vmatpush.bf16.msra.mxu0 %v863
    %957 = vmatpush.bf16.msra.mxu0 %v861
    %958 = vmatmul.bf16.gmra.mxu0 %v740
    %v959 = vpop.f32.mrf.mxu0
    %v960 = vadd.f32 %v946, %v959
    %v961 = vpop.f32.mrf.mxu0
    %v962 = vadd.f32 %v948, %v961
    %963 = vdwg.mxu0
    %vm964 = vcmp.ge.f32.partialorder %v932, 0.0
    %vm965 = vcmp.ge.f32.partialorder %v960, 0.0
    %vm966 = vcmp.ge.f32.partialorder %v934, 0.0
    %vm967 = vcmp.ge.f32.partialorder %v962, 0.0
    %v968 = vmul.f32 %v932, 0.25
    %v969 = vmul.f32 %v960, 0.25
    %v970 = vmul.f32 %v934, 0.25
    %v971 = vmul.f32 %v962, 0.25
    %v972 = vsel %vm964, %v932, %v968
    %v973 = vsel %vm965, %v960, %v969
    %v974 = vsel %vm966, %v934, %v970
    %v975 = vsel %vm967, %v962, %v971
    %s976 = scalar_lea.vmem [#allocation2], 256
    %v977 = vld [vmem:[%s976] sm:$0xff]
    %v978 = vld [vmem:[%s976 + $0x8] sm:$0xff]
    %v979 = vld [vmem:[%s976 + $0x10] sm:$0xff]
    %v980 = vld [vmem:[%s976 + $0x18] sm:$0xff]
    %v981 = vld [vmem:[%s976 + $0x20] sm:$0xff]
    %v982 = vld [vmem:[%s976 + $0x28] sm:$0xff]
    %v983 = vld [vmem:[%s976 + $0x30] sm:$0xff]
    %v984 = vld [vmem:[%s976 + $0x38] sm:$0xff]
    %v985 = vld [vmem:[%s976 + $0x40] sm:$0xff]
    %v986 = vld [vmem:[%s976 + $0x48] sm:$0xff]
    %v987 = vld [vmem:[%s976 + $0x50] sm:$0xff]
    %v988 = vld [vmem:[%s976 + $0x58] sm:$0xff]
    %v989 = vld [vmem:[%s976 + $0x60] sm:$0xff]
    %v990 = vld [vmem:[%s976 + $0x68] sm:$0xff]
    %v991 = vld [vmem:[%s976 + $0x70] sm:$0xff]
    %v992 = vld [vmem:[%s976 + $0x78] sm:$0xff]
    %v993 = vpack.c.bf16 %v149, %v148
    %s994 = scalar_lea.vmem %s4, 4
    %v995 = vld [vmem:[%s994] sm:$0x3]
    %v997 = vperm.slane %v995, 0
    %v998 = vperm.slane %v995, 1
    %v1017 = vunpack.c.l.b16 %v977
    %v1018 = vunpack.c.h.b16 %v977
    %v1019 = vunpack.c.l.b16 %v978
    %v1020 = vunpack.c.h.b16 %v978
    %v1021 = vunpack.c.l.b16 %v979
    %v1022 = vunpack.c.h.b16 %v979
    %v1023 = vunpack.c.l.b16 %v980
    %v1024 = vunpack.c.h.b16 %v980
    %v1025 = vunpack.c.l.b16 %v981
    %v1026 = vunpack.c.h.b16 %v981
    %v1027 = vunpack.c.l.b16 %v982
    %v1028 = vunpack.c.h.b16 %v982
    %v1029 = vunpack.c.l.b16 %v983
    %v1030 = vunpack.c.h.b16 %v983
    %v1031 = vunpack.c.l.b16 %v984
    %v1032 = vunpack.c.h.b16 %v984
    %v1033 = vunpack.c.l.b16 %v985
    %v1034 = vunpack.c.h.b16 %v985
    %v1035 = vunpack.c.l.b16 %v986
    %v1036 = vunpack.c.h.b16 %v986
    %v1037 = vunpack.c.l.b16 %v987
    %v1038 = vunpack.c.h.b16 %v987
    %v1039 = vunpack.c.l.b16 %v988
    %v1040 = vunpack.c.h.b16 %v988
    %v1041 = vunpack.c.l.b16 %v989
    %v1042 = vunpack.c.h.b16 %v989
    %v1043 = vunpack.c.l.b16 %v990
    %v1044 = vunpack.c.h.b16 %v990
    %v1045 = vunpack.c.l.b16 %v991
    %v1046 = vunpack.c.h.b16 %v991
    %v1047 = vunpack.c.l.b16 %v992
    %v1048 = vunpack.c.h.b16 %v992
    %v1049 = vpack.c.b16 %v1019, %v1017
    %v1050 = vpack.c.b16 %v1020, %v1018
    %v1051 = vpack.c.b16 %v1023, %v1021
    %v1052 = vpack.c.b16 %v1024, %v1022
    %v1053 = vpack.c.b16 %v1027, %v1025
    %v1054 = vpack.c.b16 %v1028, %v1026
    %v1055 = vpack.c.b16 %v1031, %v1029
    %v1056 = vpack.c.b16 %v1032, %v1030
    %v1057 = vpack.c.b16 %v1035, %v1033
    %v1058 = vpack.c.b16 %v1036, %v1034
    %v1059 = vpack.c.b16 %v1039, %v1037
    %v1060 = vpack.c.b16 %v1040, %v1038
    %v1061 = vpack.c.b16 %v1043, %v1041
    %v1062 = vpack.c.b16 %v1044, %v1042
    %v1063 = vpack.c.b16 %v1047, %v1045
    %v1064 = vpack.c.b16 %v1048, %v1046
    %1081 = vmatpush.bf16.msra.mxu0 %v1063
    %1082 = vmatpush.bf16.msra.mxu0 %v1061
    %1083 = vmatpush.bf16.msra.mxu0 %v1059
    %1084 = vmatpush.bf16.msra.mxu0 %v1057
    %1085 = vmatpush.bf16.msra.mxu0 %v1055
    %1086 = vmatpush.bf16.msra.mxu0 %v1053
    %1087 = vmatpush.bf16.msra.mxu0 %v1051
    %1088 = vmatpush.bf16.msra.mxu0 %v1049
    %1089 = vmatmul.bf16.gmra.mxu0 %v993
    %v1090 = vpop.f32.mrf.mxu0
    %v1091 = vadd.f32 %v997, %v1090
    %v1092 = vpop.f32.mrf.mxu0
    %v1093 = vadd.f32 %v997, %v1092
    %1094 = vdwg.mxu0
    %1095 = vmatpush.bf16.msra.mxu0 %v1064
    %1096 = vmatpush.bf16.msra.mxu0 %v1062
    %1097 = vmatpush.bf16.msra.mxu0 %v1060
    %1098 = vmatpush.bf16.msra.mxu0 %v1058
    %1099 = vmatpush.bf16.msra.mxu0 %v1056
    %1100 = vmatpush.bf16.msra.mxu0 %v1054
    %1101 = vmatpush.bf16.msra.mxu0 %v1052
    %1102 = vmatpush.bf16.msra.mxu0 %v1050
    %1103 = vmatmul.bf16.gmra.mxu0 %v993
    %v1104 = vpop.f32.mrf.mxu0
    %v1105 = vadd.f32 %v998, %v1104
    %v1106 = vpop.f32.mrf.mxu0
    %v1107 = vadd.f32 %v998, %v1106
    %1108 = vdwg.mxu0
    %vm1109 = vcmp.ge.f32.partialorder %v1091, 0.0
    %vm1110 = vcmp.ge.f32.partialorder %v1105, 0.0
    %vm1111 = vcmp.ge.f32.partialorder %v1093, 0.0
    %vm1112 = vcmp.ge.f32.partialorder %v1107, 0.0
    %v1113 = vmul.f32 %v1091, 0.25
    %v1114 = vmul.f32 %v1105, 0.25
    %v1115 = vmul.f32 %v1093, 0.25
    %v1116 = vmul.f32 %v1107, 0.25
    %v1117 = vsel %vm1109, %v1091, %v1113
    %v1118 = vsel %vm1110, %v1105, %v1114
    %v1119 = vsel %vm1111, %v1093, %v1115
    %v1120 = vsel %vm1112, %v1107, %v1116
    %s1121 = scalar_lea.vmem [#allocation4], 512
    %v1122 = vld [vmem:[%s1121] sm:$0xff]
    %v1123 = vld [vmem:[%s1121 + $0x8] sm:$0xff]
    %v1124 = vld [vmem:[%s1121 + $0x10] sm:$0xff]
    %v1125 = vld [vmem:[%s1121 + $0x18] sm:$0xff]
    %v1126 = vld [vmem:[%s1121 + $0x20] sm:$0xff]
    %v1127 = vld [vmem:[%s1121 + $0x28] sm:$0xff]
    %v1128 = vld [vmem:[%s1121 + $0x30] sm:$0xff]
    %v1129 = vld [vmem:[%s1121 + $0x38] sm:$0xff]
    %v1130 = vld [vmem:[%s1121 + $0x40] sm:$0xff]
    %v1131 = vld [vmem:[%s1121 + $0x48] sm:$0xff]
    %v1132 = vld [vmem:[%s1121 + $0x50] sm:$0xff]
    %v1133 = vld [vmem:[%s1121 + $0x58] sm:$0xff]
    %v1134 = vld [vmem:[%s1121 + $0x60] sm:$0xff]
    %v1135 = vld [vmem:[%s1121 + $0x68] sm:$0xff]
    %v1136 = vld [vmem:[%s1121 + $0x70] sm:$0xff]
    %v1137 = vld [vmem:[%s1121 + $0x78] sm:$0xff]
    %v1138 = vld [vmem:[%s1121 + $0x80] sm:$0xff]
    %v1139 = vld [vmem:[%s1121 + $0x88] sm:$0xff]
    %v1140 = vld [vmem:[%s1121 + $0x90] sm:$0xff]
    %v1141 = vld [vmem:[%s1121 + $0x98] sm:$0xff]
    %v1142 = vld [vmem:[%s1121 + $0xa0] sm:$0xff]
    %v1143 = vld [vmem:[%s1121 + $0xa8] sm:$0xff]
    %v1144 = vld [vmem:[%s1121 + $0xb0] sm:$0xff]
    %v1145 = vld [vmem:[%s1121 + $0xb8] sm:$0xff]
    %v1146 = vld [vmem:[%s1121 + $0xc0] sm:$0xff]
    %v1147 = vld [vmem:[%s1121 + $0xc8] sm:$0xff]
    %v1148 = vld [vmem:[%s1121 + $0xd0] sm:$0xff]
    %v1149 = vld [vmem:[%s1121 + $0xd8] sm:$0xff]
    %v1150 = vld [vmem:[%s1121 + $0xe0] sm:$0xff]
    %v1151 = vld [vmem:[%s1121 + $0xe8] sm:$0xff]
    %v1152 = vld [vmem:[%s1121 + $0xf0] sm:$0xff]
    %v1153 = vld [vmem:[%s1121 + $0xf8] sm:$0xff]
    %v1154 = vpack.c.bf16 %v1119, %v1117
    %v1155 = vpack.c.bf16 %v1120, %v1118
    %s1156 = scalar_lea.vmem %s6, 4
    %v1157 = vld [vmem:[%s1156] sm:$0x3]
    %v1159 = vperm.slane %v1157, 0
    %v1160 = vperm.slane %v1157, 1
    %v1195 = vunpack.c.l.b16 %v1122
    %v1196 = vunpack.c.h.b16 %v1122
    %v1197 = vunpack.c.l.b16 %v1123
    %v1198 = vunpack.c.h.b16 %v1123
    %v1199 = vunpack.c.l.b16 %v1124
    %v1200 = vunpack.c.h.b16 %v1124
    %v1201 = vunpack.c.l.b16 %v1125
    %v1202 = vunpack.c.h.b16 %v1125
    %v1203 = vunpack.c.l.b16 %v1126
    %v1204 = vunpack.c.h.b16 %v1126
    %v1205 = vunpack.c.l.b16 %v1127
    %v1206 = vunpack.c.h.b16 %v1127
    %v1207 = vunpack.c.l.b16 %v1128
    %v1208 = vunpack.c.h.b16 %v1128
    %v1209 = vunpack.c.l.b16 %v1129
    %v1210 = vunpack.c.h.b16 %v1129
    %v1211 = vunpack.c.l.b16 %v1130
    %v1212 = vunpack.c.h.b16 %v1130
    %v1213 = vunpack.c.l.b16 %v1131
    %v1214 = vunpack.c.h.b16 %v1131
    %v1215 = vunpack.c.l.b16 %v1132
    %v1216 = vunpack.c.h.b16 %v1132
    %v1217 = vunpack.c.l.b16 %v1133
    %v1218 = vunpack.c.h.b16 %v1133
    %v1219 = vunpack.c.l.b16 %v1134
    %v1220 = vunpack.c.h.b16 %v1134
    %v1221 = vunpack.c.l.b16 %v1135
    %v1222 = vunpack.c.h.b16 %v1135
    %v1223 = vunpack.c.l.b16 %v1136
    %v1224 = vunpack.c.h.b16 %v1136
    %v1225 = vunpack.c.l.b16 %v1137
    %v1226 = vunpack.c.h.b16 %v1137
    %v1227 = vunpack.c.l.b16 %v1138
    %v1228 = vunpack.c.h.b16 %v1138
    %v1229 = vunpack.c.l.b16 %v1139
    %v1230 = vunpack.c.h.b16 %v1139
    %v1231 = vunpack.c.l.b16 %v1140
    %v1232 = vunpack.c.h.b16 %v1140
    %v1233 = vunpack.c.l.b16 %v1141
    %v1234 = vunpack.c.h.b16 %v1141
    %v1235 = vunpack.c.l.b16 %v1142
    %v1236 = vunpack.c.h.b16 %v1142
    %v1237 = vunpack.c.l.b16 %v1143
    %v1238 = vunpack.c.h.b16 %v1143
    %v1239 = vunpack.c.l.b16 %v1144
    %v1240 = vunpack.c.h.b16 %v1144
    %v1241 = vunpack.c.l.b16 %v1145
    %v1242 = vunpack.c.h.b16 %v1145
    %v1243 = vunpack.c.l.b16 %v1146
    %v1244 = vunpack.c.h.b16 %v1146
    %v1245 = vunpack.c.l.b16 %v1147
    %v1246 = vunpack.c.h.b16 %v1147
    %v1247 = vunpack.c.l.b16 %v1148
    %v1248 = vunpack.c.h.b16 %v1148
    %v1249 = vunpack.c.l.b16 %v1149
    %v1250 = vunpack.c.h.b16 %v1149
    %v1251 = vunpack.c.l.b16 %v1150
    %v1252 = vunpack.c.h.b16 %v1150
    %v1253 = vunpack.c.l.b16 %v1151
    %v1254 = vunpack.c.h.b16 %v1151
    %v1255 = vunpack.c.l.b16 %v1152
    %v1256 = vunpack.c.h.b16 %v1152
    %v1257 = vunpack.c.l.b16 %v1153
    %v1258 = vunpack.c.h.b16 %v1153
    %v1259 = vpack.c.b16 %v1197, %v1195
    %v1260 = vpack.c.b16 %v1198, %v1196
    %v1261 = vpack.c.b16 %v1201, %v1199
    %v1262 = vpack.c.b16 %v1202, %v1200
    %v1263 = vpack.c.b16 %v1205, %v1203
    %v1264 = vpack.c.b16 %v1206, %v1204
    %v1265 = vpack.c.b16 %v1209, %v1207
    %v1266 = vpack.c.b16 %v1210, %v1208
    %v1267 = vpack.c.b16 %v1213, %v1211
    %v1268 = vpack.c.b16 %v1214, %v1212
    %v1269 = vpack.c.b16 %v1217, %v1215
    %v1270 = vpack.c.b16 %v1218, %v1216
    %v1271 = vpack.c.b16 %v1221, %v1219
    %v1272 = vpack.c.b16 %v1222, %v1220
    %v1273 = vpack.c.b16 %v1225, %v1223
    %v1274 = vpack.c.b16 %v1226, %v1224
    %v1275 = vpack.c.b16 %v1229, %v1227
    %v1276 = vpack.c.b16 %v1230, %v1228
    %v1277 = vpack.c.b16 %v1233, %v1231
    %v1278 = vpack.c.b16 %v1234, %v1232
    %v1279 = vpack.c.b16 %v1237, %v1235
    %v1280 = vpack.c.b16 %v1238, %v1236
    %v1281 = vpack.c.b16 %v1241, %v1239
    %v1282 = vpack.c.b16 %v1242, %v1240
    %v1283 = vpack.c.b16 %v1245, %v1243
    %v1284 = vpack.c.b16 %v1246, %v1244
    %v1285 = vpack.c.b16 %v1249, %v1247
    %v1286 = vpack.c.b16 %v1250, %v1248
    %v1287 = vpack.c.b16 %v1253, %v1251
    %v1288 = vpack.c.b16 %v1254, %v1252
    %v1289 = vpack.c.b16 %v1257, %v1255
    %v1290 = vpack.c.b16 %v1258, %v1256
    %1323 = vmatpush.bf16.msra.mxu0 %v1273
    %1324 = vmatpush.bf16.msra.mxu0 %v1271
    %1325 = vmatpush.bf16.msra.mxu0 %v1269
    %1326 = vmatpush.bf16.msra.mxu0 %v1267
    %1327 = vmatpush.bf16.msra.mxu0 %v1265
    %1328 = vmatpush.bf16.msra.mxu0 %v1263
    %1329 = vmatpush.bf16.msra.mxu0 %v1261
    %1330 = vmatpush.bf16.msra.mxu0 %v1259
    %1331 = vmatmul.bf16.gmra.mxu0 %v1154
    %v1332 = vpop.f32.mrf.mxu0
    %v1333 = vadd.f32 %v1159, %v1332
    %v1334 = vpop.f32.mrf.mxu0
    %v1335 = vadd.f32 %v1159, %v1334
    %1336 = vdwg.mxu0
    %1337 = vmatpush.bf16.msra.mxu0 %v1289
    %1338 = vmatpush.bf16.msra.mxu0 %v1287
    %1339 = vmatpush.bf16.msra.mxu0 %v1285
    %1340 = vmatpush.bf16.msra.mxu0 %v1283
    %1341 = vmatpush.bf16.msra.mxu0 %v1281
    %1342 = vmatpush.bf16.msra.mxu0 %v1279
    %1343 = vmatpush.bf16.msra.mxu0 %v1277
    %1344 = vmatpush.bf16.msra.mxu0 %v1275
    %1345 = vmatmul.bf16.gmra.mxu0 %v1155
    %v1346 = vpop.f32.mrf.mxu0
    %v1347 = vadd.f32 %v1333, %v1346
    %v1348 = vpop.f32.mrf.mxu0
    %v1349 = vadd.f32 %v1335, %v1348
    %1350 = vdwg.mxu0
    %1351 = vmatpush.bf16.msra.mxu0 %v1274
    %1352 = vmatpush.bf16.msra.mxu0 %v1272
    %1353 = vmatpush.bf16.msra.mxu0 %v1270
    %1354 = vmatpush.bf16.msra.mxu0 %v1268
    %1355 = vmatpush.bf16.msra.mxu0 %v1266
    %1356 = vmatpush.bf16.msra.mxu0 %v1264
    %1357 = vmatpush.bf16.msra.mxu0 %v1262
    %1358 = vmatpush.bf16.msra.mxu0 %v1260
    %1359 = vmatmul.bf16.gmra.mxu0 %v1154
    %v1360 = vpop.f32.mrf.mxu0
    %v1361 = vadd.f32 %v1160, %v1360
    %v1362 = vpop.f32.mrf.mxu0
    %v1363 = vadd.f32 %v1160, %v1362
    %1364 = vdwg.mxu0
    %1365 = vmatpush.bf16.msra.mxu0 %v1290
    %1366 = vmatpush.bf16.msra.mxu0 %v1288
    %1367 = vmatpush.bf16.msra.mxu0 %v1286
    %1368 = vmatpush.bf16.msra.mxu0 %v1284
    %1369 = vmatpush.bf16.msra.mxu0 %v1282
    %1370 = vmatpush.bf16.msra.mxu0 %v1280
    %1371 = vmatpush.bf16.msra.mxu0 %v1278
    %1372 = vmatpush.bf16.msra.mxu0 %v1276
    %1373 = vmatmul.bf16.gmra.mxu0 %v1155
    %v1374 = vpop.f32.mrf.mxu0
    %v1375 = vadd.f32 %v1361, %v1374
    %v1376 = vpop.f32.mrf.mxu0
    %v1377 = vadd.f32 %v1363, %v1376
    %1378 = vdwg.mxu0
    %vm1379 = vcmp.ge.f32.partialorder %v1347, 0.0
    %vm1380 = vcmp.ge.f32.partialorder %v1375, 0.0
    %vm1381 = vcmp.ge.f32.partialorder %v1349, 0.0
    %vm1382 = vcmp.ge.f32.partialorder %v1377, 0.0
    %v1383 = vmul.f32 %v1347, 0.25
    %v1384 = vmul.f32 %v1375, 0.25
    %v1385 = vmul.f32 %v1349, 0.25
    %v1386 = vmul.f32 %v1377, 0.25
    %v1387 = vsel %vm1379, %v1347, %v1383
    %v1388 = vsel %vm1380, %v1375, %v1384
    %v1389 = vsel %vm1381, %v1349, %v1385
    %v1390 = vsel %vm1382, %v1377, %v1386
    %v1391 = vld [vmem:[#allocation6] sm:$0xff]
    %v1392 = vld [vmem:[#allocation6 + $0x8] sm:$0xf]
    %v1393 = vld [vmem:[#allocation6 + $0xc] sm:$0xff]
    %v1394 = vld [vmem:[#allocation6 + $0x14] sm:$0xf]
    %v1395 = vld [vmem:[#allocation6 + $0x18] sm:$0xff]
    %v1396 = vld [vmem:[#allocation6 + $0x20] sm:$0xf]
    %v1397 = vld [vmem:[#allocation6 + $0x24] sm:$0xff]
    %v1398 = vld [vmem:[#allocation6 + $0x2c] sm:$0xf]
    %v1399 = vld [vmem:[#allocation6 + $0x30] sm:$0xff]
    %v1400 = vld [vmem:[#allocation6 + $0x38] sm:$0xf]
    %v1401 = vld [vmem:[#allocation6 + $0x3c] sm:$0xff]
    %v1402 = vld [vmem:[#allocation6 + $0x44] sm:$0xf]
    %v1403 = vld [vmem:[#allocation6 + $0x48] sm:$0xff]
    %v1404 = vld [vmem:[#allocation6 + $0x50] sm:$0xf]
    %v1405 = vld [vmem:[#allocation6 + $0x54] sm:$0xff]
    %v1406 = vld [vmem:[#allocation6 + $0x5c] sm:$0xf]
    %v1407 = vld [vmem:[#allocation6 + $0x60] sm:$0xff]
    %v1408 = vld [vmem:[#allocation6 + $0x68] sm:$0xf]
    %v1409 = vld [vmem:[#allocation6 + $0x6c] sm:$0xff]
    %v1410 = vld [vmem:[#allocation6 + $0x74] sm:$0xf]
    %v1411 = vld [vmem:[#allocation6 + $0x78] sm:$0xff]
    %v1412 = vld [vmem:[#allocation6 + $0x80] sm:$0xf]
    %v1413 = vld [vmem:[#allocation6 + $0x84] sm:$0xff]
    %v1414 = vld [vmem:[#allocation6 + $0x8c] sm:$0xf]
    %v1415 = vld [vmem:[#allocation6 + $0x90] sm:$0xff]
    %v1416 = vld [vmem:[#allocation6 + $0x98] sm:$0xf]
    %v1417 = vld [vmem:[#allocation6 + $0x9c] sm:$0xff]
    %v1418 = vld [vmem:[#allocation6 + $0xa4] sm:$0xf]
    %v1419 = vld [vmem:[#allocation6 + $0xa8] sm:$0xff]
    %v1420 = vld [vmem:[#allocation6 + $0xb0] sm:$0xf]
    %v1421 = vld [vmem:[#allocation6 + $0xb4] sm:$0xff]
    %v1422 = vld [vmem:[#allocation6 + $0xbc] sm:$0xf]
    %v1423 = vld [vmem:[#allocation6 + $0xc0] sm:$0xff]
    %v1424 = vld [vmem:[#allocation6 + $0xc8] sm:$0xf]
    %v1425 = vld [vmem:[#allocation6 + $0xcc] sm:$0xff]
    %v1426 = vld [vmem:[#allocation6 + $0xd4] sm:$0xf]
    %v1427 = vld [vmem:[#allocation6 + $0xd8] sm:$0xff]
    %v1428 = vld [vmem:[#allocation6 + $0xe0] sm:$0xf]
    %v1429 = vld [vmem:[#allocation6 + $0xe4] sm:$0xff]
    %v1430 = vld [vmem:[#allocation6 + $0xec] sm:$0xf]
    %v1431 = vld [vmem:[#allocation6 + $0xf0] sm:$0xff]
    %v1432 = vld [vmem:[#allocation6 + $0xf8] sm:$0xf]
    %v1433 = vld [vmem:[#allocation6 + $0xfc] sm:$0xff]
    %v1434 = vld [vmem:[#allocation6 + $0x104] sm:$0xf]
    %v1435 = vld [vmem:[#allocation6 + $0x108] sm:$0xff]
    %v1436 = vld [vmem:[#allocation6 + $0x110] sm:$0xf]
    %v1437 = vld [vmem:[#allocation6 + $0x114] sm:$0xff]
    %v1438 = vld [vmem:[#allocation6 + $0x11c] sm:$0xf]
    %v1439 = vld [vmem:[#allocation6 + $0x120] sm:$0xff]
    %v1440 = vld [vmem:[#allocation6 + $0x128] sm:$0xf]
    %v1441 = vld [vmem:[#allocation6 + $0x12c] sm:$0xff]
    %v1442 = vld [vmem:[#allocation6 + $0x134] sm:$0xf]
    %v1443 = vld [vmem:[#allocation6 + $0x138] sm:$0xff]
    %v1444 = vld [vmem:[#allocation6 + $0x140] sm:$0xf]
    %v1445 = vld [vmem:[#allocation6 + $0x144] sm:$0xff]
    %v1446 = vld [vmem:[#allocation6 + $0x14c] sm:$0xf]
    %v1447 = vld [vmem:[#allocation6 + $0x150] sm:$0xff]
    %v1448 = vld [vmem:[#allocation6 + $0x158] sm:$0xf]
    %v1449 = vld [vmem:[#allocation6 + $0x15c] sm:$0xff]
    %v1450 = vld [vmem:[#allocation6 + $0x164] sm:$0xf]
    %v1451 = vld [vmem:[#allocation6 + $0x168] sm:$0xff]
    %v1452 = vld [vmem:[#allocation6 + $0x170] sm:$0xf]
    %v1453 = vld [vmem:[#allocation6 + $0x174] sm:$0xff]
    %v1454 = vld [vmem:[#allocation6 + $0x17c] sm:$0xf]
    %v1455 = vpack.c.bf16 %v559, %v557
    %v1456 = vpack.c.bf16 %v560, %v558
    %v1457 = vld [vmem:[%s8] sm:$0x7]
    %v1459 = vperm.slane %v1457, 0
    %v1460 = vperm.slane %v1457, 1
    %v1461 = vperm.slane %v1457, 2
    %v1529 = vunpack.c.l.b16 %v1391
    %v1530 = vunpack.c.h.b16 %v1391
    %v1531 = vunpack.c.l.b16 %v1392
    %v1532 = vunpack.c.l.b16 %v1393
    %v1533 = vunpack.c.h.b16 %v1393
    %v1534 = vunpack.c.l.b16 %v1394
    %v1535 = vunpack.c.l.b16 %v1395
    %v1536 = vunpack.c.h.b16 %v1395
    %v1537 = vunpack.c.l.b16 %v1396
    %v1538 = vunpack.c.l.b16 %v1397
    %v1539 = vunpack.c.h.b16 %v1397
    %v1540 = vunpack.c.l.b16 %v1398
    %v1541 = vunpack.c.l.b16 %v1399
    %v1542 = vunpack.c.h.b16 %v1399
    %v1543 = vunpack.c.l.b16 %v1400
    %v1544 = vunpack.c.l.b16 %v1401
    %v1545 = vunpack.c.h.b16 %v1401
    %v1546 = vunpack.c.l.b16 %v1402
    %v1547 = vunpack.c.l.b16 %v1403
    %v1548 = vunpack.c.h.b16 %v1403
    %v1549 = vunpack.c.l.b16 %v1404
    %v1550 = vunpack.c.l.b16 %v1405
    %v1551 = vunpack.c.h.b16 %v1405
    %v1552 = vunpack.c.l.b16 %v1406
    %v1553 = vunpack.c.l.b16 %v1407
    %v1554 = vunpack.c.h.b16 %v1407
    %v1555 = vunpack.c.l.b16 %v1408
    %v1556 = vunpack.c.l.b16 %v1409
    %v1557 = vunpack.c.h.b16 %v1409
    %v1558 = vunpack.c.l.b16 %v1410
    %v1559 = vunpack.c.l.b16 %v1411
    %v1560 = vunpack.c.h.b16 %v1411
    %v1561 = vunpack.c.l.b16 %v1412
    %v1562 = vunpack.c.l.b16 %v1413
    %v1563 = vunpack.c.h.b16 %v1413
    %v1564 = vunpack.c.l.b16 %v1414
    %v1565 = vunpack.c.l.b16 %v1415
    %v1566 = vunpack.c.h.b16 %v1415
    %v1567 = vunpack.c.l.b16 %v1416
    %v1568 = vunpack.c.l.b16 %v1417
    %v1569 = vunpack.c.h.b16 %v1417
    %v1570 = vunpack.c.l.b16 %v1418
    %v1571 = vunpack.c.l.b16 %v1419
    %v1572 = vunpack.c.h.b16 %v1419
    %v1573 = vunpack.c.l.b16 %v1420
    %v1574 = vunpack.c.l.b16 %v1421
    %v1575 = vunpack.c.h.b16 %v1421
    %v1576 = vunpack.c.l.b16 %v1422
    %v1577 = vunpack.c.l.b16 %v1423
    %v1578 = vunpack.c.h.b16 %v1423
    %v1579 = vunpack.c.l.b16 %v1424
    %v1580 = vunpack.c.l.b16 %v1425
    %v1581 = vunpack.c.h.b16 %v1425
    %v1582 = vunpack.c.l.b16 %v1426
    %v1583 = vunpack.c.l.b16 %v1427
    %v1584 = vunpack.c.h.b16 %v1427
    %v1585 = vunpack.c.l.b16 %v1428
    %v1586 = vunpack.c.l.b16 %v1429
    %v1587 = vunpack.c.h.b16 %v1429
    %v1588 = vunpack.c.l.b16 %v1430
    %v1589 = vunpack.c.l.b16 %v1431
    %v1590 = vunpack.c.h.b16 %v1431
    %v1591 = vunpack.c.l.b16 %v1432
    %v1592 = vunpack.c.l.b16 %v1433
    %v1593 = vunpack.c.h.b16 %v1433
    %v1594 = vunpack.c.l.b16 %v1434
    %v1595 = vunpack.c.l.b16 %v1435
    %v1596 = vunpack.c.h.b16 %v1435
    %v1597 = vunpack.c.l.b16 %v1436
    %v1598 = vunpack.c.l.b16 %v1437
    %v1599 = vunpack.c.h.b16 %v1437
    %v1600 = vunpack.c.l.b16 %v1438
    %v1601 = vunpack.c.l.b16 %v1439
    %v1602 = vunpack.c.h.b16 %v1439
    %v1603 = vunpack.c.l.b16 %v1440
    %v1604 = vunpack.c.l.b16 %v1441
    %v1605 = vunpack.c.h.b16 %v1441
    %v1606 = vunpack.c.l.b16 %v1442
    %v1607 = vunpack.c.l.b16 %v1443
    %v1608 = vunpack.c.h.b16 %v1443
    %v1609 = vunpack.c.l.b16 %v1444
    %v1610 = vunpack.c.l.b16 %v1445
    %v1611 = vunpack.c.h.b16 %v1445
    %v1612 = vunpack.c.l.b16 %v1446
    %v1613 = vunpack.c.l.b16 %v1447
    %v1614 = vunpack.c.h.b16 %v1447
    %v1615 = vunpack.c.l.b16 %v1448
    %v1616 = vunpack.c.l.b16 %v1449
    %v1617 = vunpack.c.h.b16 %v1449
    %v1618 = vunpack.c.l.b16 %v1450
    %v1619 = vunpack.c.l.b16 %v1451
    %v1620 = vunpack.c.h.b16 %v1451
    %v1621 = vunpack.c.l.b16 %v1452
    %v1622 = vunpack.c.l.b16 %v1453
    %v1623 = vunpack.c.h.b16 %v1453
    %v1624 = vunpack.c.l.b16 %v1454
    %v1625 = vpack.c.b16 %v1532, %v1529
    %v1626 = vpack.c.b16 %v1533, %v1530
    %v1627 = vpack.c.b16 %v1534, %v1531
    %v1628 = vpack.c.b16 %v1538, %v1535
    %v1629 = vpack.c.b16 %v1539, %v1536
    %v1630 = vpack.c.b16 %v1540, %v1537
    %v1631 = vpack.c.b16 %v1544, %v1541
    %v1632 = vpack.c.b16 %v1545, %v1542
    %v1633 = vpack.c.b16 %v1546, %v1543
    %v1634 = vpack.c.b16 %v1550, %v1547
    %v1635 = vpack.c.b16 %v1551, %v1548
    %v1636 = vpack.c.b16 %v1552, %v1549
    %v1637 = vpack.c.b16 %v1556, %v1553
    %v1638 = vpack.c.b16 %v1557, %v1554
    %v1639 = vpack.c.b16 %v1558, %v1555
    %v1640 = vpack.c.b16 %v1562, %v1559
    %v1641 = vpack.c.b16 %v1563, %v1560
    %v1642 = vpack.c.b16 %v1564, %v1561
    %v1643 = vpack.c.b16 %v1568, %v1565
    %v1644 = vpack.c.b16 %v1569, %v1566
    %v1645 = vpack.c.b16 %v1570, %v1567
    %v1646 = vpack.c.b16 %v1574, %v1571
    %v1647 = vpack.c.b16 %v1575, %v1572
    %v1648 = vpack.c.b16 %v1576, %v1573
    %v1649 = vpack.c.b16 %v1580, %v1577
    %v1650 = vpack.c.b16 %v1581, %v1578
    %v1651 = vpack.c.b16 %v1582, %v1579
    %v1652 = vpack.c.b16 %v1586, %v1583
    %v1653 = vpack.c.b16 %v1587, %v1584
    %v1654 = vpack.c.b16 %v1588, %v1585
    %v1655 = vpack.c.b16 %v1592, %v1589
    %v1656 = vpack.c.b16 %v1593, %v1590
    %v1657 = vpack.c.b16 %v1594, %v1591
    %v1658 = vpack.c.b16 %v1598, %v1595
    %v1659 = vpack.c.b16 %v1599, %v1596
    %v1660 = vpack.c.b16 %v1600, %v1597
    %v1661 = vpack.c.b16 %v1604, %v1601
    %v1662 = vpack.c.b16 %v1605, %v1602
    %v1663 = vpack.c.b16 %v1606, %v1603
    %v1664 = vpack.c.b16 %v1610, %v1607
    %v1665 = vpack.c.b16 %v1611, %v1608
    %v1666 = vpack.c.b16 %v1612, %v1609
    %v1667 = vpack.c.b16 %v1616, %v1613
    %v1668 = vpack.c.b16 %v1617, %v1614
    %v1669 = vpack.c.b16 %v1618, %v1615
    %v1670 = vpack.c.b16 %v1622, %v1619
    %v1671 = vpack.c.b16 %v1623, %v1620
    %v1672 = vpack.c.b16 %v1624, %v1621
    %1721 = vmatpush.bf16.msra.mxu0 %v1646
    %1722 = vmatpush.bf16.msra.mxu0 %v1643
    %1723 = vmatpush.bf16.msra.mxu0 %v1640
    %1724 = vmatpush.bf16.msra.mxu0 %v1637
    %1725 = vmatpush.bf16.msra.mxu0 %v1634
    %1726 = vmatpush.bf16.msra.mxu0 %v1631
    %1727 = vmatpush.bf16.msra.mxu0 %v1628
    %1728 = vmatpush.bf16.msra.mxu0 %v1625
    %1729 = vmatmul.bf16.gmra.mxu0 %v1455
    %v1730 = vpop.f32.mrf.mxu0
    %v1731 = vadd.f32 %v1459, %v1730
    %v1732 = vpop.f32.mrf.mxu0
    %v1733 = vadd.f32 %v1459, %v1732
    %1734 = vdwg.mxu0
    %1735 = vmatpush.bf16.msra.mxu0 %v1670
    %1736 = vmatpush.bf16.msra.mxu0 %v1667
    %1737 = vmatpush.bf16.msra.mxu0 %v1664
    %1738 = vmatpush.bf16.msra.mxu0 %v1661
    %1739 = vmatpush.bf16.msra.mxu0 %v1658
    %1740 = vmatpush.bf16.msra.mxu0 %v1655
    %1741 = vmatpush.bf16.msra.mxu0 %v1652
    %1742 = vmatpush.bf16.msra.mxu0 %v1649
    %1743 = vmatmul.bf16.gmra.mxu0 %v1456
    %v1744 = vpop.f32.mrf.mxu0
    %v1745 = vadd.f32 %v1731, %v1744
    %v1746 = vpop.f32.mrf.mxu0
    %v1747 = vadd.f32 %v1733, %v1746
    %1748 = vdwg.mxu0
    %1749 = vmatpush.bf16.msra.mxu0 %v1647
    %1750 = vmatpush.bf16.msra.mxu0 %v1644
    %1751 = vmatpush.bf16.msra.mxu0 %v1641
    %1752 = vmatpush.bf16.msra.mxu0 %v1638
    %1753 = vmatpush.bf16.msra.mxu0 %v1635
    %1754 = vmatpush.bf16.msra.mxu0 %v1632
    %1755 = vmatpush.bf16.msra.mxu0 %v1629
    %1756 = vmatpush.bf16.msra.mxu0 %v1626
    %1757 = vmatmul.bf16.gmra.mxu0 %v1455
    %v1758 = vpop.f32.mrf.mxu0
    %v1759 = vadd.f32 %v1460, %v1758
    %v1760 = vpop.f32.mrf.mxu0
    %v1761 = vadd.f32 %v1460, %v1760
    %1762 = vdwg.mxu0
    %1763 = vmatpush.bf16.msra.mxu0 %v1671
    %1764 = vmatpush.bf16.msra.mxu0 %v1668
    %1765 = vmatpush.bf16.msra.mxu0 %v1665
    %1766 = vmatpush.bf16.msra.mxu0 %v1662
    %1767 = vmatpush.bf16.msra.mxu0 %v1659
    %1768 = vmatpush.bf16.msra.mxu0 %v1656
    %1769 = vmatpush.bf16.msra.mxu0 %v1653
    %1770 = vmatpush.bf16.msra.mxu0 %v1650
    %1771 = vmatmul.bf16.gmra.mxu0 %v1456
    %v1772 = vpop.f32.mrf.mxu0
    %v1773 = vadd.f32 %v1759, %v1772
    %v1774 = vpop.f32.mrf.mxu0
    %v1775 = vadd.f32 %v1761, %v1774
    %1776 = vdwg.mxu0
    %1777 = vmatpush.bf16.msra.mxu0 %v1648
    %1778 = vmatpush.bf16.msra.mxu0 %v1645
    %1779 = vmatpush.bf16.msra.mxu0 %v1642
    %1780 = vmatpush.bf16.msra.mxu0 %v1639
    %1781 = vmatpush.bf16.msra.mxu0 %v1636
    %1782 = vmatpush.bf16.msra.mxu0 %v1633
    %1783 = vmatpush.bf16.msra.mxu0 %v1630
    %1784 = vmatpush.bf16.msra.mxu0 %v1627
    %1785 = vmatmul.bf16.gmra.mxu0 %v1455
    %v1786 = vpop.f32.mrf.mxu0
    %v1787 = vadd.f32 %v1461, %v1786
    %v1788 = vpop.f32.mrf.mxu0
    %v1789 = vadd.f32 %v1461, %v1788
    %1790 = vdwg.mxu0
    %1791 = vmatpush.bf16.msra.mxu0 %v1672
    %1792 = vmatpush.bf16.msra.mxu0 %v1669
    %1793 = vmatpush.bf16.msra.mxu0 %v1666
    %1794 = vmatpush.bf16.msra.mxu0 %v1663
    %1795 = vmatpush.bf16.msra.mxu0 %v1660
    %1796 = vmatpush.bf16.msra.mxu0 %v1657
    %1797 = vmatpush.bf16.msra.mxu0 %v1654
    %1798 = vmatpush.bf16.msra.mxu0 %v1651
    %1799 = vmatmul.bf16.gmra.mxu0 %v1456
    %v1800 = vpop.f32.mrf.mxu0
    %v1801 = vadd.f32 %v1787, %v1800
    %v1802 = vpop.f32.mrf.mxu0
    %v1803 = vadd.f32 %v1789, %v1802
    %1804 = vdwg.mxu0
    %s1805 = scalar_lea.vmem [#allocation6], 384
    %v1806 = vld [vmem:[%s1805] sm:$0xff]
    %v1807 = vld [vmem:[%s1805 + $0x8] sm:$0xf]
    %v1808 = vld [vmem:[%s1805 + $0xc] sm:$0xff]
    %v1809 = vld [vmem:[%s1805 + $0x14] sm:$0xf]
    %v1810 = vld [vmem:[%s1805 + $0x18] sm:$0xff]
    %v1811 = vld [vmem:[%s1805 + $0x20] sm:$0xf]
    %v1812 = vld [vmem:[%s1805 + $0x24] sm:$0xff]
    %v1813 = vld [vmem:[%s1805 + $0x2c] sm:$0xf]
    %v1814 = vld [vmem:[%s1805 + $0x30] sm:$0xff]
    %v1815 = vld [vmem:[%s1805 + $0x38] sm:$0xf]
    %v1816 = vld [vmem:[%s1805 + $0x3c] sm:$0xff]
    %v1817 = vld [vmem:[%s1805 + $0x44] sm:$0xf]
    %v1818 = vld [vmem:[%s1805 + $0x48] sm:$0xff]
    %v1819 = vld [vmem:[%s1805 + $0x50] sm:$0xf]
    %v1820 = vld [vmem:[%s1805 + $0x54] sm:$0xff]
    %v1821 = vld [vmem:[%s1805 + $0x5c] sm:$0xf]
    %v1822 = vld [vmem:[%s1805 + $0x60] sm:$0xff]
    %v1823 = vld [vmem:[%s1805 + $0x68] sm:$0xf]
    %v1824 = vld [vmem:[%s1805 + $0x6c] sm:$0xff]
    %v1825 = vld [vmem:[%s1805 + $0x74] sm:$0xf]
    %v1826 = vld [vmem:[%s1805 + $0x78] sm:$0xff]
    %v1827 = vld [vmem:[%s1805 + $0x80] sm:$0xf]
    %v1828 = vld [vmem:[%s1805 + $0x84] sm:$0xff]
    %v1829 = vld [vmem:[%s1805 + $0x8c] sm:$0xf]
    %v1830 = vld [vmem:[%s1805 + $0x90] sm:$0xff]
    %v1831 = vld [vmem:[%s1805 + $0x98] sm:$0xf]
    %v1832 = vld [vmem:[%s1805 + $0x9c] sm:$0xff]
    %v1833 = vld [vmem:[%s1805 + $0xa4] sm:$0xf]
    %v1834 = vld [vmem:[%s1805 + $0xa8] sm:$0xff]
    %v1835 = vld [vmem:[%s1805 + $0xb0] sm:$0xf]
    %v1836 = vld [vmem:[%s1805 + $0xb4] sm:$0xff]
    %v1837 = vld [vmem:[%s1805 + $0xbc] sm:$0xf]
    %v1838 = vld [vmem:[%s1805 + $0xc0] sm:$0xff]
    %v1839 = vld [vmem:[%s1805 + $0xc8] sm:$0xf]
    %v1840 = vld [vmem:[%s1805 + $0xcc] sm:$0xff]
    %v1841 = vld [vmem:[%s1805 + $0xd4] sm:$0xf]
    %v1842 = vld [vmem:[%s1805 + $0xd8] sm:$0xff]
    %v1843 = vld [vmem:[%s1805 + $0xe0] sm:$0xf]
    %v1844 = vld [vmem:[%s1805 + $0xe4] sm:$0xff]
    %v1845 = vld [vmem:[%s1805 + $0xec] sm:$0xf]
    %v1846 = vld [vmem:[%s1805 + $0xf0] sm:$0xff]
    %v1847 = vld [vmem:[%s1805 + $0xf8] sm:$0xf]
    %v1848 = vld [vmem:[%s1805 + $0xfc] sm:$0xff]
    %v1849 = vld [vmem:[%s1805 + $0x104] sm:$0xf]
    %v1850 = vld [vmem:[%s1805 + $0x108] sm:$0xff]
    %v1851 = vld [vmem:[%s1805 + $0x110] sm:$0xf]
    %v1852 = vld [vmem:[%s1805 + $0x114] sm:$0xff]
    %v1853 = vld [vmem:[%s1805 + $0x11c] sm:$0xf]
    %v1854 = vld [vmem:[%s1805 + $0x120] sm:$0xff]
    %v1855 = vld [vmem:[%s1805 + $0x128] sm:$0xf]
    %v1856 = vld [vmem:[%s1805 + $0x12c] sm:$0xff]
    %v1857 = vld [vmem:[%s1805 + $0x134] sm:$0xf]
    %v1858 = vld [vmem:[%s1805 + $0x138] sm:$0xff]
    %v1859 = vld [vmem:[%s1805 + $0x140] sm:$0xf]
    %v1860 = vld [vmem:[%s1805 + $0x144] sm:$0xff]
    %v1861 = vld [vmem:[%s1805 + $0x14c] sm:$0xf]
    %v1862 = vld [vmem:[%s1805 + $0x150] sm:$0xff]
    %v1863 = vld [vmem:[%s1805 + $0x158] sm:$0xf]
    %v1864 = vld [vmem:[%s1805 + $0x15c] sm:$0xff]
    %v1865 = vld [vmem:[%s1805 + $0x164] sm:$0xf]
    %v1866 = vld [vmem:[%s1805 + $0x168] sm:$0xff]
    %v1867 = vld [vmem:[%s1805 + $0x170] sm:$0xf]
    %v1868 = vld [vmem:[%s1805 + $0x174] sm:$0xff]
    %v1869 = vld [vmem:[%s1805 + $0x17c] sm:$0xf]
    %v1870 = vpack.c.bf16 %v974, %v972
    %v1871 = vpack.c.bf16 %v975, %v973
    %s1872 = scalar_lea.vmem %s8, 3
    %v1873 = vld [vmem:[%s1872] sm:$0x7]
    %v1875 = vperm.slane %v1873, 0
    %v1876 = vperm.slane %v1873, 1
    %v1877 = vperm.slane %v1873, 2
    %v1945 = vunpack.c.l.b16 %v1806
    %v1946 = vunpack.c.h.b16 %v1806
    %v1947 = vunpack.c.l.b16 %v1807
    %v1948 = vunpack.c.l.b16 %v1808
    %v1949 = vunpack.c.h.b16 %v1808
    %v1950 = vunpack.c.l.b16 %v1809
    %v1951 = vunpack.c.l.b16 %v1810
    %v1952 = vunpack.c.h.b16 %v1810
    %v1953 = vunpack.c.l.b16 %v1811
    %v1954 = vunpack.c.l.b16 %v1812
    %v1955 = vunpack.c.h.b16 %v1812
    %v1956 = vunpack.c.l.b16 %v1813
    %v1957 = vunpack.c.l.b16 %v1814
    %v1958 = vunpack.c.h.b16 %v1814
    %v1959 = vunpack.c.l.b16 %v1815
    %v1960 = vunpack.c.l.b16 %v1816
    %v1961 = vunpack.c.h.b16 %v1816
    %v1962 = vunpack.c.l.b16 %v1817
    %v1963 = vunpack.c.l.b16 %v1818
    %v1964 = vunpack.c.h.b16 %v1818
    %v1965 = vunpack.c.l.b16 %v1819
    %v1966 = vunpack.c.l.b16 %v1820
    %v1967 = vunpack.c.h.b16 %v1820
    %v1968 = vunpack.c.l.b16 %v1821
    %v1969 = vunpack.c.l.b16 %v1822
    %v1970 = vunpack.c.h.b16 %v1822
    %v1971 = vunpack.c.l.b16 %v1823
    %v1972 = vunpack.c.l.b16 %v1824
    %v1973 = vunpack.c.h.b16 %v1824
    %v1974 = vunpack.c.l.b16 %v1825
    %v1975 = vunpack.c.l.b16 %v1826
    %v1976 = vunpack.c.h.b16 %v1826
    %v1977 = vunpack.c.l.b16 %v1827
    %v1978 = vunpack.c.l.b16 %v1828
    %v1979 = vunpack.c.h.b16 %v1828
    %v1980 = vunpack.c.l.b16 %v1829
    %v1981 = vunpack.c.l.b16 %v1830
    %v1982 = vunpack.c.h.b16 %v1830
    %v1983 = vunpack.c.l.b16 %v1831
    %v1984 = vunpack.c.l.b16 %v1832
    %v1985 = vunpack.c.h.b16 %v1832
    %v1986 = vunpack.c.l.b16 %v1833
    %v1987 = vunpack.c.l.b16 %v1834
    %v1988 = vunpack.c.h.b16 %v1834
    %v1989 = vunpack.c.l.b16 %v1835
    %v1990 = vunpack.c.l.b16 %v1836
    %v1991 = vunpack.c.h.b16 %v1836
    %v1992 = vunpack.c.l.b16 %v1837
    %v1993 = vunpack.c.l.b16 %v1838
    %v1994 = vunpack.c.h.b16 %v1838
    %v1995 = vunpack.c.l.b16 %v1839
    %v1996 = vunpack.c.l.b16 %v1840
    %v1997 = vunpack.c.h.b16 %v1840
    %v1998 = vunpack.c.l.b16 %v1841
    %v1999 = vunpack.c.l.b16 %v1842
    %v2000 = vunpack.c.h.b16 %v1842
    %v2001 = vunpack.c.l.b16 %v1843
    %v2002 = vunpack.c.l.b16 %v1844
    %v2003 = vunpack.c.h.b16 %v1844
    %v2004 = vunpack.c.l.b16 %v1845
    %v2005 = vunpack.c.l.b16 %v1846
    %v2006 = vunpack.c.h.b16 %v1846
    %v2007 = vunpack.c.l.b16 %v1847
    %v2008 = vunpack.c.l.b16 %v1848
    %v2009 = vunpack.c.h.b16 %v1848
    %v2010 = vunpack.c.l.b16 %v1849
    %v2011 = vunpack.c.l.b16 %v1850
    %v2012 = vunpack.c.h.b16 %v1850
    %v2013 = vunpack.c.l.b16 %v1851
    %v2014 = vunpack.c.l.b16 %v1852
    %v2015 = vunpack.c.h.b16 %v1852
    %v2016 = vunpack.c.l.b16 %v1853
    %v2017 = vunpack.c.l.b16 %v1854
    %v2018 = vunpack.c.h.b16 %v1854
    %v2019 = vunpack.c.l.b16 %v1855
    %v2020 = vunpack.c.l.b16 %v1856
    %v2021 = vunpack.c.h.b16 %v1856
    %v2022 = vunpack.c.l.b16 %v1857
    %v2023 = vunpack.c.l.b16 %v1858
    %v2024 = vunpack.c.h.b16 %v1858
    %v2025 = vunpack.c.l.b16 %v1859
    %v2026 = vunpack.c.l.b16 %v1860
    %v2027 = vunpack.c.h.b16 %v1860
    %v2028 = vunpack.c.l.b16 %v1861
    %v2029 = vunpack.c.l.b16 %v1862
    %v2030 = vunpack.c.h.b16 %v1862
    %v2031 = vunpack.c.l.b16 %v1863
    %v2032 = vunpack.c.l.b16 %v1864
    %v2033 = vunpack.c.h.b16 %v1864
    %v2034 = vunpack.c.l.b16 %v1865
    %v2035 = vunpack.c.l.b16 %v1866
    %v2036 = vunpack.c.h.b16 %v1866
    %v2037 = vunpack.c.l.b16 %v1867
    %v2038 = vunpack.c.l.b16 %v1868
    %v2039 = vunpack.c.h.b16 %v1868
    %v2040 = vunpack.c.l.b16 %v1869
    %v2041 = vpack.c.b16 %v1948, %v1945
    %v2042 = vpack.c.b16 %v1949, %v1946
    %v2043 = vpack.c.b16 %v1950, %v1947
    %v2044 = vpack.c.b16 %v1954, %v1951
    %v2045 = vpack.c.b16 %v1955, %v1952
    %v2046 = vpack.c.b16 %v1956, %v1953
    %v2047 = vpack.c.b16 %v1960, %v1957
    %v2048 = vpack.c.b16 %v1961, %v1958
    %v2049 = vpack.c.b16 %v1962, %v1959
    %v2050 = vpack.c.b16 %v1966, %v1963
    %v2051 = vpack.c.b16 %v1967, %v1964
    %v2052 = vpack.c.b16 %v1968, %v1965
    %v2053 = vpack.c.b16 %v1972, %v1969
    %v2054 = vpack.c.b16 %v1973, %v1970
    %v2055 = vpack.c.b16 %v1974, %v1971
    %v2056 = vpack.c.b16 %v1978, %v1975
    %v2057 = vpack.c.b16 %v1979, %v1976
    %v2058 = vpack.c.b16 %v1980, %v1977
    %v2059 = vpack.c.b16 %v1984, %v1981
    %v2060 = vpack.c.b16 %v1985, %v1982
    %v2061 = vpack.c.b16 %v1986, %v1983
    %v2062 = vpack.c.b16 %v1990, %v1987
    %v2063 = vpack.c.b16 %v1991, %v1988
    %v2064 = vpack.c.b16 %v1992, %v1989
    %v2065 = vpack.c.b16 %v1996, %v1993
    %v2066 = vpack.c.b16 %v1997, %v1994
    %v2067 = vpack.c.b16 %v1998, %v1995
    %v2068 = vpack.c.b16 %v2002, %v1999
    %v2069 = vpack.c.b16 %v2003, %v2000
    %v2070 = vpack.c.b16 %v2004, %v2001
    %v2071 = vpack.c.b16 %v2008, %v2005
    %v2072 = vpack.c.b16 %v2009, %v2006
    %v2073 = vpack.c.b16 %v2010, %v2007
    %v2074 = vpack.c.b16 %v2014, %v2011
    %v2075 = vpack.c.b16 %v2015, %v2012
    %v2076 = vpack.c.b16 %v2016, %v2013
    %v2077 = vpack.c.b16 %v2020, %v2017
    %v2078 = vpack.c.b16 %v2021, %v2018
    %v2079 = vpack.c.b16 %v2022, %v2019
    %v2080 = vpack.c.b16 %v2026, %v2023
    %v2081 = vpack.c.b16 %v2027, %v2024
    %v2082 = vpack.c.b16 %v2028, %v2025
    %v2083 = vpack.c.b16 %v2032, %v2029
    %v2084 = vpack.c.b16 %v2033, %v2030
    %v2085 = vpack.c.b16 %v2034, %v2031
    %v2086 = vpack.c.b16 %v2038, %v2035
    %v2087 = vpack.c.b16 %v2039, %v2036
    %v2088 = vpack.c.b16 %v2040, %v2037
    %2137 = vmatpush.bf16.msra.mxu0 %v2062
    %2138 = vmatpush.bf16.msra.mxu0 %v2059
    %2139 = vmatpush.bf16.msra.mxu0 %v2056
    %2140 = vmatpush.bf16.msra.mxu0 %v2053
    %2141 = vmatpush.bf16.msra.mxu0 %v2050
    %2142 = vmatpush.bf16.msra.mxu0 %v2047
    %2143 = vmatpush.bf16.msra.mxu0 %v2044
    %2144 = vmatpush.bf16.msra.mxu0 %v2041
    %2145 = vmatmul.bf16.gmra.mxu0 %v1870
    %v2146 = vpop.f32.mrf.mxu0
    %v2147 = vadd.f32 %v1875, %v2146
    %v2148 = vpop.f32.mrf.mxu0
    %v2149 = vadd.f32 %v1875, %v2148
    %2150 = vdwg.mxu0
    %2151 = vmatpush.bf16.msra.mxu0 %v2086
    %2152 = vmatpush.bf16.msra.mxu0 %v2083
    %2153 = vmatpush.bf16.msra.mxu0 %v2080
    %2154 = vmatpush.bf16.msra.mxu0 %v2077
    %2155 = vmatpush.bf16.msra.mxu0 %v2074
    %2156 = vmatpush.bf16.msra.mxu0 %v2071
    %2157 = vmatpush.bf16.msra.mxu0 %v2068
    %2158 = vmatpush.bf16.msra.mxu0 %v2065
    %2159 = vmatmul.bf16.gmra.mxu0 %v1871
    %v2160 = vpop.f32.mrf.mxu0
    %v2161 = vadd.f32 %v2147, %v2160
    %v2162 = vpop.f32.mrf.mxu0
    %v2163 = vadd.f32 %v2149, %v2162
    %2164 = vdwg.mxu0
    %2165 = vmatpush.bf16.msra.mxu0 %v2063
    %2166 = vmatpush.bf16.msra.mxu0 %v2060
    %2167 = vmatpush.bf16.msra.mxu0 %v2057
    %2168 = vmatpush.bf16.msra.mxu0 %v2054
    %2169 = vmatpush.bf16.msra.mxu0 %v2051
    %2170 = vmatpush.bf16.msra.mxu0 %v2048
    %2171 = vmatpush.bf16.msra.mxu0 %v2045
    %2172 = vmatpush.bf16.msra.mxu0 %v2042
    %2173 = vmatmul.bf16.gmra.mxu0 %v1870
    %v2174 = vpop.f32.mrf.mxu0
    %v2175 = vadd.f32 %v1876, %v2174
    %v2176 = vpop.f32.mrf.mxu0
    %v2177 = vadd.f32 %v1876, %v2176
    %2178 = vdwg.mxu0
    %2179 = vmatpush.bf16.msra.mxu0 %v2087
    %2180 = vmatpush.bf16.msra.mxu0 %v2084
    %2181 = vmatpush.bf16.msra.mxu0 %v2081
    %2182 = vmatpush.bf16.msra.mxu0 %v2078
    %2183 = vmatpush.bf16.msra.mxu0 %v2075
    %2184 = vmatpush.bf16.msra.mxu0 %v2072
    %2185 = vmatpush.bf16.msra.mxu0 %v2069
    %2186 = vmatpush.bf16.msra.mxu0 %v2066
    %2187 = vmatmul.bf16.gmra.mxu0 %v1871
    %v2188 = vpop.f32.mrf.mxu0
    %v2189 = vadd.f32 %v2175, %v2188
    %v2190 = vpop.f32.mrf.mxu0
    %v2191 = vadd.f32 %v2177, %v2190
    %2192 = vdwg.mxu0
    %2193 = vmatpush.bf16.msra.mxu0 %v2064
    %2194 = vmatpush.bf16.msra.mxu0 %v2061
    %2195 = vmatpush.bf16.msra.mxu0 %v2058
    %2196 = vmatpush.bf16.msra.mxu0 %v2055
    %2197 = vmatpush.bf16.msra.mxu0 %v2052
    %2198 = vmatpush.bf16.msra.mxu0 %v2049
    %2199 = vmatpush.bf16.msra.mxu0 %v2046
    %2200 = vmatpush.bf16.msra.mxu0 %v2043
    %2201 = vmatmul.bf16.gmra.mxu0 %v1870
    %v2202 = vpop.f32.mrf.mxu0
    %v2203 = vadd.f32 %v1877, %v2202
    %v2204 = vpop.f32.mrf.mxu0
    %v2205 = vadd.f32 %v1877, %v2204
    %2206 = vdwg.mxu0
    %2207 = vmatpush.bf16.msra.mxu0 %v2088
    %2208 = vmatpush.bf16.msra.mxu0 %v2085
    %2209 = vmatpush.bf16.msra.mxu0 %v2082
    %2210 = vmatpush.bf16.msra.mxu0 %v2079
    %2211 = vmatpush.bf16.msra.mxu0 %v2076
    %2212 = vmatpush.bf16.msra.mxu0 %v2073
    %2213 = vmatpush.bf16.msra.mxu0 %v2070
    %2214 = vmatpush.bf16.msra.mxu0 %v2067
    %2215 = vmatmul.bf16.gmra.mxu0 %v1871
    %v2216 = vpop.f32.mrf.mxu0
    %v2217 = vadd.f32 %v2203, %v2216
    %v2218 = vpop.f32.mrf.mxu0
    %v2219 = vadd.f32 %v2205, %v2218
    %2220 = vdwg.mxu0
    %s2221 = scalar_lea.vmem [#allocation6], 768
    %v2222 = vld [vmem:[%s2221] sm:$0xff]
    %v2223 = vld [vmem:[%s2221 + $0x8] sm:$0xf]
    %v2224 = vld [vmem:[%s2221 + $0xc] sm:$0xff]
    %v2225 = vld [vmem:[%s2221 + $0x14] sm:$0xf]
    %v2226 = vld [vmem:[%s2221 + $0x18] sm:$0xff]
    %v2227 = vld [vmem:[%s2221 + $0x20] sm:$0xf]
    %v2228 = vld [vmem:[%s2221 + $0x24] sm:$0xff]
    %v2229 = vld [vmem:[%s2221 + $0x2c] sm:$0xf]
    %v2230 = vld [vmem:[%s2221 + $0x30] sm:$0xff]
    %v2231 = vld [vmem:[%s2221 + $0x38] sm:$0xf]
    %v2232 = vld [vmem:[%s2221 + $0x3c] sm:$0xff]
    %v2233 = vld [vmem:[%s2221 + $0x44] sm:$0xf]
    %v2234 = vld [vmem:[%s2221 + $0x48] sm:$0xff]
    %v2235 = vld [vmem:[%s2221 + $0x50] sm:$0xf]
    %v2236 = vld [vmem:[%s2221 + $0x54] sm:$0xff]
    %v2237 = vld [vmem:[%s2221 + $0x5c] sm:$0xf]
    %v2238 = vld [vmem:[%s2221 + $0x60] sm:$0xff]
    %v2239 = vld [vmem:[%s2221 + $0x68] sm:$0xf]
    %v2240 = vld [vmem:[%s2221 + $0x6c] sm:$0xff]
    %v2241 = vld [vmem:[%s2221 + $0x74] sm:$0xf]
    %v2242 = vld [vmem:[%s2221 + $0x78] sm:$0xff]
    %v2243 = vld [vmem:[%s2221 + $0x80] sm:$0xf]
    %v2244 = vld [vmem:[%s2221 + $0x84] sm:$0xff]
    %v2245 = vld [vmem:[%s2221 + $0x8c] sm:$0xf]
    %v2246 = vld [vmem:[%s2221 + $0x90] sm:$0xff]
    %v2247 = vld [vmem:[%s2221 + $0x98] sm:$0xf]
    %v2248 = vld [vmem:[%s2221 + $0x9c] sm:$0xff]
    %v2249 = vld [vmem:[%s2221 + $0xa4] sm:$0xf]
    %v2250 = vld [vmem:[%s2221 + $0xa8] sm:$0xff]
    %v2251 = vld [vmem:[%s2221 + $0xb0] sm:$0xf]
    %v2252 = vld [vmem:[%s2221 + $0xb4] sm:$0xff]
    %v2253 = vld [vmem:[%s2221 + $0xbc] sm:$0xf]
    %v2254 = vld [vmem:[%s2221 + $0xc0] sm:$0xff]
    %v2255 = vld [vmem:[%s2221 + $0xc8] sm:$0xf]
    %v2256 = vld [vmem:[%s2221 + $0xcc] sm:$0xff]
    %v2257 = vld [vmem:[%s2221 + $0xd4] sm:$0xf]
    %v2258 = vld [vmem:[%s2221 + $0xd8] sm:$0xff]
    %v2259 = vld [vmem:[%s2221 + $0xe0] sm:$0xf]
    %v2260 = vld [vmem:[%s2221 + $0xe4] sm:$0xff]
    %v2261 = vld [vmem:[%s2221 + $0xec] sm:$0xf]
    %v2262 = vld [vmem:[%s2221 + $0xf0] sm:$0xff]
    %v2263 = vld [vmem:[%s2221 + $0xf8] sm:$0xf]
    %v2264 = vld [vmem:[%s2221 + $0xfc] sm:$0xff]
    %v2265 = vld [vmem:[%s2221 + $0x104] sm:$0xf]
    %v2266 = vld [vmem:[%s2221 + $0x108] sm:$0xff]
    %v2267 = vld [vmem:[%s2221 + $0x110] sm:$0xf]
    %v2268 = vld [vmem:[%s2221 + $0x114] sm:$0xff]
    %v2269 = vld [vmem:[%s2221 + $0x11c] sm:$0xf]
    %v2270 = vld [vmem:[%s2221 + $0x120] sm:$0xff]
    %v2271 = vld [vmem:[%s2221 + $0x128] sm:$0xf]
    %v2272 = vld [vmem:[%s2221 + $0x12c] sm:$0xff]
    %v2273 = vld [vmem:[%s2221 + $0x134] sm:$0xf]
    %v2274 = vld [vmem:[%s2221 + $0x138] sm:$0xff]
    %v2275 = vld [vmem:[%s2221 + $0x140] sm:$0xf]
    %v2276 = vld [vmem:[%s2221 + $0x144] sm:$0xff]
    %v2277 = vld [vmem:[%s2221 + $0x14c] sm:$0xf]
    %v2278 = vld [vmem:[%s2221 + $0x150] sm:$0xff]
    %v2279 = vld [vmem:[%s2221 + $0x158] sm:$0xf]
    %v2280 = vld [vmem:[%s2221 + $0x15c] sm:$0xff]
    %v2281 = vld [vmem:[%s2221 + $0x164] sm:$0xf]
    %v2282 = vld [vmem:[%s2221 + $0x168] sm:$0xff]
    %v2283 = vld [vmem:[%s2221 + $0x170] sm:$0xf]
    %v2284 = vld [vmem:[%s2221 + $0x174] sm:$0xff]
    %v2285 = vld [vmem:[%s2221 + $0x17c] sm:$0xf]
    %v2286 = vpack.c.bf16 %v1389, %v1387
    %v2287 = vpack.c.bf16 %v1390, %v1388
    %s2288 = scalar_lea.vmem %s8, 6
    %v2289 = vld [vmem:[%s2288] sm:$0x7]
    %v2291 = vperm.slane %v2289, 0
    %v2292 = vperm.slane %v2289, 1
    %v2293 = vperm.slane %v2289, 2
    %v2361 = vunpack.c.l.b16 %v2222
    %v2362 = vunpack.c.h.b16 %v2222
    %v2363 = vunpack.c.l.b16 %v2223
    %v2364 = vunpack.c.l.b16 %v2224
    %v2365 = vunpack.c.h.b16 %v2224
    %v2366 = vunpack.c.l.b16 %v2225
    %v2367 = vunpack.c.l.b16 %v2226
    %v2368 = vunpack.c.h.b16 %v2226
    %v2369 = vunpack.c.l.b16 %v2227
    %v2370 = vunpack.c.l.b16 %v2228
    %v2371 = vunpack.c.h.b16 %v2228
    %v2372 = vunpack.c.l.b16 %v2229
    %v2373 = vunpack.c.l.b16 %v2230
    %v2374 = vunpack.c.h.b16 %v2230
    %v2375 = vunpack.c.l.b16 %v2231
    %v2376 = vunpack.c.l.b16 %v2232
    %v2377 = vunpack.c.h.b16 %v2232
    %v2378 = vunpack.c.l.b16 %v2233
    %v2379 = vunpack.c.l.b16 %v2234
    %v2380 = vunpack.c.h.b16 %v2234
    %v2381 = vunpack.c.l.b16 %v2235
    %v2382 = vunpack.c.l.b16 %v2236
    %v2383 = vunpack.c.h.b16 %v2236
    %v2384 = vunpack.c.l.b16 %v2237
    %v2385 = vunpack.c.l.b16 %v2238
    %v2386 = vunpack.c.h.b16 %v2238
    %v2387 = vunpack.c.l.b16 %v2239
    %v2388 = vunpack.c.l.b16 %v2240
    %v2389 = vunpack.c.h.b16 %v2240
    %v2390 = vunpack.c.l.b16 %v2241
    %v2391 = vunpack.c.l.b16 %v2242
    %v2392 = vunpack.c.h.b16 %v2242
    %v2393 = vunpack.c.l.b16 %v2243
    %v2394 = vunpack.c.l.b16 %v2244
    %v2395 = vunpack.c.h.b16 %v2244
    %v2396 = vunpack.c.l.b16 %v2245
    %v2397 = vunpack.c.l.b16 %v2246
    %v2398 = vunpack.c.h.b16 %v2246
    %v2399 = vunpack.c.l.b16 %v2247
    %v2400 = vunpack.c.l.b16 %v2248
    %v2401 = vunpack.c.h.b16 %v2248
    %v2402 = vunpack.c.l.b16 %v2249
    %v2403 = vunpack.c.l.b16 %v2250
    %v2404 = vunpack.c.h.b16 %v2250
    %v2405 = vunpack.c.l.b16 %v2251
    %v2406 = vunpack.c.l.b16 %v2252
    %v2407 = vunpack.c.h.b16 %v2252
    %v2408 = vunpack.c.l.b16 %v2253
    %v2409 = vunpack.c.l.b16 %v2254
    %v2410 = vunpack.c.h.b16 %v2254
    %v2411 = vunpack.c.l.b16 %v2255
    %v2412 = vunpack.c.l.b16 %v2256
    %v2413 = vunpack.c.h.b16 %v2256
    %v2414 = vunpack.c.l.b16 %v2257
    %v2415 = vunpack.c.l.b16 %v2258
    %v2416 = vunpack.c.h.b16 %v2258
    %v2417 = vunpack.c.l.b16 %v2259
    %v2418 = vunpack.c.l.b16 %v2260
    %v2419 = vunpack.c.h.b16 %v2260
    %v2420 = vunpack.c.l.b16 %v2261
    %v2421 = vunpack.c.l.b16 %v2262
    %v2422 = vunpack.c.h.b16 %v2262
    %v2423 = vunpack.c.l.b16 %v2263
    %v2424 = vunpack.c.l.b16 %v2264
    %v2425 = vunpack.c.h.b16 %v2264
    %v2426 = vunpack.c.l.b16 %v2265
    %v2427 = vunpack.c.l.b16 %v2266
    %v2428 = vunpack.c.h.b16 %v2266
    %v2429 = vunpack.c.l.b16 %v2267
    %v2430 = vunpack.c.l.b16 %v2268
    %v2431 = vunpack.c.h.b16 %v2268
    %v2432 = vunpack.c.l.b16 %v2269
    %v2433 = vunpack.c.l.b16 %v2270
    %v2434 = vunpack.c.h.b16 %v2270
    %v2435 = vunpack.c.l.b16 %v2271
    %v2436 = vunpack.c.l.b16 %v2272
    %v2437 = vunpack.c.h.b16 %v2272
    %v2438 = vunpack.c.l.b16 %v2273
    %v2439 = vunpack.c.l.b16 %v2274
    %v2440 = vunpack.c.h.b16 %v2274
    %v2441 = vunpack.c.l.b16 %v2275
    %v2442 = vunpack.c.l.b16 %v2276
    %v2443 = vunpack.c.h.b16 %v2276
    %v2444 = vunpack.c.l.b16 %v2277
    %v2445 = vunpack.c.l.b16 %v2278
    %v2446 = vunpack.c.h.b16 %v2278
    %v2447 = vunpack.c.l.b16 %v2279
    %v2448 = vunpack.c.l.b16 %v2280
    %v2449 = vunpack.c.h.b16 %v2280
    %v2450 = vunpack.c.l.b16 %v2281
    %v2451 = vunpack.c.l.b16 %v2282
    %v2452 = vunpack.c.h.b16 %v2282
    %v2453 = vunpack.c.l.b16 %v2283
    %v2454 = vunpack.c.l.b16 %v2284
    %v2455 = vunpack.c.h.b16 %v2284
    %v2456 = vunpack.c.l.b16 %v2285
    %v2457 = vpack.c.b16 %v2364, %v2361
    %v2458 = vpack.c.b16 %v2365, %v2362
    %v2459 = vpack.c.b16 %v2366, %v2363
    %v2460 = vpack.c.b16 %v2370, %v2367
    %v2461 = vpack.c.b16 %v2371, %v2368
    %v2462 = vpack.c.b16 %v2372, %v2369
    %v2463 = vpack.c.b16 %v2376, %v2373
    %v2464 = vpack.c.b16 %v2377, %v2374
    %v2465 = vpack.c.b16 %v2378, %v2375
    %v2466 = vpack.c.b16 %v2382, %v2379
    %v2467 = vpack.c.b16 %v2383, %v2380
    %v2468 = vpack.c.b16 %v2384, %v2381
    %v2469 = vpack.c.b16 %v2388, %v2385
    %v2470 = vpack.c.b16 %v2389, %v2386
    %v2471 = vpack.c.b16 %v2390, %v2387
    %v2472 = vpack.c.b16 %v2394, %v2391
    %v2473 = vpack.c.b16 %v2395, %v2392
    %v2474 = vpack.c.b16 %v2396, %v2393
    %v2475 = vpack.c.b16 %v2400, %v2397
    %v2476 = vpack.c.b16 %v2401, %v2398
    %v2477 = vpack.c.b16 %v2402, %v2399
    %v2478 = vpack.c.b16 %v2406, %v2403
    %v2479 = vpack.c.b16 %v2407, %v2404
    %v2480 = vpack.c.b16 %v2408, %v2405
    %v2481 = vpack.c.b16 %v2412, %v2409
    %v2482 = vpack.c.b16 %v2413, %v2410
    %v2483 = vpack.c.b16 %v2414, %v2411
    %v2484 = vpack.c.b16 %v2418, %v2415
    %v2485 = vpack.c.b16 %v2419, %v2416
    %v2486 = vpack.c.b16 %v2420, %v2417
    %v2487 = vpack.c.b16 %v2424, %v2421
    %v2488 = vpack.c.b16 %v2425, %v2422
    %v2489 = vpack.c.b16 %v2426, %v2423
    %v2490 = vpack.c.b16 %v2430, %v2427
    %v2491 = vpack.c.b16 %v2431, %v2428
    %v2492 = vpack.c.b16 %v2432, %v2429
    %v2493 = vpack.c.b16 %v2436, %v2433
    %v2494 = vpack.c.b16 %v2437, %v2434
    %v2495 = vpack.c.b16 %v2438, %v2435
    %v2496 = vpack.c.b16 %v2442, %v2439
    %v2497 = vpack.c.b16 %v2443, %v2440
    %v2498 = vpack.c.b16 %v2444, %v2441
    %v2499 = vpack.c.b16 %v2448, %v2445
    %v2500 = vpack.c.b16 %v2449, %v2446
    %v2501 = vpack.c.b16 %v2450, %v2447
    %v2502 = vpack.c.b16 %v2454, %v2451
    %v2503 = vpack.c.b16 %v2455, %v2452
    %v2504 = vpack.c.b16 %v2456, %v2453
    %2553 = vmatpush.bf16.msra.mxu0 %v2478
    %2554 = vmatpush.bf16.msra.mxu0 %v2475
    %2555 = vmatpush.bf16.msra.mxu0 %v2472
    %2556 = vmatpush.bf16.msra.mxu0 %v2469
    %2557 = vmatpush.bf16.msra.mxu0 %v2466
    %2558 = vmatpush.bf16.msra.mxu0 %v2463
    %2559 = vmatpush.bf16.msra.mxu0 %v2460
    %2560 = vmatpush.bf16.msra.mxu0 %v2457
    %2561 = vmatmul.bf16.gmra.mxu0 %v2286
    %v2562 = vpop.f32.mrf.mxu0
    %v2563 = vadd.f32 %v2291, %v2562
    %v2564 = vpop.f32.mrf.mxu0
    %v2565 = vadd.f32 %v2291, %v2564
    %2566 = vdwg.mxu0
    %2567 = vmatpush.bf16.msra.mxu0 %v2502
    %2568 = vmatpush.bf16.msra.mxu0 %v2499
    %2569 = vmatpush.bf16.msra.mxu0 %v2496
    %2570 = vmatpush.bf16.msra.mxu0 %v2493
    %2571 = vmatpush.bf16.msra.mxu0 %v2490
    %2572 = vmatpush.bf16.msra.mxu0 %v2487
    %2573 = vmatpush.bf16.msra.mxu0 %v2484
    %2574 = vmatpush.bf16.msra.mxu0 %v2481
    %2575 = vmatmul.bf16.gmra.mxu0 %v2287
    %v2576 = vpop.f32.mrf.mxu0
    %v2577 = vadd.f32 %v2563, %v2576
    %v2578 = vpop.f32.mrf.mxu0
    %v2579 = vadd.f32 %v2565, %v2578
    %2580 = vdwg.mxu0
    %2581 = vmatpush.bf16.msra.mxu0 %v2479
    %2582 = vmatpush.bf16.msra.mxu0 %v2476
    %2583 = vmatpush.bf16.msra.mxu0 %v2473
    %2584 = vmatpush.bf16.msra.mxu0 %v2470
    %2585 = vmatpush.bf16.msra.mxu0 %v2467
    %2586 = vmatpush.bf16.msra.mxu0 %v2464
    %2587 = vmatpush.bf16.msra.mxu0 %v2461
    %2588 = vmatpush.bf16.msra.mxu0 %v2458
    %2589 = vmatmul.bf16.gmra.mxu0 %v2286
    %v2590 = vpop.f32.mrf.mxu0
    %v2591 = vadd.f32 %v2292, %v2590
    %v2592 = vpop.f32.mrf.mxu0
    %v2593 = vadd.f32 %v2292, %v2592
    %2594 = vdwg.mxu0
    %2595 = vmatpush.bf16.msra.mxu0 %v2503
    %2596 = vmatpush.bf16.msra.mxu0 %v2500
    %2597 = vmatpush.bf16.msra.mxu0 %v2497
    %2598 = vmatpush.bf16.msra.mxu0 %v2494
    %2599 = vmatpush.bf16.msra.mxu0 %v2491
    %2600 = vmatpush.bf16.msra.mxu0 %v2488
    %2601 = vmatpush.bf16.msra.mxu0 %v2485
    %2602 = vmatpush.bf16.msra.mxu0 %v2482
    %2603 = vmatmul.bf16.gmra.mxu0 %v2287
    %v2604 = vpop.f32.mrf.mxu0
    %v2605 = vadd.f32 %v2591, %v2604
    %v2606 = vpop.f32.mrf.mxu0
    %v2607 = vadd.f32 %v2593, %v2606
    %2608 = vdwg.mxu0
    %2609 = vmatpush.bf16.msra.mxu0 %v2480
    %2610 = vmatpush.bf16.msra.mxu0 %v2477
    %2611 = vmatpush.bf16.msra.mxu0 %v2474
    %2612 = vmatpush.bf16.msra.mxu0 %v2471
    %2613 = vmatpush.bf16.msra.mxu0 %v2468
    %2614 = vmatpush.bf16.msra.mxu0 %v2465
    %2615 = vmatpush.bf16.msra.mxu0 %v2462
    %2616 = vmatpush.bf16.msra.mxu0 %v2459
    %2617 = vmatmul.bf16.gmra.mxu0 %v2286
    %v2618 = vpop.f32.mrf.mxu0
    %v2619 = vadd.f32 %v2293, %v2618
    %v2620 = vpop.f32.mrf.mxu0
    %v2621 = vadd.f32 %v2293, %v2620
    %2622 = vdwg.mxu0
    %2623 = vmatpush.bf16.msra.mxu0 %v2504
    %2624 = vmatpush.bf16.msra.mxu0 %v2501
    %2625 = vmatpush.bf16.msra.mxu0 %v2498
    %2626 = vmatpush.bf16.msra.mxu0 %v2495
    %2627 = vmatpush.bf16.msra.mxu0 %v2492
    %2628 = vmatpush.bf16.msra.mxu0 %v2489
    %2629 = vmatpush.bf16.msra.mxu0 %v2486
    %2630 = vmatpush.bf16.msra.mxu0 %v2483
    %2631 = vmatmul.bf16.gmra.mxu0 %v2287
    %v2632 = vpop.f32.mrf.mxu0
    %v2633 = vadd.f32 %v2619, %v2632
    %v2634 = vpop.f32.mrf.mxu0
    %v2635 = vadd.f32 %v2621, %v2634
    %2636 = vdwg.mxu0
    %vm2637 = vcmp.ge.f32.partialorder %v1745, 0.0
    %vm2638 = vcmp.ge.f32.partialorder %v2161, 0.0
    %vm2639 = vcmp.ge.f32.partialorder %v2577, 0.0
    %vm2640 = vcmp.ge.f32.partialorder %v1747, 0.0
    %vm2641 = vcmp.ge.f32.partialorder %v2163, 0.0
    %vm2642 = vcmp.ge.f32.partialorder %v2579, 0.0
    %v2643 = vmul.f32 %v1745, 0.25
    %v2644 = vmul.f32 %v2161, 0.25
    %v2645 = vmul.f32 %v2577, 0.25
    %v2646 = vmul.f32 %v1747, 0.25
    %v2647 = vmul.f32 %v2163, 0.25
    %v2648 = vmul.f32 %v2579, 0.25
    %v2649 = vsel %vm2637, %v1745, %v2643
    %v2650 = vsel %vm2638, %v2161, %v2644
    %v2651 = vsel %vm2639, %v2577, %v2645
    %v2652 = vsel %vm2640, %v1747, %v2646
    %v2653 = vsel %vm2641, %v2163, %v2647
    %v2654 = vsel %vm2642, %v2579, %v2648
    %v2655 = vld [vmem:[#allocation7] sm:$0xf]
    %v2656 = vld [vmem:[#allocation7 + $0x4] sm:$0xf]
    %v2657 = vld [vmem:[#allocation7 + $0x8] sm:$0xf]
    %v2658 = vld [vmem:[#allocation7 + $0xc] sm:$0xf]
    %v2659 = vld [vmem:[#allocation7 + $0x10] sm:$0xf]
    %v2660 = vld [vmem:[#allocation7 + $0x14] sm:$0xf]
    %v2661 = vld [vmem:[#allocation7 + $0x18] sm:$0xf]
    %v2662 = vld [vmem:[#allocation7 + $0x1c] sm:$0xf]
    %v2663 = vld [vmem:[#allocation7 + $0x20] sm:$0xf]
    %v2664 = vld [vmem:[#allocation7 + $0x24] sm:$0xf]
    %v2665 = vld [vmem:[#allocation7 + $0x28] sm:$0xf]
    %v2666 = vld [vmem:[#allocation7 + $0x2c] sm:$0xf]
    %v2667 = vld [vmem:[#allocation7 + $0x30] sm:$0xf]
    %v2668 = vld [vmem:[#allocation7 + $0x34] sm:$0xf]
    %v2669 = vld [vmem:[#allocation7 + $0x38] sm:$0xf]
    %v2670 = vld [vmem:[#allocation7 + $0x3c] sm:$0xf]
    %v2671 = vld [vmem:[#allocation7 + $0x40] sm:$0xf]
    %v2672 = vld [vmem:[#allocation7 + $0x44] sm:$0xf]
    %v2673 = vld [vmem:[#allocation7 + $0x48] sm:$0xf]
    %v2674 = vld [vmem:[#allocation7 + $0x4c] sm:$0xf]
    %v2675 = vld [vmem:[#allocation7 + $0x50] sm:$0xf]
    %v2676 = vld [vmem:[#allocation7 + $0x54] sm:$0xf]
    %v2677 = vld [vmem:[#allocation7 + $0x58] sm:$0xf]
    %v2678 = vld [vmem:[#allocation7 + $0x5c] sm:$0xf]
    %v2679 = vld [vmem:[#allocation7 + $0x60] sm:$0xf]
    %v2680 = vld [vmem:[#allocation7 + $0x64] sm:$0xf]
    %v2681 = vld [vmem:[#allocation7 + $0x68] sm:$0xf]
    %v2682 = vld [vmem:[#allocation7 + $0x6c] sm:$0xf]
    %v2683 = vld [vmem:[#allocation7 + $0x70] sm:$0xf]
    %v2684 = vld [vmem:[#allocation7 + $0x74] sm:$0xf]
    %v2685 = vld [vmem:[#allocation7 + $0x78] sm:$0xf]
    %v2686 = vld [vmem:[#allocation7 + $0x7c] sm:$0xf]
    %v2687 = vld [vmem:[#allocation7 + $0x80] sm:$0xf]
    %v2688 = vld [vmem:[#allocation7 + $0x84] sm:$0xf]
    %v2689 = vld [vmem:[#allocation7 + $0x88] sm:$0xf]
    %v2690 = vld [vmem:[#allocation7 + $0x8c] sm:$0xf]
    %v2691 = vld [vmem:[#allocation7 + $0x90] sm:$0xf]
    %v2692 = vld [vmem:[#allocation7 + $0x94] sm:$0xf]
    %v2693 = vld [vmem:[#allocation7 + $0x98] sm:$0xf]
    %v2694 = vld [vmem:[#allocation7 + $0x9c] sm:$0xf]
    %v2695 = vld [vmem:[#allocation7 + $0xa0] sm:$0xf]
    %v2696 = vld [vmem:[#allocation7 + $0xa4] sm:$0xf]
    %v2697 = vld [vmem:[#allocation7 + $0xa8] sm:$0xf]
    %v2698 = vld [vmem:[#allocation7 + $0xac] sm:$0xf]
    %v2699 = vld [vmem:[#allocation7 + $0xb0] sm:$0xf]
    %v2700 = vld [vmem:[#allocation7 + $0xb4] sm:$0xf]
    %v2701 = vld [vmem:[#allocation7 + $0xb8] sm:$0xf]
    %v2702 = vld [vmem:[#allocation7 + $0xbc] sm:$0xf]
    %v2703 = vpack.c.bf16 %v2652, %v2649
    %v2704 = vpack.c.bf16 %v2653, %v2650
    %v2705 = vpack.c.bf16 %v2654, %v2651
    %v2706 = vld [vmem:[%s10] sm:$0x1]
    %v2708 = vperm.slane %v2706, 0
    %v2758 = vunpack.c.l.b16 %v2655
    %v2759 = vunpack.c.l.b16 %v2656
    %v2760 = vunpack.c.l.b16 %v2657
    %v2761 = vunpack.c.l.b16 %v2658
    %v2762 = vunpack.c.l.b16 %v2659
    %v2763 = vunpack.c.l.b16 %v2660
    %v2764 = vunpack.c.l.b16 %v2661
    %v2765 = vunpack.c.l.b16 %v2662
    %v2766 = vunpack.c.l.b16 %v2663
    %v2767 = vunpack.c.l.b16 %v2664
    %v2768 = vunpack.c.l.b16 %v2665
    %v2769 = vunpack.c.l.b16 %v2666
    %v2770 = vunpack.c.l.b16 %v2667
    %v2771 = vunpack.c.l.b16 %v2668
    %v2772 = vunpack.c.l.b16 %v2669
    %v2773 = vunpack.c.l.b16 %v2670
    %v2774 = vunpack.c.l.b16 %v2671
    %v2775 = vunpack.c.l.b16 %v2672
    %v2776 = vunpack.c.l.b16 %v2673
    %v2777 = vunpack.c.l.b16 %v2674
    %v2778 = vunpack.c.l.b16 %v2675
    %v2779 = vunpack.c.l.b16 %v2676
    %v2780 = vunpack.c.l.b16 %v2677
    %v2781 = vunpack.c.l.b16 %v2678
    %v2782 = vunpack.c.l.b16 %v2679
    %v2783 = vunpack.c.l.b16 %v2680
    %v2784 = vunpack.c.l.b16 %v2681
    %v2785 = vunpack.c.l.b16 %v2682
    %v2786 = vunpack.c.l.b16 %v2683
    %v2787 = vunpack.c.l.b16 %v2684
    %v2788 = vunpack.c.l.b16 %v2685
    %v2789 = vunpack.c.l.b16 %v2686
    %v2790 = vunpack.c.l.b16 %v2687
    %v2791 = vunpack.c.l.b16 %v2688
    %v2792 = vunpack.c.l.b16 %v2689
    %v2793 = vunpack.c.l.b16 %v2690
    %v2794 = vunpack.c.l.b16 %v2691
    %v2795 = vunpack.c.l.b16 %v2692
    %v2796 = vunpack.c.l.b16 %v2693
    %v2797 = vunpack.c.l.b16 %v2694
    %v2798 = vunpack.c.l.b16 %v2695
    %v2799 = vunpack.c.l.b16 %v2696
    %v2800 = vunpack.c.l.b16 %v2697
    %v2801 = vunpack.c.l.b16 %v2698
    %v2802 = vunpack.c.l.b16 %v2699
    %v2803 = vunpack.c.l.b16 %v2700
    %v2804 = vunpack.c.l.b16 %v2701
    %v2805 = vunpack.c.l.b16 %v2702
    %v2806 = vpack.c.b16 %v2759, %v2758
    %v2807 = vpack.c.b16 %v2761, %v2760
    %v2808 = vpack.c.b16 %v2763, %v2762
    %v2809 = vpack.c.b16 %v2765, %v2764
    %v2810 = vpack.c.b16 %v2767, %v2766
    %v2811 = vpack.c.b16 %v2769, %v2768
    %v2812 = vpack.c.b16 %v2771, %v2770
    %v2813 = vpack.c.b16 %v2773, %v2772
    %v2814 = vpack.c.b16 %v2775, %v2774
    %v2815 = vpack.c.b16 %v2777, %v2776
    %v2816 = vpack.c.b16 %v2779, %v2778
    %v2817 = vpack.c.b16 %v2781, %v2780
    %v2818 = vpack.c.b16 %v2783, %v2782
    %v2819 = vpack.c.b16 %v2785, %v2784
    %v2820 = vpack.c.b16 %v2787, %v2786
    %v2821 = vpack.c.b16 %v2789, %v2788
    %v2822 = vpack.c.b16 %v2791, %v2790
    %v2823 = vpack.c.b16 %v2793, %v2792
    %v2824 = vpack.c.b16 %v2795, %v2794
    %v2825 = vpack.c.b16 %v2797, %v2796
    %v2826 = vpack.c.b16 %v2799, %v2798
    %v2827 = vpack.c.b16 %v2801, %v2800
    %v2828 = vpack.c.b16 %v2803, %v2802
    %v2829 = vpack.c.b16 %v2805, %v2804
    %2854 = vmatpush.bf16.msra.mxu0 %v2813
    %2855 = vmatpush.bf16.msra.mxu0 %v2812
    %2856 = vmatpush.bf16.msra.mxu0 %v2811
    %2857 = vmatpush.bf16.msra.mxu0 %v2810
    %2858 = vmatpush.bf16.msra.mxu0 %v2809
    %2859 = vmatpush.bf16.msra.mxu0 %v2808
    %2860 = vmatpush.bf16.msra.mxu0 %v2807
    %2861 = vmatpush.bf16.msra.mxu0 %v2806
    %2862 = vmatmul.bf16.gmra.mxu0 %v2703
    %v2863 = vpop.f32.mrf.mxu0
    %v2864 = vadd.f32 %v2708, %v2863
    %v2865 = vpop.f32.mrf.mxu0
    %v2866 = vadd.f32 %v2708, %v2865
    %2867 = vdwg.mxu0
    %2868 = vmatpush.bf16.msra.mxu0 %v2821
    %2869 = vmatpush.bf16.msra.mxu0 %v2820
    %2870 = vmatpush.bf16.msra.mxu0 %v2819
    %2871 = vmatpush.bf16.msra.mxu0 %v2818
    %2872 = vmatpush.bf16.msra.mxu0 %v2817
    %2873 = vmatpush.bf16.msra.mxu0 %v2816
    %2874 = vmatpush.bf16.msra.mxu0 %v2815
    %2875 = vmatpush.bf16.msra.mxu0 %v2814
    %2876 = vmatmul.bf16.gmra.mxu0 %v2704
    %v2877 = vpop.f32.mrf.mxu0
    %v2878 = vadd.f32 %v2864, %v2877
    %v2879 = vpop.f32.mrf.mxu0
    %v2880 = vadd.f32 %v2866, %v2879
    %2881 = vdwg.mxu0
    %2882 = vmatpush.bf16.msra.mxu0 %v2829
    %2883 = vmatpush.bf16.msra.mxu0 %v2828
    %2884 = vmatpush.bf16.msra.mxu0 %v2827
    %2885 = vmatpush.bf16.msra.mxu0 %v2826
    %2886 = vmatpush.bf16.msra.mxu0 %v2825
    %2887 = vmatpush.bf16.msra.mxu0 %v2824
    %2888 = vmatpush.bf16.msra.mxu0 %v2823
    %2889 = vmatpush.bf16.msra.mxu0 %v2822
    %2890 = vmatmul.bf16.gmra.mxu0 %v2705
    %v2891 = vpop.f32.mrf.mxu0
    %v2892 = vadd.f32 %v2878, %v2891
    %v2893 = vpop.f32.mrf.mxu0
    %v2894 = vadd.f32 %v2880, %v2893
    %2895 = vdwg.mxu0
    %vm2896 = vcmp.ge.f32.partialorder %v2892, 0.0
    %vm2897 = vcmp.ge.f32.partialorder %v2894, 0.0
    %v2898 = vmul.f32 %v2892, 0.25
    %v2899 = vmul.f32 %v2894, 0.25
    %v2900 = vsel %vm2896, %v2892, %v2898
    %v2901 = vsel %vm2897, %v2894, %v2899
    %vm2902 = vcmp.ge.f32.partialorder %v1773, 0.0
    %vm2903 = vcmp.ge.f32.partialorder %v2189, 0.0
    %vm2904 = vcmp.ge.f32.partialorder %v2605, 0.0
    %vm2905 = vcmp.ge.f32.partialorder %v1775, 0.0
    %vm2906 = vcmp.ge.f32.partialorder %v2191, 0.0
    %vm2907 = vcmp.ge.f32.partialorder %v2607, 0.0
    %v2908 = vmul.f32 %v1773, 0.25
    %v2909 = vmul.f32 %v2189, 0.25
    %v2910 = vmul.f32 %v2605, 0.25
    %v2911 = vmul.f32 %v1775, 0.25
    %v2912 = vmul.f32 %v2191, 0.25
    %v2913 = vmul.f32 %v2607, 0.25
    %v2914 = vsel %vm2902, %v1773, %v2908
    %v2915 = vsel %vm2903, %v2189, %v2909
    %v2916 = vsel %vm2904, %v2605, %v2910
    %v2917 = vsel %vm2905, %v1775, %v2911
    %v2918 = vsel %vm2906, %v2191, %v2912
    %v2919 = vsel %vm2907, %v2607, %v2913
    %s2920 = scalar_lea.vmem [#allocation7], 192
    %v2921 = vld [vmem:[%s2920] sm:$0xf]
    %v2922 = vld [vmem:[%s2920 + $0x4] sm:$0xf]
    %v2923 = vld [vmem:[%s2920 + $0x8] sm:$0xf]
    %v2924 = vld [vmem:[%s2920 + $0xc] sm:$0xf]
    %v2925 = vld [vmem:[%s2920 + $0x10] sm:$0xf]
    %v2926 = vld [vmem:[%s2920 + $0x14] sm:$0xf]
    %v2927 = vld [vmem:[%s2920 + $0x18] sm:$0xf]
    %v2928 = vld [vmem:[%s2920 + $0x1c] sm:$0xf]
    %v2929 = vld [vmem:[%s2920 + $0x20] sm:$0xf]
    %v2930 = vld [vmem:[%s2920 + $0x24] sm:$0xf]
    %v2931 = vld [vmem:[%s2920 + $0x28] sm:$0xf]
    %v2932 = vld [vmem:[%s2920 + $0x2c] sm:$0xf]
    %v2933 = vld [vmem:[%s2920 + $0x30] sm:$0xf]
    %v2934 = vld [vmem:[%s2920 + $0x34] sm:$0xf]
    %v2935 = vld [vmem:[%s2920 + $0x38] sm:$0xf]
    %v2936 = vld [vmem:[%s2920 + $0x3c] sm:$0xf]
    %v2937 = vld [vmem:[%s2920 + $0x40] sm:$0xf]
    %v2938 = vld [vmem:[%s2920 + $0x44] sm:$0xf]
    %v2939 = vld [vmem:[%s2920 + $0x48] sm:$0xf]
    %v2940 = vld [vmem:[%s2920 + $0x4c] sm:$0xf]
    %v2941 = vld [vmem:[%s2920 + $0x50] sm:$0xf]
    %v2942 = vld [vmem:[%s2920 + $0x54] sm:$0xf]
    %v2943 = vld [vmem:[%s2920 + $0x58] sm:$0xf]
    %v2944 = vld [vmem:[%s2920 + $0x5c] sm:$0xf]
    %v2945 = vld [vmem:[%s2920 + $0x60] sm:$0xf]
    %v2946 = vld [vmem:[%s2920 + $0x64] sm:$0xf]
    %v2947 = vld [vmem:[%s2920 + $0x68] sm:$0xf]
    %v2948 = vld [vmem:[%s2920 + $0x6c] sm:$0xf]
    %v2949 = vld [vmem:[%s2920 + $0x70] sm:$0xf]
    %v2950 = vld [vmem:[%s2920 + $0x74] sm:$0xf]
    %v2951 = vld [vmem:[%s2920 + $0x78] sm:$0xf]
    %v2952 = vld [vmem:[%s2920 + $0x7c] sm:$0xf]
    %v2953 = vld [vmem:[%s2920 + $0x80] sm:$0xf]
    %v2954 = vld [vmem:[%s2920 + $0x84] sm:$0xf]
    %v2955 = vld [vmem:[%s2920 + $0x88] sm:$0xf]
    %v2956 = vld [vmem:[%s2920 + $0x8c] sm:$0xf]
    %v2957 = vld [vmem:[%s2920 + $0x90] sm:$0xf]
    %v2958 = vld [vmem:[%s2920 + $0x94] sm:$0xf]
    %v2959 = vld [vmem:[%s2920 + $0x98] sm:$0xf]
    %v2960 = vld [vmem:[%s2920 + $0x9c] sm:$0xf]
    %v2961 = vld [vmem:[%s2920 + $0xa0] sm:$0xf]
    %v2962 = vld [vmem:[%s2920 + $0xa4] sm:$0xf]
    %v2963 = vld [vmem:[%s2920 + $0xa8] sm:$0xf]
    %v2964 = vld [vmem:[%s2920 + $0xac] sm:$0xf]
    %v2965 = vld [vmem:[%s2920 + $0xb0] sm:$0xf]
    %v2966 = vld [vmem:[%s2920 + $0xb4] sm:$0xf]
    %v2967 = vld [vmem:[%s2920 + $0xb8] sm:$0xf]
    %v2968 = vld [vmem:[%s2920 + $0xbc] sm:$0xf]
    %v2969 = vpack.c.bf16 %v2917, %v2914
    %v2970 = vpack.c.bf16 %v2918, %v2915
    %v2971 = vpack.c.bf16 %v2919, %v2916
    %s2972 = scalar_lea.vmem %s10, 1
    %v2973 = vld [vmem:[%s2972] sm:$0x1]
    %v2975 = vperm.slane %v2973, 0
    %v3025 = vunpack.c.l.b16 %v2921
    %v3026 = vunpack.c.l.b16 %v2922
    %v3027 = vunpack.c.l.b16 %v2923
    %v3028 = vunpack.c.l.b16 %v2924
    %v3029 = vunpack.c.l.b16 %v2925
    %v3030 = vunpack.c.l.b16 %v2926
    %v3031 = vunpack.c.l.b16 %v2927
    %v3032 = vunpack.c.l.b16 %v2928
    %v3033 = vunpack.c.l.b16 %v2929
    %v3034 = vunpack.c.l.b16 %v2930
    %v3035 = vunpack.c.l.b16 %v2931
    %v3036 = vunpack.c.l.b16 %v2932
    %v3037 = vunpack.c.l.b16 %v2933
    %v3038 = vunpack.c.l.b16 %v2934
    %v3039 = vunpack.c.l.b16 %v2935
    %v3040 = vunpack.c.l.b16 %v2936
    %v3041 = vunpack.c.l.b16 %v2937
    %v3042 = vunpack.c.l.b16 %v2938
    %v3043 = vunpack.c.l.b16 %v2939
    %v3044 = vunpack.c.l.b16 %v2940
    %v3045 = vunpack.c.l.b16 %v2941
    %v3046 = vunpack.c.l.b16 %v2942
    %v3047 = vunpack.c.l.b16 %v2943
    %v3048 = vunpack.c.l.b16 %v2944
    %v3049 = vunpack.c.l.b16 %v2945
    %v3050 = vunpack.c.l.b16 %v2946
    %v3051 = vunpack.c.l.b16 %v2947
    %v3052 = vunpack.c.l.b16 %v2948
    %v3053 = vunpack.c.l.b16 %v2949
    %v3054 = vunpack.c.l.b16 %v2950
    %v3055 = vunpack.c.l.b16 %v2951
    %v3056 = vunpack.c.l.b16 %v2952
    %v3057 = vunpack.c.l.b16 %v2953
    %v3058 = vunpack.c.l.b16 %v2954
    %v3059 = vunpack.c.l.b16 %v2955
    %v3060 = vunpack.c.l.b16 %v2956
    %v3061 = vunpack.c.l.b16 %v2957
    %v3062 = vunpack.c.l.b16 %v2958
    %v3063 = vunpack.c.l.b16 %v2959
    %v3064 = vunpack.c.l.b16 %v2960
    %v3065 = vunpack.c.l.b16 %v2961
    %v3066 = vunpack.c.l.b16 %v2962
    %v3067 = vunpack.c.l.b16 %v2963
    %v3068 = vunpack.c.l.b16 %v2964
    %v3069 = vunpack.c.l.b16 %v2965
    %v3070 = vunpack.c.l.b16 %v2966
    %v3071 = vunpack.c.l.b16 %v2967
    %v3072 = vunpack.c.l.b16 %v2968
    %v3073 = vpack.c.b16 %v3026, %v3025
    %v3074 = vpack.c.b16 %v3028, %v3027
    %v3075 = vpack.c.b16 %v3030, %v3029
    %v3076 = vpack.c.b16 %v3032, %v3031
    %v3077 = vpack.c.b16 %v3034, %v3033
    %v3078 = vpack.c.b16 %v3036, %v3035
    %v3079 = vpack.c.b16 %v3038, %v3037
    %v3080 = vpack.c.b16 %v3040, %v3039
    %v3081 = vpack.c.b16 %v3042, %v3041
    %v3082 = vpack.c.b16 %v3044, %v3043
    %v3083 = vpack.c.b16 %v3046, %v3045
    %v3084 = vpack.c.b16 %v3048, %v3047
    %v3085 = vpack.c.b16 %v3050, %v3049
    %v3086 = vpack.c.b16 %v3052, %v3051
    %v3087 = vpack.c.b16 %v3054, %v3053
    %v3088 = vpack.c.b16 %v3056, %v3055
    %v3089 = vpack.c.b16 %v3058, %v3057
    %v3090 = vpack.c.b16 %v3060, %v3059
    %v3091 = vpack.c.b16 %v3062, %v3061
    %v3092 = vpack.c.b16 %v3064, %v3063
    %v3093 = vpack.c.b16 %v3066, %v3065
    %v3094 = vpack.c.b16 %v3068, %v3067
    %v3095 = vpack.c.b16 %v3070, %v3069
    %v3096 = vpack.c.b16 %v3072, %v3071
    %3121 = vmatpush.bf16.msra.mxu0 %v3080
    %3122 = vmatpush.bf16.msra.mxu0 %v3079
    %3123 = vmatpush.bf16.msra.mxu0 %v3078
    %3124 = vmatpush.bf16.msra.mxu0 %v3077
    %3125 = vmatpush.bf16.msra.mxu0 %v3076
    %3126 = vmatpush.bf16.msra.mxu0 %v3075
    %3127 = vmatpush.bf16.msra.mxu0 %v3074
    %3128 = vmatpush.bf16.msra.mxu0 %v3073
    %3129 = vmatmul.bf16.gmra.mxu0 %v2969
    %v3130 = vpop.f32.mrf.mxu0
    %v3131 = vadd.f32 %v2975, %v3130
    %v3132 = vpop.f32.mrf.mxu0
    %v3133 = vadd.f32 %v2975, %v3132
    %3134 = vdwg.mxu0
    %3135 = vmatpush.bf16.msra.mxu0 %v3088
    %3136 = vmatpush.bf16.msra.mxu0 %v3087
    %3137 = vmatpush.bf16.msra.mxu0 %v3086
    %3138 = vmatpush.bf16.msra.mxu0 %v3085
    %3139 = vmatpush.bf16.msra.mxu0 %v3084
    %3140 = vmatpush.bf16.msra.mxu0 %v3083
    %3141 = vmatpush.bf16.msra.mxu0 %v3082
    %3142 = vmatpush.bf16.msra.mxu0 %v3081
    %3143 = vmatmul.bf16.gmra.mxu0 %v2970
    %v3144 = vpop.f32.mrf.mxu0
    %v3145 = vadd.f32 %v3131, %v3144
    %v3146 = vpop.f32.mrf.mxu0
    %v3147 = vadd.f32 %v3133, %v3146
    %3148 = vdwg.mxu0
    %3149 = vmatpush.bf16.msra.mxu0 %v3096
    %3150 = vmatpush.bf16.msra.mxu0 %v3095
    %3151 = vmatpush.bf16.msra.mxu0 %v3094
    %3152 = vmatpush.bf16.msra.mxu0 %v3093
    %3153 = vmatpush.bf16.msra.mxu0 %v3092
    %3154 = vmatpush.bf16.msra.mxu0 %v3091
    %3155 = vmatpush.bf16.msra.mxu0 %v3090
    %3156 = vmatpush.bf16.msra.mxu0 %v3089
    %3157 = vmatmul.bf16.gmra.mxu0 %v2971
    %v3158 = vpop.f32.mrf.mxu0
    %v3159 = vadd.f32 %v3145, %v3158
    %v3160 = vpop.f32.mrf.mxu0
    %v3161 = vadd.f32 %v3147, %v3160
    %3162 = vdwg.mxu0
    %vm3163 = vcmp.ge.f32.partialorder %v3159, 0.0
    %vm3164 = vcmp.ge.f32.partialorder %v3161, 0.0
    %v3165 = vmul.f32 %v3159, 0.25
    %v3166 = vmul.f32 %v3161, 0.25
    %v3167 = vsel %vm3163, %v3159, %v3165
    %v3168 = vsel %vm3164, %v3161, %v3166
    %vm3169 = vcmp.ge.f32.partialorder %v1801, 0.0
    %vm3170 = vcmp.ge.f32.partialorder %v2217, 0.0
    %vm3171 = vcmp.ge.f32.partialorder %v2633, 0.0
    %vm3172 = vcmp.ge.f32.partialorder %v1803, 0.0
    %vm3173 = vcmp.ge.f32.partialorder %v2219, 0.0
    %vm3174 = vcmp.ge.f32.partialorder %v2635, 0.0
    %v3175 = vmul.f32 %v1801, 0.25
    %v3176 = vmul.f32 %v2217, 0.25
    %v3177 = vmul.f32 %v2633, 0.25
    %v3178 = vmul.f32 %v1803, 0.25
    %v3179 = vmul.f32 %v2219, 0.25
    %v3180 = vmul.f32 %v2635, 0.25
    %v3181 = vsel %vm3169, %v1801, %v3175
    %v3182 = vsel %vm3170, %v2217, %v3176
    %v3183 = vsel %vm3171, %v2633, %v3177
    %v3184 = vsel %vm3172, %v1803, %v3178
    %v3185 = vsel %vm3173, %v2219, %v3179
    %v3186 = vsel %vm3174, %v2635, %v3180
    %s3187 = scalar_lea.vmem [#allocation7], 384
    %v3188 = vld [vmem:[%s3187] sm:$0xf]
    %v3189 = vld [vmem:[%s3187 + $0x4] sm:$0xf]
    %v3190 = vld [vmem:[%s3187 + $0x8] sm:$0xf]
    %v3191 = vld [vmem:[%s3187 + $0xc] sm:$0xf]
    %v3192 = vld [vmem:[%s3187 + $0x10] sm:$0xf]
    %v3193 = vld [vmem:[%s3187 + $0x14] sm:$0xf]
    %v3194 = vld [vmem:[%s3187 + $0x18] sm:$0xf]
    %v3195 = vld [vmem:[%s3187 + $0x1c] sm:$0xf]
    %v3196 = vld [vmem:[%s3187 + $0x20] sm:$0xf]
    %v3197 = vld [vmem:[%s3187 + $0x24] sm:$0xf]
    %v3198 = vld [vmem:[%s3187 + $0x28] sm:$0xf]
    %v3199 = vld [vmem:[%s3187 + $0x2c] sm:$0xf]
    %v3200 = vld [vmem:[%s3187 + $0x30] sm:$0xf]
    %v3201 = vld [vmem:[%s3187 + $0x34] sm:$0xf]
    %v3202 = vld [vmem:[%s3187 + $0x38] sm:$0xf]
    %v3203 = vld [vmem:[%s3187 + $0x3c] sm:$0xf]
    %v3204 = vld [vmem:[%s3187 + $0x40] sm:$0xf]
    %v3205 = vld [vmem:[%s3187 + $0x44] sm:$0xf]
    %v3206 = vld [vmem:[%s3187 + $0x48] sm:$0xf]
    %v3207 = vld [vmem:[%s3187 + $0x4c] sm:$0xf]
    %v3208 = vld [vmem:[%s3187 + $0x50] sm:$0xf]
    %v3209 = vld [vmem:[%s3187 + $0x54] sm:$0xf]
    %v3210 = vld [vmem:[%s3187 + $0x58] sm:$0xf]
    %v3211 = vld [vmem:[%s3187 + $0x5c] sm:$0xf]
    %v3212 = vld [vmem:[%s3187 + $0x60] sm:$0xf]
    %v3213 = vld [vmem:[%s3187 + $0x64] sm:$0xf]
    %v3214 = vld [vmem:[%s3187 + $0x68] sm:$0xf]
    %v3215 = vld [vmem:[%s3187 + $0x6c] sm:$0xf]
    %v3216 = vld [vmem:[%s3187 + $0x70] sm:$0xf]
    %v3217 = vld [vmem:[%s3187 + $0x74] sm:$0xf]
    %v3218 = vld [vmem:[%s3187 + $0x78] sm:$0xf]
    %v3219 = vld [vmem:[%s3187 + $0x7c] sm:$0xf]
    %v3220 = vld [vmem:[%s3187 + $0x80] sm:$0xf]
    %v3221 = vld [vmem:[%s3187 + $0x84] sm:$0xf]
    %v3222 = vld [vmem:[%s3187 + $0x88] sm:$0xf]
    %v3223 = vld [vmem:[%s3187 + $0x8c] sm:$0xf]
    %v3224 = vld [vmem:[%s3187 + $0x90] sm:$0xf]
    %v3225 = vld [vmem:[%s3187 + $0x94] sm:$0xf]
    %v3226 = vld [vmem:[%s3187 + $0x98] sm:$0xf]
    %v3227 = vld [vmem:[%s3187 + $0x9c] sm:$0xf]
    %v3228 = vld [vmem:[%s3187 + $0xa0] sm:$0xf]
    %v3229 = vld [vmem:[%s3187 + $0xa4] sm:$0xf]
    %v3230 = vld [vmem:[%s3187 + $0xa8] sm:$0xf]
    %v3231 = vld [vmem:[%s3187 + $0xac] sm:$0xf]
    %v3232 = vld [vmem:[%s3187 + $0xb0] sm:$0xf]
    %v3233 = vld [vmem:[%s3187 + $0xb4] sm:$0xf]
    %v3234 = vld [vmem:[%s3187 + $0xb8] sm:$0xf]
    %v3235 = vld [vmem:[%s3187 + $0xbc] sm:$0xf]
    %v3236 = vpack.c.bf16 %v3184, %v3181
    %v3237 = vpack.c.bf16 %v3185, %v3182
    %v3238 = vpack.c.bf16 %v3186, %v3183
    %s3239 = scalar_lea.vmem %s10, 2
    %v3240 = vld [vmem:[%s3239] sm:$0x1]
    %v3242 = vperm.slane %v3240, 0
    %v3292 = vunpack.c.l.b16 %v3188
    %v3293 = vunpack.c.l.b16 %v3189
    %v3294 = vunpack.c.l.b16 %v3190
    %v3295 = vunpack.c.l.b16 %v3191
    %v3296 = vunpack.c.l.b16 %v3192
    %v3297 = vunpack.c.l.b16 %v3193
    %v3298 = vunpack.c.l.b16 %v3194
    %v3299 = vunpack.c.l.b16 %v3195
    %v3300 = vunpack.c.l.b16 %v3196
    %v3301 = vunpack.c.l.b16 %v3197
    %v3302 = vunpack.c.l.b16 %v3198
    %v3303 = vunpack.c.l.b16 %v3199
    %v3304 = vunpack.c.l.b16 %v3200
    %v3305 = vunpack.c.l.b16 %v3201
    %v3306 = vunpack.c.l.b16 %v3202
    %v3307 = vunpack.c.l.b16 %v3203
    %v3308 = vunpack.c.l.b16 %v3204
    %v3309 = vunpack.c.l.b16 %v3205
    %v3310 = vunpack.c.l.b16 %v3206
    %v3311 = vunpack.c.l.b16 %v3207
    %v3312 = vunpack.c.l.b16 %v3208
    %v3313 = vunpack.c.l.b16 %v3209
    %v3314 = vunpack.c.l.b16 %v3210
    %v3315 = vunpack.c.l.b16 %v3211
    %v3316 = vunpack.c.l.b16 %v3212
    %v3317 = vunpack.c.l.b16 %v3213
    %v3318 = vunpack.c.l.b16 %v3214
    %v3319 = vunpack.c.l.b16 %v3215
    %v3320 = vunpack.c.l.b16 %v3216
    %v3321 = vunpack.c.l.b16 %v3217
    %v3322 = vunpack.c.l.b16 %v3218
    %v3323 = vunpack.c.l.b16 %v3219
    %v3324 = vunpack.c.l.b16 %v3220
    %v3325 = vunpack.c.l.b16 %v3221
    %v3326 = vunpack.c.l.b16 %v3222
    %v3327 = vunpack.c.l.b16 %v3223
    %v3328 = vunpack.c.l.b16 %v3224
    %v3329 = vunpack.c.l.b16 %v3225
    %v3330 = vunpack.c.l.b16 %v3226
    %v3331 = vunpack.c.l.b16 %v3227
    %v3332 = vunpack.c.l.b16 %v3228
    %v3333 = vunpack.c.l.b16 %v3229
    %v3334 = vunpack.c.l.b16 %v3230
    %v3335 = vunpack.c.l.b16 %v3231
    %v3336 = vunpack.c.l.b16 %v3232
    %v3337 = vunpack.c.l.b16 %v3233
    %v3338 = vunpack.c.l.b16 %v3234
    %v3339 = vunpack.c.l.b16 %v3235
    %v3340 = vpack.c.b16 %v3293, %v3292
    %v3341 = vpack.c.b16 %v3295, %v3294
    %v3342 = vpack.c.b16 %v3297, %v3296
    %v3343 = vpack.c.b16 %v3299, %v3298
    %v3344 = vpack.c.b16 %v3301, %v3300
    %v3345 = vpack.c.b16 %v3303, %v3302
    %v3346 = vpack.c.b16 %v3305, %v3304
    %v3347 = vpack.c.b16 %v3307, %v3306
    %v3348 = vpack.c.b16 %v3309, %v3308
    %v3349 = vpack.c.b16 %v3311, %v3310
    %v3350 = vpack.c.b16 %v3313, %v3312
    %v3351 = vpack.c.b16 %v3315, %v3314
    %v3352 = vpack.c.b16 %v3317, %v3316
    %v3353 = vpack.c.b16 %v3319, %v3318
    %v3354 = vpack.c.b16 %v3321, %v3320
    %v3355 = vpack.c.b16 %v3323, %v3322
    %v3356 = vpack.c.b16 %v3325, %v3324
    %v3357 = vpack.c.b16 %v3327, %v3326
    %v3358 = vpack.c.b16 %v3329, %v3328
    %v3359 = vpack.c.b16 %v3331, %v3330
    %v3360 = vpack.c.b16 %v3333, %v3332
    %v3361 = vpack.c.b16 %v3335, %v3334
    %v3362 = vpack.c.b16 %v3337, %v3336
    %v3363 = vpack.c.b16 %v3339, %v3338
    %3388 = vmatpush.bf16.msra.mxu0 %v3347
    %3389 = vmatpush.bf16.msra.mxu0 %v3346
    %3390 = vmatpush.bf16.msra.mxu0 %v3345
    %3391 = vmatpush.bf16.msra.mxu0 %v3344
    %3392 = vmatpush.bf16.msra.mxu0 %v3343
    %3393 = vmatpush.bf16.msra.mxu0 %v3342
    %3394 = vmatpush.bf16.msra.mxu0 %v3341
    %3395 = vmatpush.bf16.msra.mxu0 %v3340
    %3396 = vmatmul.bf16.gmra.mxu0 %v3236
    %v3397 = vpop.f32.mrf.mxu0
    %v3398 = vadd.f32 %v3242, %v3397
    %v3399 = vpop.f32.mrf.mxu0
    %v3400 = vadd.f32 %v3242, %v3399
    %3401 = vdwg.mxu0
    %3402 = vmatpush.bf16.msra.mxu0 %v3355
    %3403 = vmatpush.bf16.msra.mxu0 %v3354
    %3404 = vmatpush.bf16.msra.mxu0 %v3353
    %3405 = vmatpush.bf16.msra.mxu0 %v3352
    %3406 = vmatpush.bf16.msra.mxu0 %v3351
    %3407 = vmatpush.bf16.msra.mxu0 %v3350
    %3408 = vmatpush.bf16.msra.mxu0 %v3349
    %3409 = vmatpush.bf16.msra.mxu0 %v3348
    %3410 = vmatmul.bf16.gmra.mxu0 %v3237
    %v3411 = vpop.f32.mrf.mxu0
    %v3412 = vadd.f32 %v3398, %v3411
    %v3413 = vpop.f32.mrf.mxu0
    %v3414 = vadd.f32 %v3400, %v3413
    %3415 = vdwg.mxu0
    %3416 = vmatpush.bf16.msra.mxu0 %v3363
    %3417 = vmatpush.bf16.msra.mxu0 %v3362
    %3418 = vmatpush.bf16.msra.mxu0 %v3361
    %3419 = vmatpush.bf16.msra.mxu0 %v3360
    %3420 = vmatpush.bf16.msra.mxu0 %v3359
    %3421 = vmatpush.bf16.msra.mxu0 %v3358
    %3422 = vmatpush.bf16.msra.mxu0 %v3357
    %3423 = vmatpush.bf16.msra.mxu0 %v3356
    %3424 = vmatmul.bf16.gmra.mxu0 %v3238
    %v3425 = vpop.f32.mrf.mxu0
    %v3426 = vadd.f32 %v3412, %v3425
    %v3427 = vpop.f32.mrf.mxu0
    %v3428 = vadd.f32 %v3414, %v3427
    %3429 = vdwg.mxu0
    %vm3430 = vcmp.ge.f32.partialorder %v3426, 0.0
    %vm3431 = vcmp.ge.f32.partialorder %v3428, 0.0
    %v3432 = vmul.f32 %v3426, 0.25
    %v3433 = vmul.f32 %v3428, 0.25
    %v3434 = vsel %vm3430, %v3426, %v3432
    %v3435 = vsel %vm3431, %v3428, %v3433
    %v3436 = vld [vmem:[#allocation9] sm:$0xf]
    %v3437 = vld [vmem:[#allocation9 + $0x4] sm:$0xf]
    %v3438 = vld [vmem:[#allocation9 + $0x8] sm:$0xf]
    %v3439 = vld [vmem:[#allocation9 + $0xc] sm:$0xf]
    %v3440 = vld [vmem:[#allocation9 + $0x10] sm:$0xf]
    %v3441 = vld [vmem:[#allocation9 + $0x14] sm:$0xf]
    %v3442 = vld [vmem:[#allocation9 + $0x18] sm:$0xf]
    %v3443 = vld [vmem:[#allocation9 + $0x1c] sm:$0xf]
    %v3444 = vld [vmem:[#allocation9 + $0x20] sm:$0xf]
    %v3445 = vld [vmem:[#allocation9 + $0x24] sm:$0xf]
    %v3446 = vld [vmem:[#allocation9 + $0x28] sm:$0xf]
    %v3447 = vld [vmem:[#allocation9 + $0x2c] sm:$0xf]
    %v3448 = vld [vmem:[#allocation9 + $0x30] sm:$0xf]
    %v3449 = vld [vmem:[#allocation9 + $0x34] sm:$0xf]
    %v3450 = vld [vmem:[#allocation9 + $0x38] sm:$0xf]
    %v3451 = vld [vmem:[#allocation9 + $0x3c] sm:$0xf]
    %v3452 = vld [vmem:[#allocation9 + $0x40] sm:$0xf]
    %v3453 = vld [vmem:[#allocation9 + $0x44] sm:$0xf]
    %v3454 = vld [vmem:[#allocation9 + $0x48] sm:$0xf]
    %v3455 = vld [vmem:[#allocation9 + $0x4c] sm:$0xf]
    %v3456 = vld [vmem:[#allocation9 + $0x50] sm:$0xf]
    %v3457 = vld [vmem:[#allocation9 + $0x54] sm:$0xf]
    %v3458 = vld [vmem:[#allocation9 + $0x58] sm:$0xf]
    %v3459 = vld [vmem:[#allocation9 + $0x5c] sm:$0xf]
    %v3460 = vld [vmem:[#allocation9 + $0x60] sm:$0xf]
    %v3461 = vld [vmem:[#allocation9 + $0x64] sm:$0xf]
    %v3462 = vld [vmem:[#allocation9 + $0x68] sm:$0xf]
    %v3463 = vld [vmem:[#allocation9 + $0x6c] sm:$0xf]
    %v3464 = vld [vmem:[#allocation9 + $0x70] sm:$0xf]
    %v3465 = vld [vmem:[#allocation9 + $0x74] sm:$0xf]
    %v3466 = vld [vmem:[#allocation9 + $0x78] sm:$0xf]
    %v3467 = vld [vmem:[#allocation9 + $0x7c] sm:$0xf]
    %v3468 = vld [vmem:[#allocation9 + $0x80] sm:$0xf]
    %v3469 = vld [vmem:[#allocation9 + $0x84] sm:$0xf]
    %v3470 = vld [vmem:[#allocation9 + $0x88] sm:$0xf]
    %v3471 = vld [vmem:[#allocation9 + $0x8c] sm:$0xf]
    %v3472 = vld [vmem:[#allocation9 + $0x90] sm:$0xf]
    %v3473 = vld [vmem:[#allocation9 + $0x94] sm:$0xf]
    %v3474 = vld [vmem:[#allocation9 + $0x98] sm:$0xf]
    %v3475 = vld [vmem:[#allocation9 + $0x9c] sm:$0xf]
    %v3476 = vld [vmem:[#allocation9 + $0xa0] sm:$0xf]
    %v3477 = vld [vmem:[#allocation9 + $0xa4] sm:$0xf]
    %v3478 = vld [vmem:[#allocation9 + $0xa8] sm:$0xf]
    %v3479 = vld [vmem:[#allocation9 + $0xac] sm:$0xf]
    %v3480 = vld [vmem:[#allocation9 + $0xb0] sm:$0xf]
    %v3481 = vld [vmem:[#allocation9 + $0xb4] sm:$0xf]
    %v3482 = vld [vmem:[#allocation9 + $0xb8] sm:$0xf]
    %v3483 = vld [vmem:[#allocation9 + $0xbc] sm:$0xf]
    %v3484 = vpack.c.bf16 %v2901, %v2900
    %v3485 = vpack.c.bf16 %v3168, %v3167
    %v3486 = vpack.c.bf16 %v3435, %v3434
    %v3487 = vld [vmem:[%s12] sm:$0x1]
    %v3489 = vperm.slane %v3487, 0
    %v3539 = vunpack.c.l.b16 %v3436
    %v3540 = vunpack.c.l.b16 %v3437
    %v3541 = vunpack.c.l.b16 %v3438
    %v3542 = vunpack.c.l.b16 %v3439
    %v3543 = vunpack.c.l.b16 %v3440
    %v3544 = vunpack.c.l.b16 %v3441
    %v3545 = vunpack.c.l.b16 %v3442
    %v3546 = vunpack.c.l.b16 %v3443
    %v3547 = vunpack.c.l.b16 %v3444
    %v3548 = vunpack.c.l.b16 %v3445
    %v3549 = vunpack.c.l.b16 %v3446
    %v3550 = vunpack.c.l.b16 %v3447
    %v3551 = vunpack.c.l.b16 %v3448
    %v3552 = vunpack.c.l.b16 %v3449
    %v3553 = vunpack.c.l.b16 %v3450
    %v3554 = vunpack.c.l.b16 %v3451
    %v3555 = vunpack.c.l.b16 %v3452
    %v3556 = vunpack.c.l.b16 %v3453
    %v3557 = vunpack.c.l.b16 %v3454
    %v3558 = vunpack.c.l.b16 %v3455
    %v3559 = vunpack.c.l.b16 %v3456
    %v3560 = vunpack.c.l.b16 %v3457
    %v3561 = vunpack.c.l.b16 %v3458
    %v3562 = vunpack.c.l.b16 %v3459
    %v3563 = vunpack.c.l.b16 %v3460
    %v3564 = vunpack.c.l.b16 %v3461
    %v3565 = vunpack.c.l.b16 %v3462
    %v3566 = vunpack.c.l.b16 %v3463
    %v3567 = vunpack.c.l.b16 %v3464
    %v3568 = vunpack.c.l.b16 %v3465
    %v3569 = vunpack.c.l.b16 %v3466
    %v3570 = vunpack.c.l.b16 %v3467
    %v3571 = vunpack.c.l.b16 %v3468
    %v3572 = vunpack.c.l.b16 %v3469
    %v3573 = vunpack.c.l.b16 %v3470
    %v3574 = vunpack.c.l.b16 %v3471
    %v3575 = vunpack.c.l.b16 %v3472
    %v3576 = vunpack.c.l.b16 %v3473
    %v3577 = vunpack.c.l.b16 %v3474
    %v3578 = vunpack.c.l.b16 %v3475
    %v3579 = vunpack.c.l.b16 %v3476
    %v3580 = vunpack.c.l.b16 %v3477
    %v3581 = vunpack.c.l.b16 %v3478
    %v3582 = vunpack.c.l.b16 %v3479
    %v3583 = vunpack.c.l.b16 %v3480
    %v3584 = vunpack.c.l.b16 %v3481
    %v3585 = vunpack.c.l.b16 %v3482
    %v3586 = vunpack.c.l.b16 %v3483
    %v3587 = vpack.c.b16 %v3540, %v3539
    %v3588 = vpack.c.b16 %v3542, %v3541
    %v3589 = vpack.c.b16 %v3544, %v3543
    %v3590 = vpack.c.b16 %v3546, %v3545
    %v3591 = vpack.c.b16 %v3548, %v3547
    %v3592 = vpack.c.b16 %v3550, %v3549
    %v3593 = vpack.c.b16 %v3552, %v3551
    %v3594 = vpack.c.b16 %v3554, %v3553
    %v3595 = vpack.c.b16 %v3556, %v3555
    %v3596 = vpack.c.b16 %v3558, %v3557
    %v3597 = vpack.c.b16 %v3560, %v3559
    %v3598 = vpack.c.b16 %v3562, %v3561
    %v3599 = vpack.c.b16 %v3564, %v3563
    %v3600 = vpack.c.b16 %v3566, %v3565
    %v3601 = vpack.c.b16 %v3568, %v3567
    %v3602 = vpack.c.b16 %v3570, %v3569
    %v3603 = vpack.c.b16 %v3572, %v3571
    %v3604 = vpack.c.b16 %v3574, %v3573
    %v3605 = vpack.c.b16 %v3576, %v3575
    %v3606 = vpack.c.b16 %v3578, %v3577
    %v3607 = vpack.c.b16 %v3580, %v3579
    %v3608 = vpack.c.b16 %v3582, %v3581
    %v3609 = vpack.c.b16 %v3584, %v3583
    %v3610 = vpack.c.b16 %v3586, %v3585
    %3635 = vmatpush.bf16.msra.mxu0 %v3594
    %3636 = vmatpush.bf16.msra.mxu0 %v3593
    %3637 = vmatpush.bf16.msra.mxu0 %v3592
    %3638 = vmatpush.bf16.msra.mxu0 %v3591
    %3639 = vmatpush.bf16.msra.mxu0 %v3590
    %3640 = vmatpush.bf16.msra.mxu0 %v3589
    %3641 = vmatpush.bf16.msra.mxu0 %v3588
    %3642 = vmatpush.bf16.msra.mxu0 %v3587
    %3643 = vmatmul.bf16.gmra.mxu0 %v3484
    %v3644 = vpop.f32.mrf.mxu0
    %v3645 = vadd.f32 %v3489, %v3644
    %v3646 = vpop.f32.mrf.mxu0
    %v3647 = vadd.f32 %v3489, %v3646
    %3648 = vdwg.mxu0
    %3649 = vmatpush.bf16.msra.mxu0 %v3602
    %3650 = vmatpush.bf16.msra.mxu0 %v3601
    %3651 = vmatpush.bf16.msra.mxu0 %v3600
    %3652 = vmatpush.bf16.msra.mxu0 %v3599
    %3653 = vmatpush.bf16.msra.mxu0 %v3598
    %3654 = vmatpush.bf16.msra.mxu0 %v3597
    %3655 = vmatpush.bf16.msra.mxu0 %v3596
    %3656 = vmatpush.bf16.msra.mxu0 %v3595
    %3657 = vmatmul.bf16.gmra.mxu0 %v3485
    %v3658 = vpop.f32.mrf.mxu0
    %v3659 = vadd.f32 %v3645, %v3658
    %v3660 = vpop.f32.mrf.mxu0
    %v3661 = vadd.f32 %v3647, %v3660
    %3662 = vdwg.mxu0
    %3663 = vmatpush.bf16.msra.mxu0 %v3610
    %3664 = vmatpush.bf16.msra.mxu0 %v3609
    %3665 = vmatpush.bf16.msra.mxu0 %v3608
    %3666 = vmatpush.bf16.msra.mxu0 %v3607
    %3667 = vmatpush.bf16.msra.mxu0 %v3606
    %3668 = vmatpush.bf16.msra.mxu0 %v3605
    %3669 = vmatpush.bf16.msra.mxu0 %v3604
    %3670 = vmatpush.bf16.msra.mxu0 %v3603
    %3671 = vmatmul.bf16.gmra.mxu0 %v3486
    %v3672 = vpop.f32.mrf.mxu0
    %v3673 = vadd.f32 %v3659, %v3672
    %v3674 = vpop.f32.mrf.mxu0
    %v3675 = vadd.f32 %v3661, %v3674
    %3676 = vdwg.mxu0
    %vm3677 = vcmp.ge.f32.partialorder %v3673, 0.0
    %vm3678 = vcmp.ge.f32.partialorder %v3675, 0.0
    %v3679 = vmul.f32 %v3673, 0.25
    %v3680 = vmul.f32 %v3675, 0.25
    %v3681 = vsel %vm3677, %v3673, %v3679
    %v3682 = vsel %vm3678, %v3675, %v3680
    %v3683 = vld [vmem:[#allocation10] sm:$0xf]
    %v3684 = vld [vmem:[#allocation10 + $0x4] sm:$0xf]
    %v3685 = vld [vmem:[#allocation10 + $0x8] sm:$0xf]
    %v3686 = vld [vmem:[#allocation10 + $0xc] sm:$0xf]
    %v3687 = vld [vmem:[#allocation10 + $0x10] sm:$0xf]
    %v3688 = vld [vmem:[#allocation10 + $0x14] sm:$0xf]
    %v3689 = vld [vmem:[#allocation10 + $0x18] sm:$0xf]
    %v3690 = vld [vmem:[#allocation10 + $0x1c] sm:$0xf]
    %v3691 = vld [vmem:[#allocation10 + $0x20] sm:$0xf]
    %v3692 = vld [vmem:[#allocation10 + $0x24] sm:$0xf]
    %v3693 = vld [vmem:[#allocation10 + $0x28] sm:$0xf]
    %v3694 = vld [vmem:[#allocation10 + $0x2c] sm:$0xf]
    %v3695 = vld [vmem:[#allocation10 + $0x30] sm:$0xf]
    %v3696 = vld [vmem:[#allocation10 + $0x34] sm:$0xf]
    %v3697 = vld [vmem:[#allocation10 + $0x38] sm:$0xf]
    %v3698 = vld [vmem:[#allocation10 + $0x3c] sm:$0xf]
    %v3699 = vpack.c.bf16 %v3682, %v3681
    %v3700 = vld [vmem:[%s14] sm:$0x1]
    %v3702 = vperm.slane %v3700, 0
    %v3720 = vunpack.c.l.b16 %v3683
    %v3721 = vunpack.c.l.b16 %v3684
    %v3722 = vunpack.c.l.b16 %v3685
    %v3723 = vunpack.c.l.b16 %v3686
    %v3724 = vunpack.c.l.b16 %v3687
    %v3725 = vunpack.c.l.b16 %v3688
    %v3726 = vunpack.c.l.b16 %v3689
    %v3727 = vunpack.c.l.b16 %v3690
    %v3728 = vunpack.c.l.b16 %v3691
    %v3729 = vunpack.c.l.b16 %v3692
    %v3730 = vunpack.c.l.b16 %v3693
    %v3731 = vunpack.c.l.b16 %v3694
    %v3732 = vunpack.c.l.b16 %v3695
    %v3733 = vunpack.c.l.b16 %v3696
    %v3734 = vunpack.c.l.b16 %v3697
    %v3735 = vunpack.c.l.b16 %v3698
    %v3736 = vpack.c.b16 %v3721, %v3720
    %v3737 = vpack.c.b16 %v3723, %v3722
    %v3738 = vpack.c.b16 %v3725, %v3724
    %v3739 = vpack.c.b16 %v3727, %v3726
    %v3740 = vpack.c.b16 %v3729, %v3728
    %v3741 = vpack.c.b16 %v3731, %v3730
    %v3742 = vpack.c.b16 %v3733, %v3732
    %v3743 = vpack.c.b16 %v3735, %v3734
    %3752 = vmatpush.bf16.msra.mxu0 %v3743
    %3753 = vmatpush.bf16.msra.mxu0 %v3742
    %3754 = vmatpush.bf16.msra.mxu0 %v3741
    %3755 = vmatpush.bf16.msra.mxu0 %v3740
    %3756 = vmatpush.bf16.msra.mxu0 %v3739
    %3757 = vmatpush.bf16.msra.mxu0 %v3738
    %3758 = vmatpush.bf16.msra.mxu0 %v3737
    %3759 = vmatpush.bf16.msra.mxu0 %v3736
    %3760 = vmatmul.bf16.gmra.mxu0 %v3699
    %v3761 = vpop.f32.mrf.mxu0
    %v3762 = vadd.f32 %v3702, %v3761
    %v3763 = vpop.f32.mrf.mxu0
    %v3764 = vadd.f32 %v3702, %v3763
    %3765 = vdwg.mxu0
    %3766 = vst [vmem:[%s15] sm:$0xff] %v3762
    %3767 = vst [vmem:[%s15 + $0x8] sm:$0xff] %v3764
    // Predicated region
    $region86: #{_lambda_.1} parent=1 // pred_check
      _
    $region87: #{_lambda_.1} parent=1 // pred_check_branch
      %3769 = sbr.rel (0) target = $region89
    $region88: #{_lambda_.1} parent=1 // pred_region
      _
    $region89: #{_lambda_.1} parent=1 // pred_fallthru
      _
    // Predicated region
    $region90: #{_lambda_.1} parent=1 // pred_check
      _
    $region91: #{_lambda_.1} parent=1 // pred_check_branch
      %3771 = sbr.rel (0) target = $region93
    $region92: #{_lambda_.1} parent=1 // pred_region
      _
    $region93: #{_lambda_.1} parent=1 // pred_fallthru
      _
    %3772 = vsyncpa [#allocation3], 1
    %3773 = vsyncpa [#allocation5], 1
    %3774 = vsyncpa [#allocation8], 1
    %3775 = vsyncpa [#allocation11], 1

</llo_original>
